<compile_context>
chip_gen: v7x
topology: tpu7x:2x2x1
jax: 0.10.0
libtpu: 0.0.40
codegen_flags: <defaults>
</compile_context>

<pallas_src>
import jax
import jax.numpy as jnp
from jax.experimental import pallas as pl
from jax.experimental.pallas import tpu as pltpu

# ---------------------------------------------------------------------------
# Synthetic NIMBLE constants (the torch module imports these from a util file).
# 25 joints, 20 axis-angle rotations (rotation 0 = root), joints 1..19 use
# rotation (bone-1), joints 20..24 carry identity; kinematic tree is a chain.
# ---------------------------------------------------------------------------
STATIC_JOINT_NUM = 25
STATIC_BONE_NUM = 20
ROOT_JOINT_IDX = 0
JOINT_PARENT_ID_DICT = {0: -1, **{i: i - 1 for i in range(1, STATIC_JOINT_NUM)}}
JOINT_ID_BONE_DICT = {i: i + 1 for i in range(1, STATIC_BONE_NUM)}

_VMEM_LIMIT = 32 * 1024 * 1024  # explicit, safe on v5e/v6e/v7x


def _round_up(x, m):
    return ((x + m - 1) // m) * m


def _choose_tile(n, max_tile, min_steps=1):
    """Largest multiple-of-128 tile <= max_tile that divides `n` exactly.

    Prefers tiles leaving >= min_steps grid steps (megacore balance on v7x);
    if none qualifies, returns the largest exact-divisor tile.  `n` % 128 == 0.
    """
    assert n % 128 == 0
    hi = min(max_tile, n)
    cand = [t for t in range(128, hi + 1, 128) if n % t == 0]
    ok = [t for t in cand if n // t >= min_steps]
    return max(ok) if ok else max(cand)


# ---------------------------------------------------------------------------
# Pallas kernels
# ---------------------------------------------------------------------------
def _texture_kernel(coef_ref, basis_ref, out_ref):
    # out = clamp(coef_aug @ basis_aug, 0, 1).
    # basis row K is the folded PCA mean, coef column K is the constant 1.
    # bf16 stream, f32 MXU accumulation, bf16 output (values live in [0,1]).
    y = jnp.dot(coef_ref[...].astype(basis_ref.dtype), basis_ref[...],
                preferred_element_type=jnp.float32)
    out_ref[...] = jnp.clip(y, 0.0, 1.0).astype(out_ref.dtype)


def texture_decode(coef_aug, basis_p, n_out, tn, out_dtype):
    """coef_aug (B,K+1) @ basis_p (K+1,Npad) -> clamp -> (B, n_out); Npad % tn == 0."""
    B, K1 = coef_aug.shape
    n_pad = basis_p.shape[1]
    out = pl.pallas_call(
        _texture_kernel,
        out_shape=jax.ShapeDtypeStruct((B, n_pad), out_dtype),
        grid_spec=pltpu.PrefetchScalarGridSpec(
            num_scalar_prefetch=0,
            grid=(n_pad // tn,),
            in_specs=[pl.BlockSpec((B, K1), lambda j: (0, 0)),
                      pl.BlockSpec((K1, tn), lambda j: (0, j))],
            out_specs=pl.BlockSpec((B, tn), lambda j: (0, j))),
        compiler_params=pltpu.CompilerParams(
            dimension_semantics=("parallel",),
            vmem_limit_bytes=_VMEM_LIMIT),
    )(coef_aug, basis_p)
    return out if n_out == n_pad else out[:, :n_out]


def _blend_kernel(betas_ref, sbasis_ref, base_ref, pmap_ref, pbasis_ref, posed_ref):
    # posed = (betas_real @ shape_basis + th_verts) + pose_map @ pose_blend_shapes
    shaped = jnp.dot(betas_ref[...].astype(sbasis_ref.dtype), sbasis_ref[...],
                     preferred_element_type=jnp.float32) + base_ref[...]
    posed_ref[...] = shaped + jnp.dot(pmap_ref[...].astype(pbasis_ref.dtype),
                                      pbasis_ref[...],
                                      preferred_element_type=jnp.float32)


def shape_pose_blend(betas_real, shape_basis_p, base_p, pose_map, pbs_p, tn):
    """Fused shape + pose blend over coordinate-major flat vertices (column-tiled)."""
    B, S = betas_real.shape
    P = pose_map.shape[1]
    n_pad = shape_basis_p.shape[1]
    return pl.pallas_call(
        _blend_kernel,
        out_shape=jax.ShapeDtypeStruct((B, n_pad), jnp.float32),
        grid_spec=pltpu.PrefetchScalarGridSpec(
            num_scalar_prefetch=0,
            grid=(n_pad // tn,),
            in_specs=[pl.BlockSpec((B, S), lambda j: (0, 0)),
                      pl.BlockSpec((S, tn), lambda j: (0, j)),
                      pl.BlockSpec((1, tn), lambda j: (0, j)),
                      pl.BlockSpec((B, P), lambda j: (0, 0)),
                      pl.BlockSpec((P, tn), lambda j: (0, j))],
            out_specs=pl.BlockSpec((B, tn), lambda j: (0, j))),
        compiler_params=pltpu.CompilerParams(
            dimension_semantics=("parallel",),
            vmem_limit_bytes=_VMEM_LIMIT),
    )(betas_real, shape_basis_p, base_p, pose_map, pbs_p)


def _skin_kernel(g2m_ref, sw_ref, pts_ref, out_ref):
    # Linear blend skinning (compute_warp), g2m rows ordered m*3+k
    # (m = homogeneous input coord, k = output coord):
    #   t2[m*3+k, v] = sum_j G2[k, m, j] * sw[j, v]     (one (12,J)@(J,Vp) matmul)
    #   out[k, v]    = t2[k]*x_v + t2[3+k]*y_v + t2[6+k]*z_v + t2[9+k]
    t2 = jnp.dot(g2m_ref[0], sw_ref[...].astype(jnp.float32),
                 preferred_element_type=jnp.float32)                 # (12, Vp)
    p = pts_ref[0]                                                   # (3, Vp)
    out_ref[0] = (t2[0:3] * p[0:1] + t2[3:6] * p[1:2]
                  + t2[6:9] * p[2:3] + t2[9:12])


def lbs_skin(g2m, sw_t, pts_t):
    """g2m (B,12,J), sw_t (J,Vp) bf16, pts_t (B,3,Vp) -> skinned verts (B,3,Vp) f32."""
    B = g2m.shape[0]
    J, Vp = sw_t.shape
    # TODO(synk): for large B, move the batch loop inside the kernel (grid=(1,)) to
    # amortize the per-grid-step cost; at small B this layout is fine.
    return pl.pallas_call(
        _skin_kernel,
        out_shape=jax.ShapeDtypeStruct((B, 3, Vp), jnp.float32),
        grid_spec=pltpu.PrefetchScalarGridSpec(
            num_scalar_prefetch=0,
            grid=(B,),
            in_specs=[pl.BlockSpec((1, 12, J), lambda b: (b, 0, 0)),
                      pl.BlockSpec((J, Vp), lambda b: (0, 0)),
                      pl.BlockSpec((1, 3, Vp), lambda b: (b, 0, 0))],
            out_specs=pl.BlockSpec((1, 3, Vp), lambda b: (b, 0, 0))),
        compiler_params=pltpu.CompilerParams(
            dimension_semantics=("parallel",),
            vmem_limit_bytes=_VMEM_LIMIT),
    )(g2m, sw_t, pts_t)


# ---------------------------------------------------------------------------
# Plain-JAX glue: quaternion Rodrigues + kinematic chain (tiny sequential 4x4)
# ---------------------------------------------------------------------------
def quat2mat(quat):
    q = quat / jnp.linalg.norm(quat, axis=1, keepdims=True)
    w, x, y, z = q[:, 0], q[:, 1], q[:, 2], q[:, 3]
    w2, x2, y2, z2 = w * w, x * x, y * y, z * z
    wx, wy, wz = w * x, w * y, w * z
    xy, xz, yz = x * y, x * z, y * z
    R = jnp.stack([w2 + x2 - y2 - z2, 2 * xy - 2 * wz, 2 * wy + 2 * xz,
                   2 * wz + 2 * xy, w2 - x2 + y2 - z2, 2 * yz - 2 * wx,
                   2 * xz - 2 * wy, 2 * wx + 2 * yz, w2 - x2 - y2 + z2],
                  axis=1).reshape(-1, 3, 3)
    return R


def batch_rodrigues(axisang):
    # Quaternion-based, matching the manopth-style reference (axisang + 1e-8 norm).
    angle = jnp.linalg.norm(axisang + 1e-8, axis=1, keepdims=True)
    normalized = axisang / angle
    half = angle * 0.5
    quat = jnp.concatenate([jnp.cos(half), jnp.sin(half) * normalized], axis=1)
    return quat2mat(quat)


def rigid_transform(R, t):
    B = R.shape[0]
    top = jnp.concatenate([R, t.reshape(B, 3, 1)], axis=2)
    bottom = jnp.tile(jnp.array([[[0.0, 0.0, 0.0, 1.0]]], jnp.float32), (B, 1, 1))
    return jnp.concatenate([top, bottom], axis=1)


def kinematic_chain(rots, joints):
    """rots (B,20,3,3), joints (B,25,3) -> (g2m (B,12,25), jtr (B,25,3))."""
    B = rots.shape[0]
    ident = jnp.tile(jnp.eye(3, dtype=jnp.float32)[None], (B, 1, 1))
    results = [rigid_transform(rots[:, 0], joints[:, 0])]
    for i in range(1, STATIC_JOINT_NUM):
        if i in JOINT_ID_BONE_DICT:
            rot_i = rots[:, JOINT_ID_BONE_DICT[i] - 1]
        else:
            rot_i = ident
        parent = JOINT_PARENT_ID_DICT[i]
        rel = rigid_transform(rot_i, joints[:, i] - joints[:, parent])
        results.append(jnp.einsum('bij,bjk->bik', results[parent], rel))
    G = jnp.stack(results, axis=1)                                   # (B, J, 4, 4)
    jtr = G[:, :, :3, 3]
    j_h = jnp.concatenate(
        [joints, jnp.zeros((B, STATIC_JOINT_NUM, 1), jnp.float32)], axis=2)
    tmp = jnp.einsum('bjkm,bjm->bjk', G, j_h)
    G2 = G.at[:, :, :, 3].add(-tmp)                                  # G_i - th_pack(G_i @ [j;0])
    # (B,J,3,4)[b,j,k,m] -> (B,4,3,J)[b,m,k,j] -> (B,12,J), rows = m*3 + k
    g2m = G2[:, :, :3, :].transpose(0, 3, 2, 1).reshape(B, 12, STATIC_JOINT_NUM)
    return g2m, jtr


# ---------------------------------------------------------------------------
# NIMBLELayer (Pallas implementation)
# ---------------------------------------------------------------------------
class NIMBLELayerPallas:
    def __init__(self, p, bone_v_sep, skin_v_sep, tex_size,
                 shape_ncomp=20, pose_ncomp=30, tex_ncomp=10,
                 tex_max_tile=131072, tex_out_dtype=jnp.bfloat16):
        # tex_max_tile: ~4 MB streamed bytes / grid step.  65536 is enough on v5e,
        # 131072 is the sweet spot on v6e, up to 262144 on v7x if VMEM allows.
        self.bone_v_sep = bone_v_sep
        self.skin_v_sep = skin_v_sep
        self.tex_size = tex_size
        self.shape_ncomp = shape_ncomp
        self.pose_ncomp = pose_ncomp
        self.tex_ncomp = tex_ncomp
        self.tex_out_dtype = tex_out_dtype

        V = p['th_verts'].shape[0]
        self.V = V
        Vp = _round_up(V, 128)                      # lane-dense vertex padding
        self.Vp = Vp
        pad_v = Vp - V
        P = STATIC_BONE_NUM * 9

        # ---- shape/pose blend operands, coordinate-major flat (3*Vp) ---------
        # tile = Vp -> grid of 3, exact divisor, free reshape to (B, 3, Vp).
        th_verts = p['th_verts'].astype(jnp.float32)                     # (V, 3)
        th_verts_pad = jnp.pad(th_verts, ((0, pad_v), (0, 0)))           # (Vp, 3)
        self.base_p = th_verts_pad.T.reshape(1, 3 * Vp)                  # f32 bias

        shape_basis = p['shape_basis'][:shape_ncomp]                     # (S, 3V), v-major
        sb_v3 = shape_basis.reshape(shape_ncomp, V, 3)                   # (S, V, 3)
        sb_cm = jnp.pad(sb_v3, ((0, 0), (0, pad_v), (0, 0))
                        ).transpose(0, 2, 1).reshape(shape_ncomp, 3 * Vp)
        pbs = jnp.pad(p['pbs'], ((0, pad_v), (0, 0), (0, 0)))            # (Vp, 3, P)
        pbs_cm = pbs.transpose(2, 1, 0).reshape(P, 3 * Vp)               # (P, 3*Vp)

        self.blend_tn = Vp
        self.shape_basis_p = sb_cm.astype(jnp.bfloat16)
        self.pbs_p = pbs_cm.astype(jnp.bfloat16)

        self.shape_pm_std = p['shape_pm_std'][:shape_ncomp]
        self.shape_pm_mean = p['shape_pm_mean'][:shape_ncomp]

        # ---- joint regression folded into the shape PCA (removes the `shaped`
        #      vertex output stream; exact f32 linear algebra) -----------------
        self.jreg_base = jnp.einsum('jv,vc->jc', p['jreg_bone'],
                                    th_verts[:bone_v_sep])               # (25, 3)
        self.jreg_sb = jnp.einsum('jv,svc->sjc', p['jreg_bone'],
                                  sb_v3[:, :bone_v_sep, :])              # (S, 25, 3)

        # ---- pose PCA decode: tiny (B,30)@(30,57) -> plain JAX ---------------
        self.pose_basis = p['pose_basis'][:pose_ncomp]                   # (Pc, 57)
        self.pose_mean = p['pose_mean']                                  # (57,)
        self.pose_pm_std = p['pose_pm_std'][:pose_ncomp]
        self.pose_pm_mean = p['pose_pm_mean'][:pose_ncomp]

        # ---- skinning operands (sw bf16: invariant, resident) -----------------
        self.sw_t = jnp.pad(p['sw'], ((0, pad_v), (0, 0))).T.astype(jnp.bfloat16)

        # ---- texture PCA: std folded into basis, mean folded as extra row,
        #      diffuse/normal/spec interleaved per pixel -> (B, ts, ts, 9) ------
        ts2 = tex_size * tex_size

        def _std_fold(basis, std):          # (ts2*3, Kfull) -> (K, ts2, 3)
            return (basis[:, :tex_ncomp] * std[None, :tex_ncomp]).T.reshape(
                tex_ncomp, ts2, 3)

        tex_basis9 = jnp.concatenate(
            [_std_fold(p['tex_diffuse_basis'], p['tex_diffuse_std']),
             _std_fold(p['tex_normal_basis'], p['tex_normal_std']),
             _std_fold(p['tex_spec_basis'], p['tex_spec_std'])],
            axis=-1).reshape(tex_ncomp, ts2 * 9)
        tex_mean9 = jnp.concatenate(
            [p['tex_diffuse_mean'].reshape(ts2, 3),
             p['tex_normal_mean'].reshape(ts2, 3),
             p['tex_spec_mean'].reshape(ts2, 3)],
            axis=-1).reshape(1, ts2 * 9)
        tex_basis_aug = jnp.concatenate([tex_basis9, tex_mean9], axis=0)  # (K+1, n)

        self.tex_n = ts2 * 9
        n128 = _round_up(self.tex_n, 128)
        self.tex_tn = _choose_tile(n128, tex_max_tile, min_steps=4)
        self.tex_basis_p = jnp.pad(
            tex_basis_aug, ((0, 0), (0, n128 - self.tex_n))).astype(jnp.bfloat16)

    # -----------------------------------------------------------------------
    def generate_full_pose(self, theta):
        B = theta.shape[0]
        theta_real = theta * self.pose_pm_std[None, :] + self.pose_pm_mean[None, :]
        full = theta_real @ self.pose_basis + self.pose_mean[None, :]    # (B, 57)
        root = jnp.zeros((B, 3), jnp.float32)                            # with_root=False
        return jnp.concatenate([root, full], axis=1).reshape(B, STATIC_BONE_NUM, 3)

    def generate_texture(self, alpha):
        B = alpha.shape[0]
        coef_aug = jnp.concatenate(
            [alpha.astype(jnp.float32), jnp.ones((B, 1), jnp.float32)], axis=1)
        flat = texture_decode(coef_aug, self.tex_basis_p, n_out=self.tex_n,
                              tn=self.tex_tn, out_dtype=self.tex_out_dtype)
        return flat.reshape(B, self.tex_size, self.tex_size, 9)

    # -----------------------------------------------------------------------
    def __call__(self, pose_param, shape_param, texture_param):
        B = pose_param.shape[0]

        # pose PCA -> full axis-angle pose (B, 20, 3) -> rotations / pose map
        # NOTE: pose_map includes the root block (P = 20*9); real NIMBLE weights may
        # exclude the root (19*9) -- verify against the actual pbs layout.
        full_pose = self.generate_full_pose(pose_param)
        rots = batch_rodrigues(full_pose.reshape(-1, 3)).reshape(
            B, STATIC_BONE_NUM, 3, 3)
        pose_map = (rots - jnp.eye(3, dtype=rots.dtype)).reshape(B, STATIC_BONE_NUM * 9)

        # fused shape blend + pose blend, coordinate-major flat layout (posed only)
        betas_real = (shape_param * self.shape_pm_std[None, :]
                      + self.shape_pm_mean[None, :])
        posed_flat = shape_pose_blend(betas_real, self.shape_basis_p, self.base_p,
                                      pose_map, self.pbs_p, self.blend_tn)
        posed_3 = posed_flat.reshape(B, 3, self.Vp)                       # (B, 3, Vp)

        # joint regression folded into the shape PCA (equivalent to jreg @ shaped)
        jreg_joints = (jnp.einsum('bs,sjc->bjc', betas_real, self.jreg_sb)
                       + self.jreg_base[None])                            # (B, 25, 3)

        # kinematic chain -> per-joint relative-to-rest transforms
        g2m, th_jtr = kinematic_chain(rots, jreg_joints)

        # LBS skinning kernel (coordinate-major in/out, no pre-transpose)
        verts_t = lbs_skin(g2m, self.sw_t, posed_3)                       # (B, 3, Vp)
        mesh_v = jnp.swapaxes(verts_t[:, :, :self.V], 1, 2)               # (B, V, 3)

        tex_img = self.generate_texture(texture_param)

        # TODO(synk): handle_collision (trimesh ray/mesh queries + pytorch3d vertex
        # normals) has no Pallas equivalent; forward implemented with handle_collision=False.
        skin_v = mesh_v[:, self.skin_v_sep:, :]
        muscle_v = mesh_v[:, self.bone_v_sep:self.skin_v_sep, :]
        bone_v = mesh_v[:, :self.bone_v_sep, :]
        return skin_v, muscle_v, bone_v, th_jtr, tex_img


# ---------------------------------------------------------------------------
# Deterministic synthetic parameters + demo run
# ---------------------------------------------------------------------------
if __name__ == "__main__":
    key = jax.random.PRNGKey(0)
    keys = jax.random.split(key, 25)

    B = 2
    V, bone_v_sep, skin_v_sep = 128, 48, 96
    tex_size = 64                     # module default is 1024; shrunk for the demo
    shape_ncomp, pose_ncomp, tex_ncomp = 20, 30, 10
    P = STATIC_BONE_NUM * 9
    N3V = V * 3
    Ntex = tex_size * tex_size * 3
    pose_dim = (STATIC_BONE_NUM - 1) * 3  # 57 (root appended separately)

    params = dict(
        th_verts=jax.random.normal(keys[0], (V, 3)) * 0.05,
        shape_basis=jax.random.normal(keys[1], (shape_ncomp, N3V)) * 0.01,
        shape_pm_std=jnp.abs(jax.random.normal(keys[2], (shape_ncomp,))) * 0.5 + 0.5,
        shape_pm_mean=jax.random.normal(keys[3], (shape_ncomp,)) * 0.1,
        pose_basis=jax.random.normal(keys[4], (pose_ncomp, pose_dim)) * 0.05,
        pose_mean=jax.random.normal(keys[5], (pose_dim,)) * 0.05,
        pose_pm_std=jnp.abs(jax.random.normal(keys[6], (pose_ncomp,))) * 0.5 + 0.5,
        pose_pm_mean=jax.random.normal(keys[7], (pose_ncomp,)) * 0.05,
        jreg_bone=jax.nn.softmax(jax.random.normal(keys[8], (STATIC_JOINT_NUM, bone_v_sep)), axis=1),
        sw=jax.nn.softmax(jax.random.normal(keys[9], (V, STATIC_JOINT_NUM)) * 2.0, axis=1),
        pbs=jax.random.normal(keys[10], (V, 3, P)) * 0.01,
        tex_diffuse_basis=jax.random.normal(keys[11], (Ntex, tex_ncomp)) * 0.05,
        tex_diffuse_mean=jax.nn.sigmoid(jax.random.normal(keys[12], (Ntex,))),
        tex_diffuse_std=jnp.abs(jax.random.normal(keys[13], (tex_ncomp,))) * 0.3 + 0.1,
        tex_normal_basis=jax.random.normal(keys[14], (Ntex, tex_ncomp)) * 0.05,
        tex_normal_mean=jax.nn.sigmoid(jax.random.normal(keys[15], (Ntex,))),
        tex_normal_std=jnp.abs(jax.random.normal(keys[16], (tex_ncomp,))) * 0.3 + 0.1,
        tex_spec_basis=jax.random.normal(keys[17], (Ntex, tex_ncomp)) * 0.05,
        tex_spec_mean=jax.nn.sigmoid(jax.random.normal(keys[18], (Ntex,))),
        tex_spec_std=jnp.abs(jax.random.normal(keys[19], (tex_ncomp,))) * 0.3 + 0.1,
    )

    layer = NIMBLELayerPallas(params, bone_v_sep, skin_v_sep, tex_size,
                              shape_ncomp, pose_ncomp, tex_ncomp)

    pose_param = jax.random.normal(keys[20], (B, pose_ncomp)) * 0.5
    shape_param = jax.random.normal(keys[21], (B, shape_ncomp)) * 0.5
    texture_param = jax.random.normal(keys[22], (B, tex_ncomp)) * 0.5

    fwd = jax.jit(lambda p, s, t: layer(p, s, t))
    skin_v, muscle_v, bone_v, bone_joints, tex_img = fwd(pose_param, shape_param, texture_param)
    jax.block_until_ready((skin_v, muscle_v, bone_v, bone_joints, tex_img))

    assert skin_v.shape == (B, V - skin_v_sep, 3)
    assert muscle_v.shape == (B, skin_v_sep - bone_v_sep, 3)
    assert bone_v.shape == (B, bone_v_sep, 3)
    assert bone_joints.shape == (B, STATIC_JOINT_NUM, 3)
    assert tex_img.shape == (B, tex_size, tex_size, 9)
    assert bool(jnp.all(jnp.isfinite(skin_v))) and bool(jnp.all(jnp.isfinite(tex_img)))
    print("KERNEL_OK")
</pallas_src>

<mosaic_0001>
module attributes {stable_mosaic.version = 11 : i64} {
  func.func @_blend_kernel(%arg0: i32, %arg1: memref<2x20xf32, #tpu.memory_space<vmem>>, %arg2: memref<20x128xbf16, #tpu.memory_space<vmem>>, %arg3: memref<1x128xf32, #tpu.memory_space<vmem>>, %arg4: memref<2x180xf32, #tpu.memory_space<vmem>>, %arg5: memref<180x128xbf16, #tpu.memory_space<vmem>>, %arg6: memref<2x128xf32, #tpu.memory_space<vmem>>) attributes {dimension_semantics = [#tpu.dimension_semantics<parallel>], iteration_bounds = array<i64: 3>, scalar_prefetch = 0 : i64, scratch_operands = 0 : i64, tpu.core_type = #tpu.core_type<tc>, window_params = [{pipeline_mode = #tpu.pipeline_mode<synchronous>, transform_indices = @transform_0, window_bounds = array<i64: 2, 20>}, {transform_indices = @transform_1, window_bounds = array<i64: 20, 128>}, {transform_indices = @transform_2, window_bounds = array<i64: 1, 128>}, {pipeline_mode = #tpu.pipeline_mode<synchronous>, transform_indices = @transform_3, window_bounds = array<i64: 2, 180>}, {transform_indices = @transform_4, window_bounds = array<i64: 180, 128>}, {transform_indices = @transform_5, window_bounds = array<i64: 2, 128>}]} {
    %c0 = arith.constant 0 : index
    %c0_0 = arith.constant 0 : index
    %0 = vector.load %arg1[%c0, %c0_0] : memref<2x20xf32, #tpu.memory_space<vmem>>, vector<2x20xf32>
    %1 = arith.truncf %0 : vector<2x20xf32> to vector<2x20xbf16>
    %c0_1 = arith.constant 0 : index
    %c0_2 = arith.constant 0 : index
    %2 = vector.load %arg2[%c0_1, %c0_2] : memref<20x128xbf16, #tpu.memory_space<vmem>>, vector<20x128xbf16>
    %cst = arith.constant dense<0.000000e+00> : vector<2x128xf32>
    %3 = tpu.matmul %1, %2, %cst {dimension_numbers = #tpu.dot_dimension_numbers<[1], [0], [0], [1], [0, 0, 1, 1], [], []>} : vector<2x20xbf16>, vector<20x128xbf16>, vector<2x128xf32> -> vector<2x128xf32>
    %c0_3 = arith.constant 0 : index
    %c0_4 = arith.constant 0 : index
    %4 = vector.load %arg3[%c0_3, %c0_4] : memref<1x128xf32, #tpu.memory_space<vmem>>, vector<1x128xf32>
    %5 = vector.broadcast %4 : vector<1x128xf32> to vector<2x128xf32>
    %6 = arith.addf %3, %5 : vector<2x128xf32>
    %c0_5 = arith.constant 0 : index
    %c0_6 = arith.constant 0 : index
    %7 = vector.load %arg4[%c0_5, %c0_6] : memref<2x180xf32, #tpu.memory_space<vmem>>, vector<2x180xf32>
    %8 = arith.truncf %7 : vector<2x180xf32> to vector<2x180xbf16>
    %c0_7 = arith.constant 0 : index
    %c0_8 = arith.constant 0 : index
    %9 = vector.load %arg5[%c0_7, %c0_8] : memref<180x128xbf16, #tpu.memory_space<vmem>>, vector<180x128xbf16>
    %cst_9 = arith.constant dense<0.000000e+00> : vector<2x128xf32>
    %10 = tpu.matmul %8, %9, %cst_9 {dimension_numbers = #tpu.dot_dimension_numbers<[1], [0], [0], [1], [0, 0, 1, 1], [], []>} : vector<2x180xbf16>, vector<180x128xbf16>, vector<2x128xf32> -> vector<2x128xf32>
    %11 = arith.addf %6, %10 : vector<2x128xf32>
    %c0_10 = arith.constant 0 : index
    %c0_11 = arith.constant 0 : index
    %12 = vector.load %arg6[%c0_10, %c0_11] : memref<2x128xf32, #tpu.memory_space<vmem>>, vector<2x128xf32>
    tpu.vector_store %arg6[%c0_10, %c0_11], %11 {strides = array<i32>} : memref<2x128xf32, #tpu.memory_space<vmem>>, vector<2x128xf32>,
    return
  }
  func.func @transform_0(%arg0: i32) -> (i32, i32) {
    %c0_i32 = arith.constant 0 : i32
    %c0_i32_0 = arith.constant 0 : i32
    %c0_i32_1 = arith.constant 0 : i32
    return %c0_i32, %c0_i32_0 : i32, i32
  }
  func.func @transform_1(%arg0: i32) -> (i32, i32) {
    %c0_i32 = arith.constant 0 : i32
    %c0_i32_0 = arith.constant 0 : i32
    return %c0_i32, %arg0 : i32, i32
  }
  func.func @transform_2(%arg0: i32) -> (i32, i32) {
    %c0_i32 = arith.constant 0 : i32
    %c0_i32_0 = arith.constant 0 : i32
    return %c0_i32, %arg0 : i32, i32
  }
  func.func @transform_3(%arg0: i32) -> (i32, i32) {
    %c0_i32 = arith.constant 0 : i32
    %c0_i32_0 = arith.constant 0 : i32
    %c0_i32_1 = arith.constant 0 : i32
    return %c0_i32, %c0_i32_0 : i32, i32
  }
  func.func @transform_4(%arg0: i32) -> (i32, i32) {
    %c0_i32 = arith.constant 0 : i32
    %c0_i32_0 = arith.constant 0 : i32
    return %c0_i32, %arg0 : i32, i32
  }
  func.func @transform_5(%arg0: i32) -> (i32, i32) {
    %c0_i32 = arith.constant 0 : i32
    %c0_i32_0 = arith.constant 0 : i32
    return %c0_i32, %arg0 : i32, i32
  }
}

module attributes {stable_mosaic.version = 11 : i64} {
  func.func @_skin_kernel(%arg0: i32, %arg1: memref<1x12x25xf32, #tpu.memory_space<vmem>>, %arg2: memref<25x128xbf16, #tpu.memory_space<vmem>>, %arg3: memref<1x3x128xf32, #tpu.memory_space<vmem>>, %arg4: memref<1x3x128xf32, #tpu.memory_space<vmem>>) attributes {dimension_semantics = [#tpu.dimension_semantics<parallel>], iteration_bounds = array<i64: 2>, scalar_prefetch = 0 : i64, scratch_operands = 0 : i64, tpu.core_type = #tpu.core_type<tc>, window_params = [{transform_indices = @transform_0, window_bounds = array<i64: 1, 12, 25>}, {pipeline_mode = #tpu.pipeline_mode<synchronous>, transform_indices = @transform_1, window_bounds = array<i64: 25, 128>}, {transform_indices = @transform_2, window_bounds = array<i64: 1, 3, 128>}, {transform_indices = @transform_3, window_bounds = array<i64: 1, 3, 128>}]} {
    %c0 = arith.constant 0 : index
    %c0_0 = arith.constant 0 : index
    %c0_1 = arith.constant 0 : index
    %0 = vector.load %arg1[%c0, %c0_0, %c0_1] : memref<1x12x25xf32, #tpu.memory_space<vmem>>, vector<1x12x25xf32>
    %1 = vector.shape_cast %0 : vector<1x12x25xf32> to vector<12x25xf32>
    %c0_2 = arith.constant 0 : index
    %c0_3 = arith.constant 0 : index
    %2 = vector.load %arg2[%c0_2, %c0_3] : memref<25x128xbf16, #tpu.memory_space<vmem>>, vector<25x128xbf16>
    %3 = arith.extf %2 : vector<25x128xbf16> to vector<25x128xf32>
    %cst = arith.constant dense<0.000000e+00> : vector<12x128xf32>
    %4 = tpu.matmul %1, %3, %cst {dimension_numbers = #tpu.dot_dimension_numbers<[1], [0], [0], [1], [0, 0, 1, 1], [], []>} : vector<12x25xf32>, vector<25x128xf32>, vector<12x128xf32> -> vector<12x128xf32>
    %c0_4 = arith.constant 0 : index
    %c0_5 = arith.constant 0 : index
    %c0_6 = arith.constant 0 : index
    %5 = vector.load %arg3[%c0_4, %c0_5, %c0_6] : memref<1x3x128xf32, #tpu.memory_space<vmem>>, vector<1x3x128xf32>
    %6 = vector.shape_cast %5 : vector<1x3x128xf32> to vector<3x128xf32>
    %7 = vector.extract_strided_slice %4 {offsets = [0, 0], sizes = [3, 128], strides = [1, 1]} : vector<12x128xf32> to vector<3x128xf32>
    %8 = vector.extract_strided_slice %6 {offsets = [0, 0], sizes = [1, 128], strides = [1, 1]} : vector<3x128xf32> to vector<1x128xf32>
    %9 = vector.broadcast %8 : vector<1x128xf32> to vector<3x128xf32>
    %10 = arith.mulf %7, %9 : vector<3x128xf32>
    %11 = vector.extract_strided_slice %4 {offsets = [3, 0], sizes = [3, 128], strides = [1, 1]} : vector<12x128xf32> to vector<3x128xf32>
    %12 = vector.extract_strided_slice %6 {offsets = [1, 0], sizes = [1, 128], strides = [1, 1]} : vector<3x128xf32> to vector<1x128xf32>
    %13 = vector.broadcast %12 : vector<1x128xf32> to vector<3x128xf32>
    %14 = arith.mulf %11, %13 : vector<3x128xf32>
    %15 = arith.addf %10, %14 : vector<3x128xf32>
    %16 = vector.extract_strided_slice %4 {offsets = [6, 0], sizes = [3, 128], strides = [1, 1]} : vector<12x128xf32> to vector<3x128xf32>
    %17 = vector.extract_strided_slice %6 {offsets = [2, 0], sizes = [1, 128], strides = [1, 1]} : vector<3x128xf32> to vector<1x128xf32>
    %18 = vector.broadcast %17 : vector<1x128xf32> to vector<3x128xf32>
    %19 = arith.mulf %16, %18 : vector<3x128xf32>
    %20 = arith.addf %15, %19 : vector<3x128xf32>
    %21 = vector.extract_strided_slice %4 {offsets = [9, 0], sizes = [3, 128], strides = [1, 1]} : vector<12x128xf32> to vector<3x128xf32>
    %22 = arith.addf %20, %21 : vector<3x128xf32>
    %c0_7 = arith.constant 0 : index
    %c0_8 = arith.constant 0 : index
    %c0_9 = arith.constant 0 : index
    %23 = vector.load %arg4[%c0_7, %c0_8, %c0_9] : memref<1x3x128xf32, #tpu.memory_space<vmem>>, vector<1x3x128xf32>
    %24 = vector.shape_cast %23 : vector<1x3x128xf32> to vector<3x128xf32>
    %25 = vector.shape_cast %22 : vector<3x128xf32> to vector<1x3x128xf32>
    tpu.vector_store %arg4[%c0_7, %c0_8, %c0_9], %25 {strides = array<i32>} : memref<1x3x128xf32, #tpu.memory_space<vmem>>, vector<1x3x128xf32>,
    return
  }
  func.func @transform_0(%arg0: i32) -> (i32, i32, i32) {
    %c0_i32 = arith.constant 0 : i32
    %c0_i32_0 = arith.constant 0 : i32
    %c0_i32_1 = arith.constant 0 : i32
    return %arg0, %c0_i32, %c0_i32_0 : i32, i32, i32
  }
  func.func @transform_1(%arg0: i32) -> (i32, i32) {
    %c0_i32 = arith.constant 0 : i32
    %c0_i32_0 = arith.constant 0 : i32
    %c0_i32_1 = arith.constant 0 : i32
    return %c0_i32, %c0_i32_0 : i32, i32
  }
  func.func @transform_2(%arg0: i32) -> (i32, i32, i32) {
    %c0_i32 = arith.constant 0 : i32
    %c0_i32_0 = arith.constant 0 : i32
    %c0_i32_1 = arith.constant 0 : i32
    return %arg0, %c0_i32, %c0_i32_0 : i32, i32, i32
  }
  func.func @transform_3(%arg0: i32) -> (i32, i32, i32) {
    %c0_i32 = arith.constant 0 : i32
    %c0_i32_0 = arith.constant 0 : i32
    %c0_i32_1 = arith.constant 0 : i32
    return %arg0, %c0_i32, %c0_i32_0 : i32, i32, i32
  }
}

module attributes {stable_mosaic.version = 11 : i64} {
  func.func @_texture_kernel(%arg0: i32, %arg1: memref<2x11xf32, #tpu.memory_space<vmem>>, %arg2: memref<11x9216xbf16, #tpu.memory_space<vmem>>, %arg3: memref<2x9216xbf16, #tpu.memory_space<vmem>>) attributes {dimension_semantics = [#tpu.dimension_semantics<parallel>], iteration_bounds = array<i64: 4>, scalar_prefetch = 0 : i64, scratch_operands = 0 : i64, tpu.core_type = #tpu.core_type<tc>, window_params = [{pipeline_mode = #tpu.pipeline_mode<synchronous>, transform_indices = @transform_0, window_bounds = array<i64: 2, 11>}, {transform_indices = @transform_1, window_bounds = array<i64: 11, 9216>}, {transform_indices = @transform_2, window_bounds = array<i64: 2, 9216>}]} {
    %c0 = arith.constant 0 : index
    %c0_0 = arith.constant 0 : index
    %0 = vector.load %arg1[%c0, %c0_0] : memref<2x11xf32, #tpu.memory_space<vmem>>, vector<2x11xf32>
    %1 = arith.truncf %0 : vector<2x11xf32> to vector<2x11xbf16>
    %c0_1 = arith.constant 0 : index
    %c0_2 = arith.constant 0 : index
    %2 = vector.load %arg2[%c0_1, %c0_2] : memref<11x9216xbf16, #tpu.memory_space<vmem>>, vector<11x9216xbf16>
    %cst = arith.constant dense<0.000000e+00> : vector<2x9216xf32>
    %3 = tpu.matmul %1, %2, %cst {dimension_numbers = #tpu.dot_dimension_numbers<[1], [0], [0], [1], [0, 0, 1, 1], [], []>} : vector<2x11xbf16>, vector<11x9216xbf16>, vector<2x9216xf32> -> vector<2x9216xf32>
    %cst_3 = arith.constant 0.000000e+00 : f32
    %cst_4 = arith.constant 1.000000e+00 : f32
    %4 = vector.broadcast %cst_3 : f32 to vector<2x9216xf32>
    %5 = arith.maximumf %4, %3 : vector<2x9216xf32>
    %6 = vector.broadcast %cst_4 : f32 to vector<2x9216xf32>
    %7 = arith.minimumf %6, %5 : vector<2x9216xf32>
    %8 = arith.truncf %7 : vector<2x9216xf32> to vector<2x9216xbf16>
    %c0_5 = arith.constant 0 : index
    %c0_6 = arith.constant 0 : index
    %9 = vector.load %arg3[%c0_5, %c0_6] : memref<2x9216xbf16, #tpu.memory_space<vmem>>, vector<2x9216xbf16>
    tpu.vector_store %arg3[%c0_5, %c0_6], %8 {strides = array<i32>} : memref<2x9216xbf16, #tpu.memory_space<vmem>>, vector<2x9216xbf16>,
    return
  }
  func.func @transform_0(%arg0: i32) -> (i32, i32) {
    %c0_i32 = arith.constant 0 : i32
    %c0_i32_0 = arith.constant 0 : i32
    %c0_i32_1 = arith.constant 0 : i32
    return %c0_i32, %c0_i32_0 : i32, i32
  }
  func.func @transform_1(%arg0: i32) -> (i32, i32) {
    %c0_i32 = arith.constant 0 : i32
    %c0_i32_0 = arith.constant 0 : i32
    return %c0_i32, %arg0 : i32, i32
  }
  func.func @transform_2(%arg0: i32) -> (i32, i32) {
    %c0_i32 = arith.constant 0 : i32
    %c0_i32_0 = arith.constant 0 : i32
    return %c0_i32, %arg0 : i32, i32
  }
}

</mosaic_0001>

<llo_original>
// kernel: _lambda_.3
$region0: #{_lambda_.3}
  #allocation0 [shape = 'u32[]', space=smem, size = 0x4, offset = 0x4, fixed_abs, tag = 'smem constant byte address 0x4 - core index']
  #allocation1 [shape = 'u32[144,128]{1,0:T(1,128)}', space=vmem, size = 0x12000, scoped, tag = 'internal scratch']
  %s0 = inlined_call_operand.vmem [shape: f32[2,20], index: 0, kind: input, shape index: {}]
  %s1 = inlined_call_operand.hbm [shape: bf16[20,384], index: 1, kind: input, shape index: {}]
  %s2 = inlined_call_operand.hbm [shape: f32[1,384], index: 2, kind: input, shape index: {}]
  %s3 = inlined_call_operand.vmem [shape: f32[2,180], index: 3, kind: input, shape index: {}]
  %s4 = inlined_call_operand.hbm [shape: bf16[180,384], index: 4, kind: input, shape index: {}]
  %s5 = inlined_call_operand.vmem [shape: f32[2,384], index: 5, kind: output, shape index: {}]
  %s6 = sld [smem:[#allocation0]]
  $region65: #{_lambda_.3} parent=0
    _
  %s8 = ssub.s32 1, %s6
  %s9 = scalar_select 0, %s8, %s6
  $region1: #{_lambda_.3} parent=0
    #allocation2 [shape = 'u8[12288]{0}', space=vmem, size = 0x3000, scoped, tag = 'input window, operand 1']
    #allocation3 [shape = 's32[2]{0}', space=sflag, size = 0x8, scoped, tag = 'scoped memory for _lambda_.3']
    #allocation4 [shape = 'u8[1024]{0}', space=vmem, size = 0x400, scoped, tag = 'input window, operand 2']
    #allocation5 [shape = 's32[2]{0}', space=sflag, size = 0x8, scoped, tag = 'scoped memory for _lambda_.3']
    #allocation6 [shape = 'u8[94208]{0}', space=vmem, size = 0x17000, scoped, tag = 'input window, operand 4']
    %10 = vsyncpa [#allocation3], 0
    %s11 = scalar_lea.sflag [#allocation3], 1
    %12 = vsyncpa %s11, 0
    %13 = vsyncpa [#allocation5], 0
    %s14 = scalar_lea.sflag [#allocation5], 1
    %15 = vsyncpa %s14, 0
    loop: start=0, step=1, limit=5
    $region2: #{_lambda_.3} parent=1 // loop_pre_header
      _
    $region3: #{_lambda_.3} parent=1 // loop_header
      %s17 = sphi 0, %s21
      %p18 = scmp.ge.s32.totalorder %s17, 5
      %s25 = sphi 0, %s25
      %s27 = sphi 0, %s25
      %s28 = sphi 0, %s27
      %s42 = sphi 0, %s28
      %s48 = sphi 0, %s50
      %s51 = sphi 0, %s48
      %s52 = sphi 0, %s51
      %s68 = sphi 0, %s52
      %s74 = sphi 0, %s76
      %s77 = sphi 0, %s74
      %s78 = sphi 0, %s77
      %s94 = sphi 0, %s78
      %s98 = sphi 0, %s98
      %s100 = sphi 0, %s98
      %s101 = sphi 0, %s100
      %s115 = sphi 0, %s101
      %s121 = sphi 0, %s123
      %s124 = sphi 0, %s121
      %s125 = sphi 0, %s124
      %s141 = sphi 0, %s125
      %s147 = sphi 0, %s149
      %s150 = sphi 0, %s147
      %s151 = sphi 0, %s150
      %s167 = sphi 0, %s151
    $region4: #{_lambda_.3} parent=1 // loop_header_branch
      %20 = sbr.rel (%p18) target = $region8
    $region5: #{_lambda_.3} parent=1 // loop_body
      %s22 = ssub.s32 %s17, 1
      %s23 = ssub.s32 %s17, 2
      %s24 = sadd.s32 %s17, 1
      %s26 = sadd.s32 %s25, 1
      %p29 = scmp.eq.s32.totalorder %s17, 2
      %p30 = scmp.ne.s32.totalorder %s25, %s27
      %p31 = scmp.eq.s32.totalorder %s17, 0
      %p32 = por %p30, %p31
      %p33 = scmp.ne.s32.totalorder %s25, %s27
      %p34 = scmp.eq.s32.totalorder %s22, 2
      %p35 = por %p33, %p34
      %p36 = scmp.ne.s32.totalorder %s27, %s28
      %p37 = scmp.eq.s32.totalorder %s22, 0
      %p38 = por %p36, %p37
      %p39 = scmp.ne.s32.totalorder %s27, %s28
      %p40 = scmp.eq.s32.totalorder %s23, 2
      %p41 = por %p39, %p40
      %p43 = scmp.ne.s32.totalorder %s28, %s42
      %p44 = scmp.eq.s32.totalorder %s23, 0
      %p45 = por %p43, %p44
      %s46 = ssub.s32 %s17, %s24
      %p47 = scmp.eq.s32.totalorder %s46, 0
      %s49 = sadd.s32 %s48, 1
      %s50 = scalar_select %p47, %s48, %s49
      %p53 = pneg %p47
      %p54 = scmp.eq.s32.totalorder %s17, 2
      %p55 = por %p53, %p54
      %p56 = scmp.ne.s32.totalorder %s48, %s51
      %p57 = scmp.eq.s32.totalorder %s17, 0
      %p58 = por %p56, %p57
      %p59 = scmp.ne.s32.totalorder %s48, %s51
      %p60 = scmp.eq.s32.totalorder %s22, 2
      %p61 = por %p59, %p60
      %p62 = scmp.ne.s32.totalorder %s51, %s52
      %p63 = scmp.eq.s32.totalorder %s22, 0
      %p64 = por %p62, %p63
      %p65 = scmp.ne.s32.totalorder %s51, %s52
      %p66 = scmp.eq.s32.totalorder %s23, 2
      %p67 = por %p65, %p66
      %p69 = scmp.ne.s32.totalorder %s52, %s68
      %p70 = scmp.eq.s32.totalorder %s23, 0
      %p71 = por %p69, %p70
      %s72 = ssub.s32 %s17, %s24
      %p73 = scmp.eq.s32.totalorder %s72, 0
      %s75 = sadd.s32 %s74, 1
      %s76 = scalar_select %p73, %s74, %s75
      %p79 = pneg %p73
      %p80 = scmp.eq.s32.totalorder %s17, 2
      %p81 = por %p79, %p80
      %p82 = scmp.ne.s32.totalorder %s74, %s77
      %p83 = scmp.eq.s32.totalorder %s17, 0
      %p84 = por %p82, %p83
      %p85 = scmp.ne.s32.totalorder %s74, %s77
      %p86 = scmp.eq.s32.totalorder %s22, 2
      %p87 = por %p85, %p86
      %p88 = scmp.ne.s32.totalorder %s77, %s78
      %p89 = scmp.eq.s32.totalorder %s22, 0
      %p90 = por %p88, %p89
      %p91 = scmp.ne.s32.totalorder %s77, %s78
      %p92 = scmp.eq.s32.totalorder %s23, 2
      %p93 = por %p91, %p92
      %p95 = scmp.ne.s32.totalorder %s78, %s94
      %p96 = scmp.eq.s32.totalorder %s23, 0
      %p97 = por %p95, %p96
      %s99 = sadd.s32 %s98, 1
      %p102 = scmp.eq.s32.totalorder %s17, 2
      %p103 = scmp.ne.s32.totalorder %s98, %s100
      %p104 = scmp.eq.s32.totalorder %s17, 0
      %p105 = por %p103, %p104
      %p106 = scmp.ne.s32.totalorder %s98, %s100
      %p107 = scmp.eq.s32.totalorder %s22, 2
      %p108 = por %p106, %p107
      %p109 = scmp.ne.s32.totalorder %s100, %s101
      %p110 = scmp.eq.s32.totalorder %s22, 0
      %p111 = por %p109, %p110
      %p112 = scmp.ne.s32.totalorder %s100, %s101
      %p113 = scmp.eq.s32.totalorder %s23, 2
      %p114 = por %p112, %p113
      %p116 = scmp.ne.s32.totalorder %s101, %s115
      %p117 = scmp.eq.s32.totalorder %s23, 0
      %p118 = por %p116, %p117
      %s119 = ssub.s32 %s17, %s24
      %p120 = scmp.eq.s32.totalorder %s119, 0
      %s122 = sadd.s32 %s121, 1
      %s123 = scalar_select %p120, %s121, %s122
      %p126 = pneg %p120
      %p127 = scmp.eq.s32.totalorder %s17, 2
      %p128 = por %p126, %p127
      %p129 = scmp.ne.s32.totalorder %s121, %s124
      %p130 = scmp.eq.s32.totalorder %s17, 0
      %p131 = por %p129, %p130
      %p132 = scmp.ne.s32.totalorder %s121, %s124
      %p133 = scmp.eq.s32.totalorder %s22, 2
      %p134 = por %p132, %p133
      %p135 = scmp.ne.s32.totalorder %s124, %s125
      %p136 = scmp.eq.s32.totalorder %s22, 0
      %p137 = por %p135, %p136
      %p138 = scmp.ne.s32.totalorder %s124, %s125
      %p139 = scmp.eq.s32.totalorder %s23, 2
      %p140 = por %p138, %p139
      %p142 = scmp.ne.s32.totalorder %s125, %s141
      %p143 = scmp.eq.s32.totalorder %s23, 0
      %p144 = por %p142, %p143
      %s145 = ssub.s32 %s17, %s24
      %p146 = scmp.eq.s32.totalorder %s145, 0
      %s148 = sadd.s32 %s147, 1
      %s149 = scalar_select %p146, %s147, %s148
      %p152 = pneg %p146
      %p153 = scmp.eq.s32.totalorder %s17, 2
      %p154 = por %p152, %p153
      %p155 = scmp.ne.s32.totalorder %s147, %s150
      %p156 = scmp.eq.s32.totalorder %s17, 0
      %p157 = por %p155, %p156
      %p158 = scmp.ne.s32.totalorder %s147, %s150
      %p159 = scmp.eq.s32.totalorder %s22, 2
      %p160 = por %p158, %p159
      %p161 = scmp.ne.s32.totalorder %s150, %s151
      %p162 = scmp.eq.s32.totalorder %s22, 0
      %p163 = por %p161, %p162
      %p164 = scmp.ne.s32.totalorder %s150, %s151
      %p165 = scmp.eq.s32.totalorder %s23, 2
      %p166 = por %p164, %p165
      %p168 = scmp.ne.s32.totalorder %s151, %s167
      %p169 = scmp.eq.s32.totalorder %s23, 0
      %p170 = por %p168, %p169
      %p171 = scmp.le.s32.totalorder 1, %s17
      %p172 = scmp.lt.s32.totalorder %s17, 4
      %p173 = pnand %p171, %p172
      %p174 = pneg %p173
      // Predicated region
      $region9: #{_lambda_.3} parent=5 // pred_check
        _
      $region10: #{_lambda_.3} parent=5 // pred_check_branch
        %176 = sbr.rel (%p173) target = $region12
      $region11: #{_lambda_.3} parent=5 // pred_region
        %s177 = ssub.s32 %s17, 1
        // Predicated region
        $region13: #{_lambda_.3} parent=11 // pred_check
          %p178 = pneg %p38
        $region14: #{_lambda_.3} parent=11 // pred_check_branch
          %180 = sbr.rel (%p178) target = $region16
        $region15: #{_lambda_.3} parent=11 // pred_region
          _
        $region16: #{_lambda_.3} parent=11 // pred_fallthru
          _
        // Predicated region
        $region17: #{_lambda_.3} parent=11 // pred_check
          %p181 = pneg %p111
        $region18: #{_lambda_.3} parent=11 // pred_check_branch
          %183 = sbr.rel (%p181) target = $region20
        $region19: #{_lambda_.3} parent=11 // pred_region
          _
        $region20: #{_lambda_.3} parent=11 // pred_fallthru
          _
      $region12: #{_lambda_.3} parent=5 // pred_fallthru
        _
      %p184 = scmp.lt.s32.totalorder %s17, 3
      // Predicated region
      $region21: #{_lambda_.3} parent=5 // pred_check
        %p185 = pneg %p184
      $region22: #{_lambda_.3} parent=5 // pred_check_branch
        %187 = sbr.rel (%p185) target = $region24
      $region23: #{_lambda_.3} parent=5 // pred_region
        // Predicated region
        $region25: #{_lambda_.3} parent=23 // pred_check
          %p188 = pneg %p58
        $region26: #{_lambda_.3} parent=23 // pred_check_branch
          %190 = sbr.rel (%p188) target = $region28
        $region27: #{_lambda_.3} parent=23 // pred_region
          %s191 = sand.u32 %s48, 1
          %s192 = scalar_lea.sflag [#allocation3], %s191
          %s193 = sand.u32 %s48, 1
          %s194 = smul.addr %s193, 12
          %s195 = scalar_lea.vmem [#allocation2], %s194
          %s197 = ssub.s32 192, 192
          %198 = vsyncadd %s192, %s197
          %s199 = smul.addr %s17, 64
          %s200 = scalar_lea.hbm %s1, %s199
          %s201 = sshll.u32 %s195, 4
          %s202 = int_to_ptr.vmem [resolvable:$true] %s201
          %207 = dma.hbm_to_vmem [thread:$0]  %s200, 192, %s202, %s192, 192, 64, 4
        $region28: #{_lambda_.3} parent=23 // pred_fallthru
          _
        // Predicated region
        $region29: #{_lambda_.3} parent=23 // pred_check
          %p208 = pneg %p84
        $region30: #{_lambda_.3} parent=23 // pred_check_branch
          %210 = sbr.rel (%p208) target = $region32
        $region31: #{_lambda_.3} parent=23 // pred_region
          %s211 = sand.u32 %s17, 1
          %s212 = scalar_lea.sflag [#allocation5], %s211
          %s213 = sand.u32 %s74, 1
          %s214 = scalar_lea.vmem [#allocation4], %s213
          %s216 = ssub.s32 16, 16
          %217 = vsyncadd %s212, %s216
          %s218 = smul.addr %s17, 16
          %s219 = scalar_lea.hbm %s2, %s218
          %s221 = sshll.u32 %s214, 4
          %s222 = int_to_ptr.vmem [resolvable:$true] %s221
          %224 = dma.hbm_to_vmem [thread:$0]  %s219, 16, %s222, %s212
        $region32: #{_lambda_.3} parent=23 // pred_fallthru
          _
        // Predicated region
        $region33: #{_lambda_.3} parent=23 // pred_check
          %p225 = pneg %p131
        $region34: #{_lambda_.3} parent=23 // pred_check_branch
          %227 = sbr.rel (%p225) target = $region36
        $region35: #{_lambda_.3} parent=23 // pred_region
          %s228 = sand.u32 %s17, 1
          %s229 = scalar_lea.sflag [#allocation5], %s228
          %s230 = sand.u32 %s121, 1
          %s231 = smul.addr %s230, 92
          %s232 = scalar_lea.vmem [#allocation6], %s231
          %s234 = ssub.s32 1472, 1472
          %235 = vsyncadd %s229, %s234
          %s236 = smul.addr %s17, 64
          %s237 = scalar_lea.hbm %s4, %s236
          %s238 = sshll.u32 %s232, 4
          %s239 = int_to_ptr.vmem [resolvable:$true] %s238
          %244 = dma.hbm_to_vmem [thread:$0]  %s237, 1472, %s239, %s229, 192, 64, 4
        $region36: #{_lambda_.3} parent=23 // pred_fallthru
          _
      $region24: #{_lambda_.3} parent=5 // pred_fallthru
        _
      %p245 = scmp.le.s32.totalorder 1, %s17
      %p246 = scmp.lt.s32.totalorder %s17, 4
      %p247 = pnand %p245, %p246
      %p248 = pneg %p247
      // Predicated region
      $region37: #{_lambda_.3} parent=5 // pred_check
        _
      $region38: #{_lambda_.3} parent=5 // pred_check_branch
        %250 = sbr.rel (%p247) target = $region40
      $region39: #{_lambda_.3} parent=5 // pred_region
        %s251 = ssub.s32 %s17, 1
        %s252 = sand.u32 %s51, 1
        %s253 = scalar_lea.sflag [#allocation3], %s252
        %s254 = sand.u32 %s51, 1
        %s255 = smul.addr %s254, 12
        %s256 = scalar_lea.vmem [#allocation2], %s255
        // Predicated region
        $region41: #{_lambda_.3} parent=39 // pred_check
          %p257 = pneg %p64
        $region42: #{_lambda_.3} parent=39 // pred_check_branch
          %259 = sbr.rel (%p257) target = $region44
        $region43: #{_lambda_.3} parent=39 // pred_region
          %260 = dma.done %s253, 192
        $region44: #{_lambda_.3} parent=39 // pred_fallthru
          _
        %s261 = sand.u32 %s22, 1
        %s262 = scalar_lea.sflag [#allocation5], %s261
        %s263 = sand.u32 %s77, 1
        %s264 = scalar_lea.vmem [#allocation4], %s263
        // Predicated region
        $region45: #{_lambda_.3} parent=39 // pred_check
          %p265 = pneg %p90
        $region46: #{_lambda_.3} parent=39 // pred_check_branch
          %267 = sbr.rel (%p265) target = $region48
        $region47: #{_lambda_.3} parent=39 // pred_region
          %268 = dma.done %s262, 16
        $region48: #{_lambda_.3} parent=39 // pred_fallthru
          _
        %s269 = sand.u32 %s22, 1
        %s270 = scalar_lea.sflag [#allocation5], %s269
        %s271 = sand.u32 %s124, 1
        %s272 = smul.addr %s271, 92
        %s273 = scalar_lea.vmem [#allocation6], %s272
        // Predicated region
        $region49: #{_lambda_.3} parent=39 // pred_check
          %p274 = pneg %p137
        $region50: #{_lambda_.3} parent=39 // pred_check_branch
          %276 = sbr.rel (%p274) target = $region52
        $region51: #{_lambda_.3} parent=39 // pred_region
          %277 = dma.done %s270, 1472
        $region52: #{_lambda_.3} parent=39 // pred_fallthru
          _
        %p278 = pneg %p38
        %p279 = pneg %p35
        %s280 = sand.u32 %s51, 1
        %s281 = scalar_lea.sflag [#allocation3], %s280
        %s282 = sand.u32 %s51, 1
        %s283 = smul.addr %s282, 12
        %s284 = scalar_lea.vmem [#allocation2], %s283
        %p285 = pneg %p64
        %p286 = pneg %p61
        %s287 = sand.u32 %s22, 1
        %s288 = scalar_lea.sflag [#allocation5], %s287
        %s289 = sand.u32 %s77, 1
        %s290 = scalar_lea.vmem [#allocation4], %s289
        %p291 = pneg %p90
        %p292 = pneg %p87
        %p293 = pneg %p111
        %p294 = pneg %p108
        %s295 = sand.u32 %s22, 1
        %s296 = scalar_lea.sflag [#allocation5], %s295
        %s297 = sand.u32 %s124, 1
        %s298 = smul.addr %s297, 92
        %s299 = scalar_lea.vmem [#allocation6], %s298
        %p300 = pneg %p137
        %p301 = pneg %p134
        %p302 = pneg %p163
        %p303 = pneg %p160
        %p304 = scmp.lt.s32.totalorder %s22, 2
        %s305 = scalar_select %p304, %s22, 2
        %s306 = smul.addr %s305, 2
        %s307 = scalar_lea.vmem %s5, %s306
        %p308 = scmp.lt.s32.totalorder %s22, 2
        %s309 = scalar_select %p308, %s22, 2
        %s310 = smul.addr %s309, 2
        %s311 = scalar_lea.vmem %s5, %s310
        %v313 = vld [vmem:[%s0] sm:$0x3]
        %v314 = vpack.c.bf16 %v313, %v313
        %v315 = vld [vmem:[%s256] sm:$0xf]
        %v316 = vld [vmem:[%s256 + $0x4] sm:$0xf]
        %v317 = vld [vmem:[%s256 + $0x8] sm:$0x3]
        %v318 = vld [vmem:[%s264] sm:$0x1]
        %v320 = vlaneseq
        %v321 = vshrl.u32 %v320, 7
        %v322 = vsub.s32 0, %v321
        %v323 = vrot.slane %v318, %v322
        %v328 = vunpack.c.l.b16 %v315
        %v329 = vunpack.c.l.b16 %v316
        %v330 = vunpack.c.l.b16 %v317
        %v331 = vpack.c.b16 %v329, %v328
        %v332 = vpack.c.b16 %v330, %v330
        %vm334 = vcmask 162816
        %v336 = vsel %vm334, %v314, 0
        %vm338 = vcmask 1041408
        %v340 = vsel %vm338, %v332, 0
        %342 = vmatprep.subr.bf16.mxu0 0
        %343 = vmatpush1.bf16.msra.mxu0 %v331
        %344 = vmatprep.subr.bf16.mxu0 0
        %345 = vmatpush1.bf16.msra.mxu0 %v340
        %346 = vmatprep.subr.bf16.mxu0 0
        %347 = vmatpush1.bf16.msra.mxu0 0
        %348 = vmatprep.subr.bf16.mxu0 0
        %349 = vmatpush1.bf16.msra.mxu0 0
        %350 = vmatprep.subr.bf16.mxu0 0
        %351 = vmatpush1.bf16.msra.mxu0 0
        %352 = vmatprep.subr.bf16.mxu0 0
        %353 = vmatpush1.bf16.msra.mxu0 0
        %354 = vmatprep.subr.bf16.mxu0 0
        %355 = vmatpush1.bf16.msra.mxu0 0
        %356 = vmatprep.subr.bf16.mxu0 0
        %357 = vmatpush1.bf16.msra.mxu0 0
        %358 = vmatprep.subr.bf16.mxu0 0
        %359 = vmatpush1.bf16.msra.mxu0 0
        %360 = vmatprep.subr.bf16.mxu0 0
        %361 = vmatpush1.bf16.msra.mxu0 0
        %362 = vmatprep.subr.bf16.mxu0 0
        %363 = vmatpush1.bf16.msra.mxu0 0
        %364 = vmatprep.subr.bf16.mxu0 0
        %365 = vmatpush1.bf16.msra.mxu0 0
        %366 = vmatprep.subr.bf16.mxu0 0
        %367 = vmatpush1.bf16.msra.mxu0 0
        %368 = vmatprep.subr.bf16.mxu0 0
        %369 = vmatpush1.bf16.msra.mxu0 0
        %370 = vmatprep.subr.bf16.mxu0 0
        %371 = vmatpush1.bf16.msra.mxu0 0
        %372 = vmatprep.subr.bf16.mxu0 0
        %373 = vmatpush1.bf16.msra.mxu0 0
        %374 = vmatprep.mubr.bf16.mxu0 0
        %375 = vmatmul.mubr.bf16.gmra.mrb[0].mxu0 %v336
        %v376 = vpop.f32.mrb[0].mxu0
        %v377 = vadd.f32 %v323, %v376
        %v378 = vpop.f32.mrb[0].mxu0
        %v379 = vpop.f32.mrb[0].mxu0
        %v380 = vpop.f32.mrb[0].mxu0
        %381 = vdwg.mxu0
        %v382 = vld [vmem:[%s3] sm:$0xf]
        %v385 = vunpack.c.l.s4 1983009808
        %v386 = vunpack.c.0.s8 %v385
        %v387 = vlaneseq
        %v388 = vshrl.u32 %v387, 7
        %v389 = vsub.s32 %v386, %v388
        %v390 = vrot.slane %v382, %v389
        %v391 = vcombine.high %v390, %v390
        %v394 = vpack.c.bf16 %v390, %v390
        %v395 = vpack.c.bf16 %v391, %v391
        %v396 = vld [vmem:[%s273] sm:$0xf]
        %v397 = vld [vmem:[%s273 + $0x4] sm:$0xf]
        %v398 = vld [vmem:[%s273 + $0x8] sm:$0xf]
        %v399 = vld [vmem:[%s273 + $0xc] sm:$0xf]
        %v400 = vld [vmem:[%s273 + $0x10] sm:$0xf]
        %v401 = vld [vmem:[%s273 + $0x14] sm:$0xf]
        %v402 = vld [vmem:[%s273 + $0x18] sm:$0xf]
        %v403 = vld [vmem:[%s273 + $0x1c] sm:$0xf]
        %v404 = vld [vmem:[%s273 + $0x20] sm:$0xf]
        %v405 = vld [vmem:[%s273 + $0x24] sm:$0xf]
        %v406 = vld [vmem:[%s273 + $0x28] sm:$0xf]
        %v407 = vld [vmem:[%s273 + $0x2c] sm:$0xf]
        %v408 = vld [vmem:[%s273 + $0x30] sm:$0xf]
        %v409 = vld [vmem:[%s273 + $0x34] sm:$0xf]
        %v410 = vld [vmem:[%s273 + $0x38] sm:$0xf]
        %v411 = vld [vmem:[%s273 + $0x3c] sm:$0xf]
        %v412 = vld [vmem:[%s273 + $0x40] sm:$0xf]
        %v413 = vld [vmem:[%s273 + $0x44] sm:$0xf]
        %v414 = vld [vmem:[%s273 + $0x48] sm:$0xf]
        %v415 = vld [vmem:[%s273 + $0x4c] sm:$0xf]
        %v416 = vld [vmem:[%s273 + $0x50] sm:$0xf]
        %v417 = vld [vmem:[%s273 + $0x54] sm:$0xf]
        %v418 = vld [vmem:[%s273 + $0x58] sm:$0x3]
        %v442 = vunpack.c.l.b16 %v396
        %v443 = vunpack.c.l.b16 %v397
        %v444 = vunpack.c.l.b16 %v398
        %v445 = vunpack.c.l.b16 %v399
        %v446 = vunpack.c.l.b16 %v400
        %v447 = vunpack.c.l.b16 %v401
        %v448 = vunpack.c.l.b16 %v402
        %v449 = vunpack.c.l.b16 %v403
        %v450 = vunpack.c.l.b16 %v404
        %v451 = vunpack.c.l.b16 %v405
        %v452 = vunpack.c.l.b16 %v406
        %v453 = vunpack.c.l.b16 %v407
        %v454 = vunpack.c.l.b16 %v408
        %v455 = vunpack.c.l.b16 %v409
        %v456 = vunpack.c.l.b16 %v410
        %v457 = vunpack.c.l.b16 %v411
        %v458 = vunpack.c.l.b16 %v412
        %v459 = vunpack.c.l.b16 %v413
        %v460 = vunpack.c.l.b16 %v414
        %v461 = vunpack.c.l.b16 %v415
        %v462 = vunpack.c.l.b16 %v416
        %v463 = vunpack.c.l.b16 %v417
        %v464 = vunpack.c.l.b16 %v418
        %v465 = vpack.c.b16 %v443, %v442
        %v466 = vpack.c.b16 %v445, %v444
        %v467 = vpack.c.b16 %v447, %v446
        %v468 = vpack.c.b16 %v449, %v448
        %v469 = vpack.c.b16 %v451, %v450
        %v470 = vpack.c.b16 %v453, %v452
        %v471 = vpack.c.b16 %v455, %v454
        %v472 = vpack.c.b16 %v457, %v456
        %v473 = vpack.c.b16 %v459, %v458
        %v474 = vpack.c.b16 %v461, %v460
        %v475 = vpack.c.b16 %v463, %v462
        %v476 = vpack.c.b16 %v464, %v464
        %vm488 = vcmask 424960
        %v490 = vsel %vm488, %v395, 0
        %v493 = vsel %vm338, %v476, 0
        %495 = vmatprep.subr.bf16.mxu0 0
        %496 = vmatpush1.bf16.msra.mxu0 %v465
        %497 = vmatprep.subr.bf16.mxu0 0
        %498 = vmatpush1.bf16.msra.mxu0 %v466
        %499 = vmatprep.subr.bf16.mxu0 0
        %500 = vmatpush1.bf16.msra.mxu0 %v467
        %501 = vmatprep.subr.bf16.mxu0 0
        %502 = vmatpush1.bf16.msra.mxu0 %v468
        %503 = vmatprep.subr.bf16.mxu0 0
        %504 = vmatpush1.bf16.msra.mxu0 %v469
        %505 = vmatprep.subr.bf16.mxu0 0
        %506 = vmatpush1.bf16.msra.mxu0 %v470
        %507 = vmatprep.subr.bf16.mxu0 0
        %508 = vmatpush1.bf16.msra.mxu0 %v471
        %509 = vmatprep.subr.bf16.mxu0 0
        %510 = vmatpush1.bf16.msra.mxu0 %v472
        %511 = vmatprep.subr.bf16.mxu0 0
        %512 = vmatpush1.bf16.msra.mxu0 %v473
        %513 = vmatprep.subr.bf16.mxu0 0
        %514 = vmatpush1.bf16.msra.mxu0 %v474
        %515 = vmatprep.subr.bf16.mxu0 0
        %516 = vmatpush1.bf16.msra.mxu0 %v475
        %517 = vmatprep.subr.bf16.mxu0 0
        %518 = vmatpush1.bf16.msra.mxu0 %v493
        %519 = vmatprep.subr.bf16.mxu0 0
        %520 = vmatpush1.bf16.msra.mxu0 0
        %521 = vmatprep.subr.bf16.mxu0 0
        %522 = vmatpush1.bf16.msra.mxu0 0
        %523 = vmatprep.subr.bf16.mxu0 0
        %524 = vmatpush1.bf16.msra.mxu0 0
        %525 = vmatprep.subr.bf16.mxu0 0
        %526 = vmatpush1.bf16.msra.mxu0 0
        %527 = vmatprep.mubr.bf16.mxu0 %v490
        %528 = vmatmul.mubr.bf16.gmra.mrb[0].mxu0 %v394
        %v529 = vpop.f32.mrb[0].mxu0
        %v530 = vadd.f32 0.0, %v529
        %v531 = vpop.f32.mrb[0].mxu0
        %v532 = vpop.f32.mrb[0].mxu0
        %v533 = vpop.f32.mrb[0].mxu0
        %534 = vdwg.mxu0
        %v535 = vadd.f32 %v377, %v530
        %536 = vst [vmem:[%s311] sm:$0x3] %v535
        %p537 = scmp.lt.s32.totalorder %s22, 2
        %s538 = scalar_select %p537, %s22, 2
        %s539 = smul.addr %s538, 2
        %s540 = scalar_lea.vmem %s5, %s539
        // Predicated region
        $region53: #{_lambda_.3} parent=39 // pred_check
          %p541 = pneg %p160
        $region54: #{_lambda_.3} parent=39 // pred_check_branch
          %543 = sbr.rel (%p541) target = $region56
        $region55: #{_lambda_.3} parent=39 // pred_region
          _
        $region56: #{_lambda_.3} parent=39 // pred_fallthru
          _
      $region40: #{_lambda_.3} parent=5 // pred_fallthru
        _
      %p544 = scmp.le.s32.totalorder 2, %s17
      // Predicated region
      $region57: #{_lambda_.3} parent=5 // pred_check
        %p545 = pneg %p544
      $region58: #{_lambda_.3} parent=5 // pred_check_branch
        %547 = sbr.rel (%p545) target = $region60
      $region59: #{_lambda_.3} parent=5 // pred_region
        %s548 = ssub.s32 %s17, 2
        // Predicated region
        $region61: #{_lambda_.3} parent=59 // pred_check
          %p549 = pneg %p166
        $region62: #{_lambda_.3} parent=59 // pred_check_branch
          %551 = sbr.rel (%p549) target = $region64
        $region63: #{_lambda_.3} parent=59 // pred_region
          %p552 = scmp.lt.s32.totalorder %s23, 2
          %s553 = scalar_select %p552, %s23, 2
          %s554 = smul.addr %s553, 2
          %s555 = scalar_lea.vmem %s5, %s554
        $region64: #{_lambda_.3} parent=59 // pred_fallthru
          _
      $region60: #{_lambda_.3} parent=5 // pred_fallthru
        _
    $region6: #{_lambda_.3} parent=1 // loop_footer
      %s21 = sadd.s32 1, %s17
    $region7: #{_lambda_.3} parent=1 // loop_footer_branch
      %16 = sbr.rel target = $region3
    $region8: #{_lambda_.3} parent=1 // loop_exit
      _
    %556 = vsyncpa [#allocation3], 1
    %s557 = scalar_lea.sflag [#allocation3], 1
    %558 = vsyncpa %s557, 1
    %559 = vsyncpa [#allocation5], 1
    %s560 = scalar_lea.sflag [#allocation5], 1
    %561 = vsyncpa %s560, 1

// kernel: _lambda_.4
$region0: #{_lambda_.4}
  #allocation0 [shape = 'u32[]', space=smem, size = 0x4, offset = 0x4, fixed_abs, tag = 'smem constant byte address 0x4 - core index']
  #allocation1 [shape = 'u32[144,128]{1,0:T(1,128)}', space=vmem, size = 0x12000, scoped, tag = 'internal scratch']
  %s0 = inlined_call_operand.vmem [shape: f32[2,12,25], index: 0, kind: input, shape index: {}]
  %s1 = inlined_call_operand.vmem [shape: bf16[25,128], index: 1, kind: input, shape index: {}]
  %s2 = inlined_call_operand.vmem [shape: f32[2,3,128], index: 2, kind: input, shape index: {}]
  %s3 = inlined_call_operand.vmem [shape: f32[2,3,128], index: 3, kind: output, shape index: {}]
  %s4 = sld [smem:[#allocation0]]
  $region45: #{_lambda_.4} parent=0
    _
  %s6 = ssub.s32 1, %s4
  %s7 = scalar_select 0, %s6, %s4
  loop: start=0, step=1, limit=4
  $region2: #{_lambda_.4} parent=0 // loop_pre_header
    _
  $region3: #{_lambda_.4} parent=0 // loop_header
    %s9 = sphi 0, %s13
    %p10 = scmp.ge.s32.totalorder %s9, 4
    %s19 = sphi 0, %s21
    %s22 = sphi 0, %s19
    %s23 = sphi 0, %s22
    %s39 = sphi 0, %s23
    %s43 = sphi 0, %s43
    %s45 = sphi 0, %s43
    %s46 = sphi 0, %s45
    %s60 = sphi 0, %s46
    %s66 = sphi 0, %s68
    %s69 = sphi 0, %s66
    %s70 = sphi 0, %s69
    %s86 = sphi 0, %s70
    %s92 = sphi 0, %s94
    %s95 = sphi 0, %s92
    %s96 = sphi 0, %s95
    %s112 = sphi 0, %s96
  $region4: #{_lambda_.4} parent=0 // loop_header_branch
    %12 = sbr.rel (%p10) target = $region8
  $region5: #{_lambda_.4} parent=0 // loop_body
    %s14 = ssub.s32 %s9, 1
    %s15 = ssub.s32 %s9, 2
    %s16 = sadd.s32 %s9, 1
    %s17 = ssub.s32 %s9, %s16
    %p18 = scmp.eq.s32.totalorder %s17, 0
    %s20 = sadd.s32 %s19, 1
    %s21 = scalar_select %p18, %s19, %s20
    %p24 = pneg %p18
    %p25 = scmp.eq.s32.totalorder %s9, 1
    %p26 = por %p24, %p25
    %p27 = scmp.ne.s32.totalorder %s19, %s22
    %p28 = scmp.eq.s32.totalorder %s9, 0
    %p29 = por %p27, %p28
    %p30 = scmp.ne.s32.totalorder %s19, %s22
    %p31 = scmp.eq.s32.totalorder %s14, 1
    %p32 = por %p30, %p31
    %p33 = scmp.ne.s32.totalorder %s22, %s23
    %p34 = scmp.eq.s32.totalorder %s14, 0
    %p35 = por %p33, %p34
    %p36 = scmp.ne.s32.totalorder %s22, %s23
    %p37 = scmp.eq.s32.totalorder %s15, 1
    %p38 = por %p36, %p37
    %p40 = scmp.ne.s32.totalorder %s23, %s39
    %p41 = scmp.eq.s32.totalorder %s15, 0
    %p42 = por %p40, %p41
    %s44 = sadd.s32 %s43, 1
    %p47 = scmp.eq.s32.totalorder %s9, 1
    %p48 = scmp.ne.s32.totalorder %s43, %s45
    %p49 = scmp.eq.s32.totalorder %s9, 0
    %p50 = por %p48, %p49
    %p51 = scmp.ne.s32.totalorder %s43, %s45
    %p52 = scmp.eq.s32.totalorder %s14, 1
    %p53 = por %p51, %p52
    %p54 = scmp.ne.s32.totalorder %s45, %s46
    %p55 = scmp.eq.s32.totalorder %s14, 0
    %p56 = por %p54, %p55
    %p57 = scmp.ne.s32.totalorder %s45, %s46
    %p58 = scmp.eq.s32.totalorder %s15, 1
    %p59 = por %p57, %p58
    %p61 = scmp.ne.s32.totalorder %s46, %s60
    %p62 = scmp.eq.s32.totalorder %s15, 0
    %p63 = por %p61, %p62
    %s64 = ssub.s32 %s9, %s16
    %p65 = scmp.eq.s32.totalorder %s64, 0
    %s67 = sadd.s32 %s66, 1
    %s68 = scalar_select %p65, %s66, %s67
    %p71 = pneg %p65
    %p72 = scmp.eq.s32.totalorder %s9, 1
    %p73 = por %p71, %p72
    %p74 = scmp.ne.s32.totalorder %s66, %s69
    %p75 = scmp.eq.s32.totalorder %s9, 0
    %p76 = por %p74, %p75
    %p77 = scmp.ne.s32.totalorder %s66, %s69
    %p78 = scmp.eq.s32.totalorder %s14, 1
    %p79 = por %p77, %p78
    %p80 = scmp.ne.s32.totalorder %s69, %s70
    %p81 = scmp.eq.s32.totalorder %s14, 0
    %p82 = por %p80, %p81
    %p83 = scmp.ne.s32.totalorder %s69, %s70
    %p84 = scmp.eq.s32.totalorder %s15, 1
    %p85 = por %p83, %p84
    %p87 = scmp.ne.s32.totalorder %s70, %s86
    %p88 = scmp.eq.s32.totalorder %s15, 0
    %p89 = por %p87, %p88
    %s90 = ssub.s32 %s9, %s16
    %p91 = scmp.eq.s32.totalorder %s90, 0
    %s93 = sadd.s32 %s92, 1
    %s94 = scalar_select %p91, %s92, %s93
    %p97 = pneg %p91
    %p98 = scmp.eq.s32.totalorder %s9, 1
    %p99 = por %p97, %p98
    %p100 = scmp.ne.s32.totalorder %s92, %s95
    %p101 = scmp.eq.s32.totalorder %s9, 0
    %p102 = por %p100, %p101
    %p103 = scmp.ne.s32.totalorder %s92, %s95
    %p104 = scmp.eq.s32.totalorder %s14, 1
    %p105 = por %p103, %p104
    %p106 = scmp.ne.s32.totalorder %s95, %s96
    %p107 = scmp.eq.s32.totalorder %s14, 0
    %p108 = por %p106, %p107
    %p109 = scmp.ne.s32.totalorder %s95, %s96
    %p110 = scmp.eq.s32.totalorder %s15, 1
    %p111 = por %p109, %p110
    %p113 = scmp.ne.s32.totalorder %s96, %s112
    %p114 = scmp.eq.s32.totalorder %s15, 0
    %p115 = por %p113, %p114
    %p116 = scmp.le.s32.totalorder 1, %s9
    %p117 = scmp.lt.s32.totalorder %s9, 3
    %p118 = pnand %p116, %p117
    %p119 = pneg %p118
    // Predicated region
    $region9: #{_lambda_.4} parent=5 // pred_check
      _
    $region10: #{_lambda_.4} parent=5 // pred_check_branch
      %121 = sbr.rel (%p118) target = $region12
    $region11: #{_lambda_.4} parent=5 // pred_region
      %s122 = ssub.s32 %s9, 1
      // Predicated region
      $region13: #{_lambda_.4} parent=11 // pred_check
        %p123 = pneg %p56
      $region14: #{_lambda_.4} parent=11 // pred_check_branch
        %125 = sbr.rel (%p123) target = $region16
      $region15: #{_lambda_.4} parent=11 // pred_region
        _
      $region16: #{_lambda_.4} parent=11 // pred_fallthru
        _
    $region12: #{_lambda_.4} parent=5 // pred_fallthru
      _
    %p126 = scmp.lt.s32.totalorder %s9, 2
    // Predicated region
    $region17: #{_lambda_.4} parent=5 // pred_check
      %p127 = pneg %p126
    $region18: #{_lambda_.4} parent=5 // pred_check_branch
      %129 = sbr.rel (%p127) target = $region20
    $region19: #{_lambda_.4} parent=5 // pred_region
      // Predicated region
      $region21: #{_lambda_.4} parent=19 // pred_check
        %p130 = pneg %p29
      $region22: #{_lambda_.4} parent=19 // pred_check_branch
        %132 = sbr.rel (%p130) target = $region24
      $region23: #{_lambda_.4} parent=19 // pred_region
        %p133 = scmp.lt.s32.totalorder %s9, 1
        %s134 = scalar_select %p133, %s9, 1
        %s135 = smul.addr %s134, 2
        %s136 = smul.addr %s135, 8
        %s137 = scalar_lea.vmem %s0, %s136
      $region24: #{_lambda_.4} parent=19 // pred_fallthru
        _
      // Predicated region
      $region25: #{_lambda_.4} parent=19 // pred_check
        %p138 = pneg %p76
      $region26: #{_lambda_.4} parent=19 // pred_check_branch
        %140 = sbr.rel (%p138) target = $region28
      $region27: #{_lambda_.4} parent=19 // pred_region
        %p141 = scmp.lt.s32.totalorder %s9, 1
        %s142 = scalar_select %p141, %s9, 1
        %s143 = smul.addr %s142, 4
        %s144 = scalar_lea.vmem %s2, %s143
      $region28: #{_lambda_.4} parent=19 // pred_fallthru
        _
    $region20: #{_lambda_.4} parent=5 // pred_fallthru
      _
    %p145 = scmp.le.s32.totalorder 1, %s9
    %p146 = scmp.lt.s32.totalorder %s9, 3
    %p147 = pnand %p145, %p146
    %p148 = pneg %p147
    // Predicated region
    $region29: #{_lambda_.4} parent=5 // pred_check
      _
    $region30: #{_lambda_.4} parent=5 // pred_check_branch
      %150 = sbr.rel (%p147) target = $region32
    $region31: #{_lambda_.4} parent=5 // pred_region
      %s151 = ssub.s32 %s9, 1
      %p152 = scmp.lt.s32.totalorder %s14, 1
      %s153 = scalar_select %p152, %s14, 1
      %s154 = smul.addr %s153, 2
      %s155 = smul.addr %s154, 8
      %s156 = scalar_lea.vmem %s0, %s155
      %p157 = pneg %p35
      %p158 = pneg %p32
      %p159 = pneg %p56
      %p160 = pneg %p53
      %p161 = scmp.lt.s32.totalorder %s14, 1
      %s162 = scalar_select %p161, %s14, 1
      %s163 = smul.addr %s162, 4
      %s164 = scalar_lea.vmem %s2, %s163
      %p165 = pneg %p82
      %p166 = pneg %p79
      %p167 = pneg %p108
      %p168 = pneg %p105
      %p169 = scmp.lt.s32.totalorder %s14, 1
      %s170 = scalar_select %p169, %s14, 1
      %s171 = smul.addr %s170, 4
      %s172 = scalar_lea.vmem %s3, %s171
      %p173 = scmp.lt.s32.totalorder %s14, 1
      %s174 = scalar_select %p173, %s14, 1
      %s175 = smul.addr %s174, 2
      %s176 = smul.addr %s175, 8
      %s177 = scalar_lea.vmem %s0, %s176
      %p178 = scmp.lt.s32.totalorder %s14, 1
      %s179 = scalar_select %p178, %s14, 1
      %s180 = smul.addr %s179, 4
      %s181 = scalar_lea.vmem %s2, %s180
      %p182 = scmp.lt.s32.totalorder %s14, 1
      %s183 = scalar_select %p182, %s14, 1
      %s184 = smul.addr %s183, 4
      %s185 = scalar_lea.vmem %s3, %s184
      %v186 = vld [vmem:[%s177] sm:$0xff]
      %v187 = vld [vmem:[%s177 + $0x8] sm:$0xf]
      %v188 = vld [vmem:[%s1] sm:$0xf]
      %v189 = vld [vmem:[%s1 + $0x4] sm:$0xf]
      %v190 = vld [vmem:[%s1 + $0x8] sm:$0xf]
      %v191 = vld [vmem:[%s1 + $0xc] sm:$0x1]
      %v192 = vunpack.c.l.bf16 %v188
      %v193 = vunpack.c.l.bf16 %v189
      %v194 = vunpack.c.l.bf16 %v190
      %v195 = vunpack.c.l.bf16 %v191
      %vm196 = vcmask 203776
      %v198 = vsel %vm196, %v186, 0
      %v201 = vsel %vm196, %v187, 0
      %vm203 = vcmask 1040384
      %v205 = vsel %vm203, %v195, 0
      %207 = vmatprep.subr.mxu0 0.0
      %208 = vmatpush1.msra.mxu0 %v192
      %209 = vmatprep.subr.mxu0 0.0
      %210 = vmatpush1.msra.mxu0 %v193
      %211 = vmatprep.subr.mxu0 0.0
      %212 = vmatpush1.msra.mxu0 %v194
      %213 = vmatprep.subr.mxu0 0.0
      %214 = vmatpush1.msra.mxu0 %v205
      %215 = vmatprep.subr.mxu0 0.0
      %216 = vmatpush1.msra.mxu0 0.0
      %217 = vmatprep.subr.mxu0 0.0
      %218 = vmatpush1.msra.mxu0 0.0
      %219 = vmatprep.subr.mxu0 0.0
      %220 = vmatpush1.msra.mxu0 0.0
      %221 = vmatprep.subr.mxu0 0.0
      %222 = vmatpush1.msra.mxu0 0.0
      %223 = vmatprep.subr.mxu0 0.0
      %224 = vmatpush1.msra.mxu0 0.0
      %225 = vmatprep.subr.mxu0 0.0
      %226 = vmatpush1.msra.mxu0 0.0
      %227 = vmatprep.subr.mxu0 0.0
      %228 = vmatpush1.msra.mxu0 0.0
      %229 = vmatprep.subr.mxu0 0.0
      %230 = vmatpush1.msra.mxu0 0.0
      %231 = vmatprep.subr.mxu0 0.0
      %232 = vmatpush1.msra.mxu0 0.0
      %233 = vmatprep.subr.mxu0 0.0
      %234 = vmatpush1.msra.mxu0 0.0
      %235 = vmatprep.subr.mxu0 0.0
      %236 = vmatpush1.msra.mxu0 0.0
      %237 = vmatprep.subr.mxu0 0.0
      %238 = vmatpush1.msra.mxu0 0.0
      %239 = vmatprep.subr.mxu0 0.0
      %240 = vmatpush1.msra.mxu0 0.0
      %241 = vmatprep.subr.mxu0 0.0
      %242 = vmatpush1.msra.mxu0 0.0
      %243 = vmatprep.subr.mxu0 0.0
      %244 = vmatpush1.msra.mxu0 0.0
      %245 = vmatprep.subr.mxu0 0.0
      %246 = vmatpush1.msra.mxu0 0.0
      %247 = vmatprep.subr.mxu0 0.0
      %248 = vmatpush1.msra.mxu0 0.0
      %249 = vmatprep.subr.mxu0 0.0
      %250 = vmatpush1.msra.mxu0 0.0
      %251 = vmatprep.subr.mxu0 0.0
      %252 = vmatpush1.msra.mxu0 0.0
      %253 = vmatprep.subr.mxu0 0.0
      %254 = vmatpush1.msra.mxu0 0.0
      %255 = vmatprep.subr.mxu0 0.0
      %256 = vmatpush1.msra.mxu0 0.0
      %257 = vmatprep.subr.mxu0 0.0
      %258 = vmatpush1.msra.mxu0 0.0
      %259 = vmatprep.subr.mxu0 0.0
      %260 = vmatpush1.msra.mxu0 0.0
      %261 = vmatprep.subr.mxu0 0.0
      %262 = vmatpush1.msra.mxu0 0.0
      %263 = vmatprep.subr.mxu0 0.0
      %264 = vmatpush1.msra.mxu0 0.0
      %265 = vmatprep.subr.mxu0 0.0
      %266 = vmatpush1.msra.mxu0 0.0
      %267 = vmatprep.subr.mxu0 0.0
      %268 = vmatpush1.msra.mxu0 0.0
      %269 = vmatprep.subr.mxu0 0.0
      %270 = vmatpush1.msra.mxu0 0.0
      %271 = vmatprep.mubr.f32.mxu0 0.0
      %272 = vmatmul.mubr.f32.gmra.mrb[0].mxu0 %v198
      %v273 = vpop.f32.mrb[0].mxu0
      %v274 = vadd.f32 0.0, %v273
      %v275 = vpop.f32.mrb[0].mxu0
      %276 = vmatprep.mubr.f32.mxu0 0.0
      %277 = vmatmul.mubr.f32.gmra.mrb[0].mxu0 %v201
      %v278 = vpop.f32.mrb[0].mxu0
      %v279 = vadd.f32 0.0, %v278
      %v280 = vpop.f32.mrb[0].mxu0
      %281 = vdwg.mxu0
      %v282 = vld [vmem:[%s181] sm:$0x7]
      %v283 = vlaneseq
      %v284 = vshrl.u32 %v283, 7
      %v285 = vsub.s32 0, %v284
      %v286 = vrot.slane %v282, %v285
      %v287 = vmul.f32 %v274, %v286
      %v288 = vlaneseq
      %v289 = vshrl.u32 %v288, 7
      %v290 = vsub.s32 1, %v289
      %v291 = vrot.slane %v282, %v290
      %v292 = vmul.f32 %v274, %v291
      %v294 = vrot.slane %v292, 3
      %v296 = vadd.f32 %v287, %v294
      %v297 = vlaneseq
      %v298 = vshrl.u32 %v297, 7
      %v299 = vsub.s32 2, %v298
      %v300 = vrot.slane %v282, %v299
      %v301 = vmul.f32 %v274, %v300
      %v302 = vmul.f32 %v279, %v300
      %vm305 = vcmask 1041408
      %v306 = vrot.slane %v301, 6
      %v307 = vrot.slane %v302, 6
      %v308 = vsel %vm305, %v306, %v307
      %v310 = vadd.f32 %v296, %v308
      %v312 = vrot.slane %v279, 1
      %v314 = vadd.f32 %v310, %v312
      %315 = vst [vmem:[%s185] sm:$0x7] %v314
      %p316 = scmp.lt.s32.totalorder %s14, 1
      %s317 = scalar_select %p316, %s14, 1
      %s318 = smul.addr %s317, 4
      %s319 = scalar_lea.vmem %s3, %s318
      // Predicated region
      $region33: #{_lambda_.4} parent=31 // pred_check
        %p320 = pneg %p105
      $region34: #{_lambda_.4} parent=31 // pred_check_branch
        %322 = sbr.rel (%p320) target = $region36
      $region35: #{_lambda_.4} parent=31 // pred_region
        _
      $region36: #{_lambda_.4} parent=31 // pred_fallthru
        _
    $region32: #{_lambda_.4} parent=5 // pred_fallthru
      _
    %p323 = scmp.le.s32.totalorder 2, %s9
    // Predicated region
    $region37: #{_lambda_.4} parent=5 // pred_check
      %p324 = pneg %p323
    $region38: #{_lambda_.4} parent=5 // pred_check_branch
      %326 = sbr.rel (%p324) target = $region40
    $region39: #{_lambda_.4} parent=5 // pred_region
      %s327 = ssub.s32 %s9, 2
      // Predicated region
      $region41: #{_lambda_.4} parent=39 // pred_check
        %p328 = pneg %p111
      $region42: #{_lambda_.4} parent=39 // pred_check_branch
        %330 = sbr.rel (%p328) target = $region44
      $region43: #{_lambda_.4} parent=39 // pred_region
        %p331 = scmp.lt.s32.totalorder %s15, 1
        %s332 = scalar_select %p331, %s15, 1
        %s333 = smul.addr %s332, 4
        %s334 = scalar_lea.vmem %s3, %s333
      $region44: #{_lambda_.4} parent=39 // pred_fallthru
        _
    $region40: #{_lambda_.4} parent=5 // pred_fallthru
      _
  $region6: #{_lambda_.4} parent=0 // loop_footer
    %s13 = sadd.s32 1, %s9
  $region7: #{_lambda_.4} parent=0 // loop_footer_branch
    %8 = sbr.rel target = $region3
  $region8: #{_lambda_.4} parent=0 // loop_exit
    _

// kernel: _lambda_.5
$region0: #{_lambda_.5}
  #allocation0 [shape = 'u32[]', space=smem, size = 0x4, offset = 0x4, fixed_abs, tag = 'smem constant byte address 0x4 - core index']
  #allocation1 [shape = 'u32[144,128]{1,0:T(1,128)}', space=vmem, size = 0x12000, scoped, tag = 'internal scratch']
  %s0 = inlined_call_operand.vmem [shape: f32[2,11], index: 0, kind: input, shape index: {}]
  %s1 = inlined_call_operand.vmem [shape: bf16[11,36864], index: 1, kind: input, shape index: {}]
  %s2 = inlined_call_operand.vmem [shape: bf16[2,36864], index: 2, kind: output, shape index: {}]
  %s3 = sld [smem:[#allocation0]]
  $region64: #{_lambda_.5} parent=0
    _
  %s5 = ssub.s32 1, %s3
  %s6 = scalar_select 0, %s5, %s3
  $region1: #{_lambda_.5} parent=0
    #allocation2 [shape = 'u8[589824]{0}', space=vmem, size = 0x90000, scoped, tag = 'input window, operand 1']
    loop: start=0, step=1, limit=6
    $region2: #{_lambda_.5} parent=1 // loop_pre_header
      _
    $region3: #{_lambda_.5} parent=1 // loop_header
      %s8 = sphi 0, %s12
      %p9 = scmp.ge.s32.totalorder %s8, 6
      %s16 = sphi 0, %s16
      %s18 = sphi 0, %s16
      %s19 = sphi 0, %s18
      %s33 = sphi 0, %s19
      %s39 = sphi 0, %s41
      %s42 = sphi 0, %s39
      %s43 = sphi 0, %s42
      %s59 = sphi 0, %s43
      %s65 = sphi 0, %s67
      %s68 = sphi 0, %s65
      %s69 = sphi 0, %s68
      %s85 = sphi 0, %s69
    $region4: #{_lambda_.5} parent=1 // loop_header_branch
      %11 = sbr.rel (%p9) target = $region8
    $region5: #{_lambda_.5} parent=1 // loop_body
      %s13 = ssub.s32 %s8, 1
      %s14 = ssub.s32 %s8, 2
      %s15 = sadd.s32 %s8, 1
      %s17 = sadd.s32 %s16, 1
      %p20 = scmp.eq.s32.totalorder %s8, 3
      %p21 = scmp.ne.s32.totalorder %s16, %s18
      %p22 = scmp.eq.s32.totalorder %s8, 0
      %p23 = por %p21, %p22
      %p24 = scmp.ne.s32.totalorder %s16, %s18
      %p25 = scmp.eq.s32.totalorder %s13, 3
      %p26 = por %p24, %p25
      %p27 = scmp.ne.s32.totalorder %s18, %s19
      %p28 = scmp.eq.s32.totalorder %s13, 0
      %p29 = por %p27, %p28
      %p30 = scmp.ne.s32.totalorder %s18, %s19
      %p31 = scmp.eq.s32.totalorder %s14, 3
      %p32 = por %p30, %p31
      %p34 = scmp.ne.s32.totalorder %s19, %s33
      %p35 = scmp.eq.s32.totalorder %s14, 0
      %p36 = por %p34, %p35
      %s37 = ssub.s32 %s8, %s15
      %p38 = scmp.eq.s32.totalorder %s37, 0
      %s40 = sadd.s32 %s39, 1
      %s41 = scalar_select %p38, %s39, %s40
      %p44 = pneg %p38
      %p45 = scmp.eq.s32.totalorder %s8, 3
      %p46 = por %p44, %p45
      %p47 = scmp.ne.s32.totalorder %s39, %s42
      %p48 = scmp.eq.s32.totalorder %s8, 0
      %p49 = por %p47, %p48
      %p50 = scmp.ne.s32.totalorder %s39, %s42
      %p51 = scmp.eq.s32.totalorder %s13, 3
      %p52 = por %p50, %p51
      %p53 = scmp.ne.s32.totalorder %s42, %s43
      %p54 = scmp.eq.s32.totalorder %s13, 0
      %p55 = por %p53, %p54
      %p56 = scmp.ne.s32.totalorder %s42, %s43
      %p57 = scmp.eq.s32.totalorder %s14, 3
      %p58 = por %p56, %p57
      %p60 = scmp.ne.s32.totalorder %s43, %s59
      %p61 = scmp.eq.s32.totalorder %s14, 0
      %p62 = por %p60, %p61
      %s63 = ssub.s32 %s8, %s15
      %p64 = scmp.eq.s32.totalorder %s63, 0
      %s66 = sadd.s32 %s65, 1
      %s67 = scalar_select %p64, %s65, %s66
      %p70 = pneg %p64
      %p71 = scmp.eq.s32.totalorder %s8, 3
      %p72 = por %p70, %p71
      %p73 = scmp.ne.s32.totalorder %s65, %s68
      %p74 = scmp.eq.s32.totalorder %s8, 0
      %p75 = por %p73, %p74
      %p76 = scmp.ne.s32.totalorder %s65, %s68
      %p77 = scmp.eq.s32.totalorder %s13, 3
      %p78 = por %p76, %p77
      %p79 = scmp.ne.s32.totalorder %s68, %s69
      %p80 = scmp.eq.s32.totalorder %s13, 0
      %p81 = por %p79, %p80
      %p82 = scmp.ne.s32.totalorder %s68, %s69
      %p83 = scmp.eq.s32.totalorder %s14, 3
      %p84 = por %p82, %p83
      %p86 = scmp.ne.s32.totalorder %s69, %s85
      %p87 = scmp.eq.s32.totalorder %s14, 0
      %p88 = por %p86, %p87
      %p89 = scmp.le.s32.totalorder 1, %s8
      %p90 = scmp.lt.s32.totalorder %s8, 5
      %p91 = pnand %p89, %p90
      %p92 = pneg %p91
      // Predicated region
      $region9: #{_lambda_.5} parent=5 // pred_check
        _
      $region10: #{_lambda_.5} parent=5 // pred_check_branch
        %94 = sbr.rel (%p91) target = $region12
      $region11: #{_lambda_.5} parent=5 // pred_region
        %s95 = ssub.s32 %s8, 1
        // Predicated region
        $region13: #{_lambda_.5} parent=11 // pred_check
          %p96 = pneg %p29
        $region14: #{_lambda_.5} parent=11 // pred_check_branch
          %98 = sbr.rel (%p96) target = $region16
        $region15: #{_lambda_.5} parent=11 // pred_region
          _
        $region16: #{_lambda_.5} parent=11 // pred_fallthru
          _
      $region12: #{_lambda_.5} parent=5 // pred_fallthru
        _
      %p99 = scmp.lt.s32.totalorder %s8, 4
      // Predicated region
      $region17: #{_lambda_.5} parent=5 // pred_check
        %p100 = pneg %p99
      $region18: #{_lambda_.5} parent=5 // pred_check_branch
        %102 = sbr.rel (%p100) target = $region20
      $region19: #{_lambda_.5} parent=5 // pred_region
        // Predicated region
        $region21: #{_lambda_.5} parent=19 // pred_check
          %p103 = pneg %p49
        $region22: #{_lambda_.5} parent=19 // pred_check_branch
          %105 = sbr.rel (%p103) target = $region24
        $region23: #{_lambda_.5} parent=19 // pred_region
          %s106 = sand.u32 %s39, 1
          %s107 = sand.u32 %s39, 1
          %s108 = smul.addr %s107, 576
          %s109 = scalar_lea.vmem [#allocation2], %s108
          %s110 = smul.u32 72, %s8
          %s111 = smul.addr %s110, 4
          %s112 = scalar_lea.vmem %s1, %s111
          // Predicated region
          $region25: #{_lambda_.5} parent=23 // pred_check
            _
          $region26: #{_lambda_.5} parent=23 // pred_check_branch
            %114 = sbr.rel (0) target = $region28
          $region27: #{_lambda_.5} parent=23 // pred_region
            // Predicated region
            $region29: #{_lambda_.5} parent=27 // pred_check
              _
            $region30: #{_lambda_.5} parent=27 // pred_check_branch
              %116 = sbr.rel (0) target = $region32
            $region31: #{_lambda_.5} parent=27 // pred_region
              loop: start=0, step=1, limit=1
              $region33: #{_lambda_.5} parent=31 // loop_pre_header
                _
              $region34: #{_lambda_.5} parent=31 // loop_header
                %s118 = sphi 0, %s122
                %p119 = scmp.ge.s32.totalorder %s118, 1
                %s123 = sphi %s112, %s112
                %s124 = sphi %s109, %s109
              $region35: #{_lambda_.5} parent=31 // loop_header_branch
                %121 = sbr.rel (%p119) target = $region39
              $region36: #{_lambda_.5} parent=31 // loop_body
                %v125 = vld [vmem:[%s123] sm:$0xff]
                %126 = vst [vmem:[%s124] sm:$0xff] %v125
                %v127 = vld [vmem:[%s123 + $0x8] sm:$0xff]
                %128 = vst [vmem:[%s124 + $0x8] sm:$0xff] %v127
                %v129 = vld [vmem:[%s123 + $0x10] sm:$0xff]
                %130 = vst [vmem:[%s124 + $0x10] sm:$0xff] %v129
                %v131 = vld [vmem:[%s123 + $0x18] sm:$0xff]
                %132 = vst [vmem:[%s124 + $0x18] sm:$0xff] %v131
                %v133 = vld [vmem:[%s123 + $0x20] sm:$0xff]
                %134 = vst [vmem:[%s124 + $0x20] sm:$0xff] %v133
                %v135 = vld [vmem:[%s123 + $0x28] sm:$0xff]
                %136 = vst [vmem:[%s124 + $0x28] sm:$0xff] %v135
                %v137 = vld [vmem:[%s123 + $0x30] sm:$0xff]
                %138 = vst [vmem:[%s124 + $0x30] sm:$0xff] %v137
                %v139 = vld [vmem:[%s123 + $0x38] sm:$0xff]
                %140 = vst [vmem:[%s124 + $0x38] sm:$0xff] %v139
                %v141 = vld [vmem:[%s123 + $0x40] sm:$0xff]
                %142 = vst [vmem:[%s124 + $0x40] sm:$0xff] %v141
                %v143 = vld [vmem:[%s123 + $0x48] sm:$0xff]
                %144 = vst [vmem:[%s124 + $0x48] sm:$0xff] %v143
                %v145 = vld [vmem:[%s123 + $0x50] sm:$0xff]
                %146 = vst [vmem:[%s124 + $0x50] sm:$0xff] %v145
                %v147 = vld [vmem:[%s123 + $0x58] sm:$0xff]
                %148 = vst [vmem:[%s124 + $0x58] sm:$0xff] %v147
                %v149 = vld [vmem:[%s123 + $0x60] sm:$0xff]
                %150 = vst [vmem:[%s124 + $0x60] sm:$0xff] %v149
                %v151 = vld [vmem:[%s123 + $0x68] sm:$0xff]
                %152 = vst [vmem:[%s124 + $0x68] sm:$0xff] %v151
                %v153 = vld [vmem:[%s123 + $0x70] sm:$0xff]
                %154 = vst [vmem:[%s124 + $0x70] sm:$0xff] %v153
                %v155 = vld [vmem:[%s123 + $0x78] sm:$0xff]
                %156 = vst [vmem:[%s124 + $0x78] sm:$0xff] %v155
                %v157 = vld [vmem:[%s123 + $0x80] sm:$0xff]
                %158 = vst [vmem:[%s124 + $0x80] sm:$0xff] %v157
                %v159 = vld [vmem:[%s123 + $0x88] sm:$0xff]
                %160 = vst [vmem:[%s124 + $0x88] sm:$0xff] %v159
                %v161 = vld [vmem:[%s123 + $0x90] sm:$0xff]
                %162 = vst [vmem:[%s124 + $0x90] sm:$0xff] %v161
                %v163 = vld [vmem:[%s123 + $0x98] sm:$0xff]
                %164 = vst [vmem:[%s124 + $0x98] sm:$0xff] %v163
                %v165 = vld [vmem:[%s123 + $0xa0] sm:$0xff]
                %166 = vst [vmem:[%s124 + $0xa0] sm:$0xff] %v165
                %v167 = vld [vmem:[%s123 + $0xa8] sm:$0xff]
                %168 = vst [vmem:[%s124 + $0xa8] sm:$0xff] %v167
                %v169 = vld [vmem:[%s123 + $0xb0] sm:$0xff]
                %170 = vst [vmem:[%s124 + $0xb0] sm:$0xff] %v169
                %v171 = vld [vmem:[%s123 + $0xb8] sm:$0xff]
                %172 = vst [vmem:[%s124 + $0xb8] sm:$0xff] %v171
                %v173 = vld [vmem:[%s123 + $0xc0] sm:$0xff]
                %174 = vst [vmem:[%s124 + $0xc0] sm:$0xff] %v173
                %v175 = vld [vmem:[%s123 + $0xc8] sm:$0xff]
                %176 = vst [vmem:[%s124 + $0xc8] sm:$0xff] %v175
                %v177 = vld [vmem:[%s123 + $0xd0] sm:$0xff]
                %178 = vst [vmem:[%s124 + $0xd0] sm:$0xff] %v177
                %v179 = vld [vmem:[%s123 + $0xd8] sm:$0xff]
                %180 = vst [vmem:[%s124 + $0xd8] sm:$0xff] %v179
                %v181 = vld [vmem:[%s123 + $0xe0] sm:$0xff]
                %182 = vst [vmem:[%s124 + $0xe0] sm:$0xff] %v181
                %v183 = vld [vmem:[%s123 + $0xe8] sm:$0xff]
                %184 = vst [vmem:[%s124 + $0xe8] sm:$0xff] %v183
                %v185 = vld [vmem:[%s123 + $0xf0] sm:$0xff]
                %186 = vst [vmem:[%s124 + $0xf0] sm:$0xff] %v185
                %v187 = vld [vmem:[%s123 + $0xf8] sm:$0xff]
                %188 = vst [vmem:[%s124 + $0xf8] sm:$0xff] %v187
                %v189 = vld [vmem:[%s123 + $0x100] sm:$0xff]
                %190 = vst [vmem:[%s124 + $0x100] sm:$0xff] %v189
                %v191 = vld [vmem:[%s123 + $0x108] sm:$0xff]
                %192 = vst [vmem:[%s124 + $0x108] sm:$0xff] %v191
                %v193 = vld [vmem:[%s123 + $0x110] sm:$0xff]
                %194 = vst [vmem:[%s124 + $0x110] sm:$0xff] %v193
                %v195 = vld [vmem:[%s123 + $0x118] sm:$0xff]
                %196 = vst [vmem:[%s124 + $0x118] sm:$0xff] %v195
                %v197 = vld [vmem:[%s123 + $0x480] sm:$0xff]
                %198 = vst [vmem:[%s124 + $0x120] sm:$0xff] %v197
                %v199 = vld [vmem:[%s123 + $0x488] sm:$0xff]
                %200 = vst [vmem:[%s124 + $0x128] sm:$0xff] %v199
                %v201 = vld [vmem:[%s123 + $0x490] sm:$0xff]
                %202 = vst [vmem:[%s124 + $0x130] sm:$0xff] %v201
                %v203 = vld [vmem:[%s123 + $0x498] sm:$0xff]
                %204 = vst [vmem:[%s124 + $0x138] sm:$0xff] %v203
                %v205 = vld [vmem:[%s123 + $0x4a0] sm:$0xff]
                %206 = vst [vmem:[%s124 + $0x140] sm:$0xff] %v205
                %v207 = vld [vmem:[%s123 + $0x4a8] sm:$0xff]
                %208 = vst [vmem:[%s124 + $0x148] sm:$0xff] %v207
                %v209 = vld [vmem:[%s123 + $0x4b0] sm:$0xff]
                %210 = vst [vmem:[%s124 + $0x150] sm:$0xff] %v209
                %v211 = vld [vmem:[%s123 + $0x4b8] sm:$0xff]
                %212 = vst [vmem:[%s124 + $0x158] sm:$0xff] %v211
                %v213 = vld [vmem:[%s123 + $0x4c0] sm:$0xff]
                %214 = vst [vmem:[%s124 + $0x160] sm:$0xff] %v213
                %v215 = vld [vmem:[%s123 + $0x4c8] sm:$0xff]
                %216 = vst [vmem:[%s124 + $0x168] sm:$0xff] %v215
                %v217 = vld [vmem:[%s123 + $0x4d0] sm:$0xff]
                %218 = vst [vmem:[%s124 + $0x170] sm:$0xff] %v217
                %v219 = vld [vmem:[%s123 + $0x4d8] sm:$0xff]
                %220 = vst [vmem:[%s124 + $0x178] sm:$0xff] %v219
                %v221 = vld [vmem:[%s123 + $0x4e0] sm:$0xff]
                %222 = vst [vmem:[%s124 + $0x180] sm:$0xff] %v221
                %v223 = vld [vmem:[%s123 + $0x4e8] sm:$0xff]
                %224 = vst [vmem:[%s124 + $0x188] sm:$0xff] %v223
                %v225 = vld [vmem:[%s123 + $0x4f0] sm:$0xff]
                %226 = vst [vmem:[%s124 + $0x190] sm:$0xff] %v225
                %v227 = vld [vmem:[%s123 + $0x4f8] sm:$0xff]
                %228 = vst [vmem:[%s124 + $0x198] sm:$0xff] %v227
                %v229 = vld [vmem:[%s123 + $0x500] sm:$0xff]
                %230 = vst [vmem:[%s124 + $0x1a0] sm:$0xff] %v229
                %v231 = vld [vmem:[%s123 + $0x508] sm:$0xff]
                %232 = vst [vmem:[%s124 + $0x1a8] sm:$0xff] %v231
                %v233 = vld [vmem:[%s123 + $0x510] sm:$0xff]
                %234 = vst [vmem:[%s124 + $0x1b0] sm:$0xff] %v233
                %v235 = vld [vmem:[%s123 + $0x518] sm:$0xff]
                %236 = vst [vmem:[%s124 + $0x1b8] sm:$0xff] %v235
                %v237 = vld [vmem:[%s123 + $0x520] sm:$0xff]
                %238 = vst [vmem:[%s124 + $0x1c0] sm:$0xff] %v237
                %v239 = vld [vmem:[%s123 + $0x528] sm:$0xff]
                %240 = vst [vmem:[%s124 + $0x1c8] sm:$0xff] %v239
                %v241 = vld [vmem:[%s123 + $0x530] sm:$0xff]
                %242 = vst [vmem:[%s124 + $0x1d0] sm:$0xff] %v241
                %v243 = vld [vmem:[%s123 + $0x538] sm:$0xff]
                %244 = vst [vmem:[%s124 + $0x1d8] sm:$0xff] %v243
                %v245 = vld [vmem:[%s123 + $0x540] sm:$0xff]
                %246 = vst [vmem:[%s124 + $0x1e0] sm:$0xff] %v245
                %v247 = vld [vmem:[%s123 + $0x548] sm:$0xff]
                %248 = vst [vmem:[%s124 + $0x1e8] sm:$0xff] %v247
                %v249 = vld [vmem:[%s123 + $0x550] sm:$0xff]
                %250 = vst [vmem:[%s124 + $0x1f0] sm:$0xff] %v249
                %v251 = vld [vmem:[%s123 + $0x558] sm:$0xff]
                %252 = vst [vmem:[%s124 + $0x1f8] sm:$0xff] %v251
                %v253 = vld [vmem:[%s123 + $0x560] sm:$0xff]
                %254 = vst [vmem:[%s124 + $0x200] sm:$0xff] %v253
                %v255 = vld [vmem:[%s123 + $0x568] sm:$0xff]
                %256 = vst [vmem:[%s124 + $0x208] sm:$0xff] %v255
                %v257 = vld [vmem:[%s123 + $0x570] sm:$0xff]
                %258 = vst [vmem:[%s124 + $0x210] sm:$0xff] %v257
                %v259 = vld [vmem:[%s123 + $0x578] sm:$0xff]
                %260 = vst [vmem:[%s124 + $0x218] sm:$0xff] %v259
                %v261 = vld [vmem:[%s123 + $0x580] sm:$0xff]
                %262 = vst [vmem:[%s124 + $0x220] sm:$0xff] %v261
                %v263 = vld [vmem:[%s123 + $0x588] sm:$0xff]
                %264 = vst [vmem:[%s124 + $0x228] sm:$0xff] %v263
                %v265 = vld [vmem:[%s123 + $0x590] sm:$0xff]
                %266 = vst [vmem:[%s124 + $0x230] sm:$0xff] %v265
                %v267 = vld [vmem:[%s123 + $0x598] sm:$0xff]
                %268 = vst [vmem:[%s124 + $0x238] sm:$0xff] %v267
              $region37: #{_lambda_.5} parent=31 // loop_footer
                %s122 = sadd.s32 1, %s118
              $region38: #{_lambda_.5} parent=31 // loop_footer_branch
                %117 = sbr.rel target = $region34
              $region39: #{_lambda_.5} parent=31 // loop_exit
                _
            $region32: #{_lambda_.5} parent=27 // pred_fallthru
              _
            // Predicated region
            $region40: #{_lambda_.5} parent=27 // pred_check
              _
            $region41: #{_lambda_.5} parent=27 // pred_check_branch
              %270 = sbr.rel target = $region43
            $region42: #{_lambda_.5} parent=27 // pred_region
              _
            $region43: #{_lambda_.5} parent=27 // pred_fallthru
              _
          $region28: #{_lambda_.5} parent=23 // pred_fallthru
            _
          %271 = vnop
        $region24: #{_lambda_.5} parent=19 // pred_fallthru
          _
      $region20: #{_lambda_.5} parent=5 // pred_fallthru
        _
      %p272 = scmp.le.s32.totalorder 1, %s8
      %p273 = scmp.lt.s32.totalorder %s8, 5
      %p274 = pnand %p272, %p273
      %p275 = pneg %p274
      // Predicated region
      $region44: #{_lambda_.5} parent=5 // pred_check
        _
      $region45: #{_lambda_.5} parent=5 // pred_check_branch
        %277 = sbr.rel (%p274) target = $region47
      $region46: #{_lambda_.5} parent=5 // pred_region
        %s278 = ssub.s32 %s8, 1
        %s279 = sand.u32 %s42, 1
        %s280 = sand.u32 %s42, 1
        %s281 = smul.addr %s280, 576
        %s282 = scalar_lea.vmem [#allocation2], %s281
        // Predicated region
        $region48: #{_lambda_.5} parent=46 // pred_check
          %p283 = pneg %p55
        $region49: #{_lambda_.5} parent=46 // pred_check_branch
          %285 = sbr.rel (%p283) target = $region51
        $region50: #{_lambda_.5} parent=46 // pred_region
          _
        $region51: #{_lambda_.5} parent=46 // pred_fallthru
          _
        %p286 = pneg %p29
        %p287 = pneg %p26
        %s288 = sand.u32 %s42, 1
        %s289 = sand.u32 %s42, 1
        %s290 = smul.addr %s289, 576
        %s291 = scalar_lea.vmem [#allocation2], %s290
        %p292 = pneg %p55
        %p293 = pneg %p52
        %p294 = pneg %p81
        %p295 = pneg %p78
        %s296 = smul.u32 72, %s13
        %p297 = scmp.lt.s32.totalorder %s296, 287
        %s298 = scalar_select %p297, %s296, 287
        %s299 = scalar_lea.vmem %s2, %s298
        %s300 = smul.u32 72, %s13
        %s301 = smul.u32 72, %s13
        %p302 = scmp.lt.s32.totalorder %s301, 287
        %s303 = scalar_select %p302, %s301, 287
        %s304 = scalar_lea.vmem %s2, %s303
        %s305 = smul.u32 72, %s13
        %v307 = vld [vmem:[%s0] sm:$0x3]
        %v308 = vpack.c.bf16 %v307, %v307
        %v309 = vld [vmem:[%s282] sm:$0xff]
        %v310 = vld [vmem:[%s282 + $0x8] sm:$0xff]
        %v311 = vld [vmem:[%s282 + $0x10] sm:$0xff]
        %v312 = vld [vmem:[%s282 + $0x18] sm:$0xff]
        %v313 = vld [vmem:[%s282 + $0x20] sm:$0xff]
        %v314 = vld [vmem:[%s282 + $0x28] sm:$0xff]
        %v315 = vld [vmem:[%s282 + $0x30] sm:$0xff]
        %v316 = vld [vmem:[%s282 + $0x38] sm:$0xff]
        %v317 = vld [vmem:[%s282 + $0x40] sm:$0xff]
        %v318 = vld [vmem:[%s282 + $0x48] sm:$0xff]
        %v319 = vld [vmem:[%s282 + $0x50] sm:$0xff]
        %v320 = vld [vmem:[%s282 + $0x58] sm:$0xff]
        %v321 = vld [vmem:[%s282 + $0x60] sm:$0xff]
        %v322 = vld [vmem:[%s282 + $0x68] sm:$0xff]
        %v323 = vld [vmem:[%s282 + $0x70] sm:$0xff]
        %v324 = vld [vmem:[%s282 + $0x78] sm:$0xff]
        %v325 = vld [vmem:[%s282 + $0x80] sm:$0xff]
        %v326 = vld [vmem:[%s282 + $0x88] sm:$0xff]
        %v327 = vld [vmem:[%s282 + $0x90] sm:$0xff]
        %v328 = vld [vmem:[%s282 + $0x98] sm:$0xff]
        %v329 = vld [vmem:[%s282 + $0xa0] sm:$0xff]
        %v330 = vld [vmem:[%s282 + $0xa8] sm:$0xff]
        %v331 = vld [vmem:[%s282 + $0xb0] sm:$0xff]
        %v332 = vld [vmem:[%s282 + $0xb8] sm:$0xff]
        %v333 = vld [vmem:[%s282 + $0xc0] sm:$0xff]
        %v334 = vld [vmem:[%s282 + $0xc8] sm:$0xff]
        %v335 = vld [vmem:[%s282 + $0xd0] sm:$0xff]
        %v336 = vld [vmem:[%s282 + $0xd8] sm:$0xff]
        %v337 = vld [vmem:[%s282 + $0xe0] sm:$0xff]
        %v338 = vld [vmem:[%s282 + $0xe8] sm:$0xff]
        %v339 = vld [vmem:[%s282 + $0xf0] sm:$0xff]
        %v340 = vld [vmem:[%s282 + $0xf8] sm:$0xff]
        %v341 = vld [vmem:[%s282 + $0x100] sm:$0xff]
        %v342 = vld [vmem:[%s282 + $0x108] sm:$0xff]
        %v343 = vld [vmem:[%s282 + $0x110] sm:$0xff]
        %v344 = vld [vmem:[%s282 + $0x118] sm:$0xff]
        %v345 = vld [vmem:[%s282 + $0x120] sm:$0x33]
        %v346 = vld [vmem:[%s282 + $0x128] sm:$0x33]
        %v347 = vld [vmem:[%s282 + $0x130] sm:$0x33]
        %v348 = vld [vmem:[%s282 + $0x138] sm:$0x33]
        %v349 = vld [vmem:[%s282 + $0x140] sm:$0x33]
        %v350 = vld [vmem:[%s282 + $0x148] sm:$0x33]
        %v351 = vld [vmem:[%s282 + $0x150] sm:$0x33]
        %v352 = vld [vmem:[%s282 + $0x158] sm:$0x33]
        %v353 = vld [vmem:[%s282 + $0x160] sm:$0x33]
        %v354 = vld [vmem:[%s282 + $0x168] sm:$0x33]
        %v355 = vld [vmem:[%s282 + $0x170] sm:$0x33]
        %v356 = vld [vmem:[%s282 + $0x178] sm:$0x33]
        %v357 = vld [vmem:[%s282 + $0x180] sm:$0x33]
        %v358 = vld [vmem:[%s282 + $0x188] sm:$0x33]
        %v359 = vld [vmem:[%s282 + $0x190] sm:$0x33]
        %v360 = vld [vmem:[%s282 + $0x198] sm:$0x33]
        %v361 = vld [vmem:[%s282 + $0x1a0] sm:$0x33]
        %v362 = vld [vmem:[%s282 + $0x1a8] sm:$0x33]
        %v363 = vld [vmem:[%s282 + $0x1b0] sm:$0x33]
        %v364 = vld [vmem:[%s282 + $0x1b8] sm:$0x33]
        %v365 = vld [vmem:[%s282 + $0x1c0] sm:$0x33]
        %v366 = vld [vmem:[%s282 + $0x1c8] sm:$0x33]
        %v367 = vld [vmem:[%s282 + $0x1d0] sm:$0x33]
        %v368 = vld [vmem:[%s282 + $0x1d8] sm:$0x33]
        %v369 = vld [vmem:[%s282 + $0x1e0] sm:$0x33]
        %v370 = vld [vmem:[%s282 + $0x1e8] sm:$0x33]
        %v371 = vld [vmem:[%s282 + $0x1f0] sm:$0x33]
        %v372 = vld [vmem:[%s282 + $0x1f8] sm:$0x33]
        %v373 = vld [vmem:[%s282 + $0x200] sm:$0x33]
        %v374 = vld [vmem:[%s282 + $0x208] sm:$0x33]
        %v375 = vld [vmem:[%s282 + $0x210] sm:$0x33]
        %v376 = vld [vmem:[%s282 + $0x218] sm:$0x33]
        %v377 = vld [vmem:[%s282 + $0x220] sm:$0x33]
        %v378 = vld [vmem:[%s282 + $0x228] sm:$0x33]
        %v379 = vld [vmem:[%s282 + $0x230] sm:$0x33]
        %v380 = vld [vmem:[%s282 + $0x238] sm:$0x33]
        %v453 = vunpack.c.l.b16 %v309
        %v454 = vunpack.c.h.b16 %v309
        %v455 = vunpack.c.l.b16 %v310
        %v456 = vunpack.c.h.b16 %v310
        %v457 = vunpack.c.l.b16 %v311
        %v458 = vunpack.c.h.b16 %v311
        %v459 = vunpack.c.l.b16 %v312
        %v460 = vunpack.c.h.b16 %v312
        %v461 = vunpack.c.l.b16 %v313
        %v462 = vunpack.c.h.b16 %v313
        %v463 = vunpack.c.l.b16 %v314
        %v464 = vunpack.c.h.b16 %v314
        %v465 = vunpack.c.l.b16 %v315
        %v466 = vunpack.c.h.b16 %v315
        %v467 = vunpack.c.l.b16 %v316
        %v468 = vunpack.c.h.b16 %v316
        %v469 = vunpack.c.l.b16 %v317
        %v470 = vunpack.c.h.b16 %v317
        %v471 = vunpack.c.l.b16 %v318
        %v472 = vunpack.c.h.b16 %v318
        %v473 = vunpack.c.l.b16 %v319
        %v474 = vunpack.c.h.b16 %v319
        %v475 = vunpack.c.l.b16 %v320
        %v476 = vunpack.c.h.b16 %v320
        %v477 = vunpack.c.l.b16 %v321
        %v478 = vunpack.c.h.b16 %v321
        %v479 = vunpack.c.l.b16 %v322
        %v480 = vunpack.c.h.b16 %v322
        %v481 = vunpack.c.l.b16 %v323
        %v482 = vunpack.c.h.b16 %v323
        %v483 = vunpack.c.l.b16 %v324
        %v484 = vunpack.c.h.b16 %v324
        %v485 = vunpack.c.l.b16 %v325
        %v486 = vunpack.c.h.b16 %v325
        %v487 = vunpack.c.l.b16 %v326
        %v488 = vunpack.c.h.b16 %v326
        %v489 = vunpack.c.l.b16 %v327
        %v490 = vunpack.c.h.b16 %v327
        %v491 = vunpack.c.l.b16 %v328
        %v492 = vunpack.c.h.b16 %v328
        %v493 = vunpack.c.l.b16 %v329
        %v494 = vunpack.c.h.b16 %v329
        %v495 = vunpack.c.l.b16 %v330
        %v496 = vunpack.c.h.b16 %v330
        %v497 = vunpack.c.l.b16 %v331
        %v498 = vunpack.c.h.b16 %v331
        %v499 = vunpack.c.l.b16 %v332
        %v500 = vunpack.c.h.b16 %v332
        %v501 = vunpack.c.l.b16 %v333
        %v502 = vunpack.c.h.b16 %v333
        %v503 = vunpack.c.l.b16 %v334
        %v504 = vunpack.c.h.b16 %v334
        %v505 = vunpack.c.l.b16 %v335
        %v506 = vunpack.c.h.b16 %v335
        %v507 = vunpack.c.l.b16 %v336
        %v508 = vunpack.c.h.b16 %v336
        %v509 = vunpack.c.l.b16 %v337
        %v510 = vunpack.c.h.b16 %v337
        %v511 = vunpack.c.l.b16 %v338
        %v512 = vunpack.c.h.b16 %v338
        %v513 = vunpack.c.l.b16 %v339
        %v514 = vunpack.c.h.b16 %v339
        %v515 = vunpack.c.l.b16 %v340
        %v516 = vunpack.c.h.b16 %v340
        %v517 = vunpack.c.l.b16 %v341
        %v518 = vunpack.c.h.b16 %v341
        %v519 = vunpack.c.l.b16 %v342
        %v520 = vunpack.c.h.b16 %v342
        %v521 = vunpack.c.l.b16 %v343
        %v522 = vunpack.c.h.b16 %v343
        %v523 = vunpack.c.l.b16 %v344
        %v524 = vunpack.c.h.b16 %v344
        %v525 = vunpack.c.l.b16 %v345
        %v526 = vunpack.c.h.b16 %v345
        %v527 = vunpack.c.l.b16 %v346
        %v528 = vunpack.c.h.b16 %v346
        %v529 = vunpack.c.l.b16 %v347
        %v530 = vunpack.c.h.b16 %v347
        %v531 = vunpack.c.l.b16 %v348
        %v532 = vunpack.c.h.b16 %v348
        %v533 = vunpack.c.l.b16 %v349
        %v534 = vunpack.c.h.b16 %v349
        %v535 = vunpack.c.l.b16 %v350
        %v536 = vunpack.c.h.b16 %v350
        %v537 = vunpack.c.l.b16 %v351
        %v538 = vunpack.c.h.b16 %v351
        %v539 = vunpack.c.l.b16 %v352
        %v540 = vunpack.c.h.b16 %v352
        %v541 = vunpack.c.l.b16 %v353
        %v542 = vunpack.c.h.b16 %v353
        %v543 = vunpack.c.l.b16 %v354
        %v544 = vunpack.c.h.b16 %v354
        %v545 = vunpack.c.l.b16 %v355
        %v546 = vunpack.c.h.b16 %v355
        %v547 = vunpack.c.l.b16 %v356
        %v548 = vunpack.c.h.b16 %v356
        %v549 = vunpack.c.l.b16 %v357
        %v550 = vunpack.c.h.b16 %v357
        %v551 = vunpack.c.l.b16 %v358
        %v552 = vunpack.c.h.b16 %v358
        %v553 = vunpack.c.l.b16 %v359
        %v554 = vunpack.c.h.b16 %v359
        %v555 = vunpack.c.l.b16 %v360
        %v556 = vunpack.c.h.b16 %v360
        %v557 = vunpack.c.l.b16 %v361
        %v558 = vunpack.c.h.b16 %v361
        %v559 = vunpack.c.l.b16 %v362
        %v560 = vunpack.c.h.b16 %v362
        %v561 = vunpack.c.l.b16 %v363
        %v562 = vunpack.c.h.b16 %v363
        %v563 = vunpack.c.l.b16 %v364
        %v564 = vunpack.c.h.b16 %v364
        %v565 = vunpack.c.l.b16 %v365
        %v566 = vunpack.c.h.b16 %v365
        %v567 = vunpack.c.l.b16 %v366
        %v568 = vunpack.c.h.b16 %v366
        %v569 = vunpack.c.l.b16 %v367
        %v570 = vunpack.c.h.b16 %v367
        %v571 = vunpack.c.l.b16 %v368
        %v572 = vunpack.c.h.b16 %v368
        %v573 = vunpack.c.l.b16 %v369
        %v574 = vunpack.c.h.b16 %v369
        %v575 = vunpack.c.l.b16 %v370
        %v576 = vunpack.c.h.b16 %v370
        %v577 = vunpack.c.l.b16 %v371
        %v578 = vunpack.c.h.b16 %v371
        %v579 = vunpack.c.l.b16 %v372
        %v580 = vunpack.c.h.b16 %v372
        %v581 = vunpack.c.l.b16 %v373
        %v582 = vunpack.c.h.b16 %v373
        %v583 = vunpack.c.l.b16 %v374
        %v584 = vunpack.c.h.b16 %v374
        %v585 = vunpack.c.l.b16 %v375
        %v586 = vunpack.c.h.b16 %v375
        %v587 = vunpack.c.l.b16 %v376
        %v588 = vunpack.c.h.b16 %v376
        %v589 = vunpack.c.l.b16 %v377
        %v590 = vunpack.c.h.b16 %v377
        %v591 = vunpack.c.l.b16 %v378
        %v592 = vunpack.c.h.b16 %v378
        %v593 = vunpack.c.l.b16 %v379
        %v594 = vunpack.c.h.b16 %v379
        %v595 = vunpack.c.l.b16 %v380
        %v596 = vunpack.c.h.b16 %v380
        %v597 = vpack.c.b16 %v525, %v453
        %v598 = vpack.c.b16 %v526, %v454
        %v599 = vpack.c.b16 %v527, %v455
        %v600 = vpack.c.b16 %v528, %v456
        %v601 = vpack.c.b16 %v529, %v457
        %v602 = vpack.c.b16 %v530, %v458
        %v603 = vpack.c.b16 %v531, %v459
        %v604 = vpack.c.b16 %v532, %v460
        %v605 = vpack.c.b16 %v533, %v461
        %v606 = vpack.c.b16 %v534, %v462
        %v607 = vpack.c.b16 %v535, %v463
        %v608 = vpack.c.b16 %v536, %v464
        %v609 = vpack.c.b16 %v537, %v465
        %v610 = vpack.c.b16 %v538, %v466
        %v611 = vpack.c.b16 %v539, %v467
        %v612 = vpack.c.b16 %v540, %v468
        %v613 = vpack.c.b16 %v541, %v469
        %v614 = vpack.c.b16 %v542, %v470
        %v615 = vpack.c.b16 %v543, %v471
        %v616 = vpack.c.b16 %v544, %v472
        %v617 = vpack.c.b16 %v545, %v473
        %v618 = vpack.c.b16 %v546, %v474
        %v619 = vpack.c.b16 %v547, %v475
        %v620 = vpack.c.b16 %v548, %v476
        %v621 = vpack.c.b16 %v549, %v477
        %v622 = vpack.c.b16 %v550, %v478
        %v623 = vpack.c.b16 %v551, %v479
        %v624 = vpack.c.b16 %v552, %v480
        %v625 = vpack.c.b16 %v553, %v481
        %v626 = vpack.c.b16 %v554, %v482
        %v627 = vpack.c.b16 %v555, %v483
        %v628 = vpack.c.b16 %v556, %v484
        %v629 = vpack.c.b16 %v557, %v485
        %v630 = vpack.c.b16 %v558, %v486
        %v631 = vpack.c.b16 %v559, %v487
        %v632 = vpack.c.b16 %v560, %v488
        %v633 = vpack.c.b16 %v561, %v489
        %v634 = vpack.c.b16 %v562, %v490
        %v635 = vpack.c.b16 %v563, %v491
        %v636 = vpack.c.b16 %v564, %v492
        %v637 = vpack.c.b16 %v565, %v493
        %v638 = vpack.c.b16 %v566, %v494
        %v639 = vpack.c.b16 %v567, %v495
        %v640 = vpack.c.b16 %v568, %v496
        %v641 = vpack.c.b16 %v569, %v497
        %v642 = vpack.c.b16 %v570, %v498
        %v643 = vpack.c.b16 %v571, %v499
        %v644 = vpack.c.b16 %v572, %v500
        %v645 = vpack.c.b16 %v573, %v501
        %v646 = vpack.c.b16 %v574, %v502
        %v647 = vpack.c.b16 %v575, %v503
        %v648 = vpack.c.b16 %v576, %v504
        %v649 = vpack.c.b16 %v577, %v505
        %v650 = vpack.c.b16 %v578, %v506
        %v651 = vpack.c.b16 %v579, %v507
        %v652 = vpack.c.b16 %v580, %v508
        %v653 = vpack.c.b16 %v581, %v509
        %v654 = vpack.c.b16 %v582, %v510
        %v655 = vpack.c.b16 %v583, %v511
        %v656 = vpack.c.b16 %v584, %v512
        %v657 = vpack.c.b16 %v585, %v513
        %v658 = vpack.c.b16 %v586, %v514
        %v659 = vpack.c.b16 %v587, %v515
        %v660 = vpack.c.b16 %v588, %v516
        %v661 = vpack.c.b16 %v589, %v517
        %v662 = vpack.c.b16 %v590, %v518
        %v663 = vpack.c.b16 %v591, %v519
        %v664 = vpack.c.b16 %v592, %v520
        %v665 = vpack.c.b16 %v593, %v521
        %v666 = vpack.c.b16 %v594, %v522
        %v667 = vpack.c.b16 %v595, %v523
        %v668 = vpack.c.b16 %v596, %v524
        %vm669 = vcmask 89088
        %v671 = vsel %vm669, %v308, 0
        %vm673 = vcmask 1044480
        %vm674 = vcmask 1045504
        %v675 = vsel %vm673, 4294967295, 65535
        %v676 = vsel %vm674, %v675, 0
        %v678 = vand.u32 %v597, %v676
        %v681 = vand.u32 %v598, %v676
        %v684 = vand.u32 %v599, %v676
        %v687 = vand.u32 %v600, %v676
        %v690 = vand.u32 %v601, %v676
        %v693 = vand.u32 %v602, %v676
        %v696 = vand.u32 %v603, %v676
        %v699 = vand.u32 %v604, %v676
        %v702 = vand.u32 %v605, %v676
        %v705 = vand.u32 %v606, %v676
        %v708 = vand.u32 %v607, %v676
        %v711 = vand.u32 %v608, %v676
        %v714 = vand.u32 %v609, %v676
        %v717 = vand.u32 %v610, %v676
        %v720 = vand.u32 %v611, %v676
        %v723 = vand.u32 %v612, %v676
        %v726 = vand.u32 %v613, %v676
        %v729 = vand.u32 %v614, %v676
        %v732 = vand.u32 %v615, %v676
        %v735 = vand.u32 %v616, %v676
        %v738 = vand.u32 %v617, %v676
        %v741 = vand.u32 %v618, %v676
        %v744 = vand.u32 %v619, %v676
        %v747 = vand.u32 %v620, %v676
        %v750 = vand.u32 %v621, %v676
        %v753 = vand.u32 %v622, %v676
        %v756 = vand.u32 %v623, %v676
        %v759 = vand.u32 %v624, %v676
        %v762 = vand.u32 %v625, %v676
        %v765 = vand.u32 %v626, %v676
        %v768 = vand.u32 %v627, %v676
        %v771 = vand.u32 %v628, %v676
        %v774 = vand.u32 %v629, %v676
        %v777 = vand.u32 %v630, %v676
        %v780 = vand.u32 %v631, %v676
        %v783 = vand.u32 %v632, %v676
        %v786 = vand.u32 %v633, %v676
        %v789 = vand.u32 %v634, %v676
        %v792 = vand.u32 %v635, %v676
        %v795 = vand.u32 %v636, %v676
        %v798 = vand.u32 %v637, %v676
        %v801 = vand.u32 %v638, %v676
        %v804 = vand.u32 %v639, %v676
        %v807 = vand.u32 %v640, %v676
        %v810 = vand.u32 %v641, %v676
        %v813 = vand.u32 %v642, %v676
        %v816 = vand.u32 %v643, %v676
        %v819 = vand.u32 %v644, %v676
        %v822 = vand.u32 %v645, %v676
        %v825 = vand.u32 %v646, %v676
        %v828 = vand.u32 %v647, %v676
        %v831 = vand.u32 %v648, %v676
        %v834 = vand.u32 %v649, %v676
        %v837 = vand.u32 %v650, %v676
        %v840 = vand.u32 %v651, %v676
        %v843 = vand.u32 %v652, %v676
        %v846 = vand.u32 %v653, %v676
        %v849 = vand.u32 %v654, %v676
        %v852 = vand.u32 %v655, %v676
        %v855 = vand.u32 %v656, %v676
        %v858 = vand.u32 %v657, %v676
        %v861 = vand.u32 %v658, %v676
        %v864 = vand.u32 %v659, %v676
        %v867 = vand.u32 %v660, %v676
        %v870 = vand.u32 %v661, %v676
        %v873 = vand.u32 %v662, %v676
        %v876 = vand.u32 %v663, %v676
        %v879 = vand.u32 %v664, %v676
        %v882 = vand.u32 %v665, %v676
        %v885 = vand.u32 %v666, %v676
        %v888 = vand.u32 %v667, %v676
        %v891 = vand.u32 %v668, %v676
        %893 = vmatprep.subr.bf16.mxu0 %v681
        %894 = vmatpush1.bf16.msra.mxu0 %v678
        %895 = vmatprep.subr.bf16.mxu0 0
        %896 = vmatpush1.bf16.msra.mxu0 0
        %897 = vmatprep.subr.bf16.mxu0 0
        %898 = vmatpush1.bf16.msra.mxu0 0
        %899 = vmatprep.subr.bf16.mxu0 0
        %900 = vmatpush1.bf16.msra.mxu0 0
        %901 = vmatprep.subr.bf16.mxu0 0
        %902 = vmatpush1.bf16.msra.mxu0 0
        %903 = vmatprep.subr.bf16.mxu0 0
        %904 = vmatpush1.bf16.msra.mxu0 0
        %905 = vmatprep.subr.bf16.mxu0 0
        %906 = vmatpush1.bf16.msra.mxu0 0
        %907 = vmatprep.subr.bf16.mxu0 0
        %908 = vmatpush1.bf16.msra.mxu0 0
        %909 = vmatprep.subr.bf16.mxu0 0
        %910 = vmatpush1.bf16.msra.mxu0 0
        %911 = vmatprep.subr.bf16.mxu0 0
        %912 = vmatpush1.bf16.msra.mxu0 0
        %913 = vmatprep.subr.bf16.mxu0 0
        %914 = vmatpush1.bf16.msra.mxu0 0
        %915 = vmatprep.subr.bf16.mxu0 0
        %916 = vmatpush1.bf16.msra.mxu0 0
        %917 = vmatprep.subr.bf16.mxu0 0
        %918 = vmatpush1.bf16.msra.mxu0 0
        %919 = vmatprep.subr.bf16.mxu0 0
        %920 = vmatpush1.bf16.msra.mxu0 0
        %921 = vmatprep.subr.bf16.mxu0 0
        %922 = vmatpush1.bf16.msra.mxu0 0
        %923 = vmatprep.subr.bf16.mxu0 0
        %924 = vmatpush1.bf16.msra.mxu0 0
        %925 = vmatprep.mubr.bf16.mxu0 0
        %926 = vmatmul.mubr.bf16.gmra.mrb[0].mxu0 %v671
        %v927 = vpop.f32.mrb[0].mxu0
        %v928 = vadd.f32 0.0, %v927
        %v929 = vpop.f32.mrb[0].mxu0
        %v930 = vadd.f32 0.0, %v929
        %v931 = vpop.f32.mrb[0].mxu0
        %v932 = vpop.f32.mrb[0].mxu0
        %933 = vdwg.mxu0
        %934 = vmatprep.subr.bf16.mxu0 %v687
        %935 = vmatpush1.bf16.msra.mxu0 %v684
        %936 = vmatprep.subr.bf16.mxu0 0
        %937 = vmatpush1.bf16.msra.mxu0 0
        %938 = vmatprep.subr.bf16.mxu0 0
        %939 = vmatpush1.bf16.msra.mxu0 0
        %940 = vmatprep.subr.bf16.mxu0 0
        %941 = vmatpush1.bf16.msra.mxu0 0
        %942 = vmatprep.subr.bf16.mxu0 0
        %943 = vmatpush1.bf16.msra.mxu0 0
        %944 = vmatprep.subr.bf16.mxu0 0
        %945 = vmatpush1.bf16.msra.mxu0 0
        %946 = vmatprep.subr.bf16.mxu0 0
        %947 = vmatpush1.bf16.msra.mxu0 0
        %948 = vmatprep.subr.bf16.mxu0 0
        %949 = vmatpush1.bf16.msra.mxu0 0
        %950 = vmatprep.subr.bf16.mxu0 0
        %951 = vmatpush1.bf16.msra.mxu0 0
        %952 = vmatprep.subr.bf16.mxu0 0
        %953 = vmatpush1.bf16.msra.mxu0 0
        %954 = vmatprep.subr.bf16.mxu0 0
        %955 = vmatpush1.bf16.msra.mxu0 0
        %956 = vmatprep.subr.bf16.mxu0 0
        %957 = vmatpush1.bf16.msra.mxu0 0
        %958 = vmatprep.subr.bf16.mxu0 0
        %959 = vmatpush1.bf16.msra.mxu0 0
        %960 = vmatprep.subr.bf16.mxu0 0
        %961 = vmatpush1.bf16.msra.mxu0 0
        %962 = vmatprep.subr.bf16.mxu0 0
        %963 = vmatpush1.bf16.msra.mxu0 0
        %964 = vmatprep.subr.bf16.mxu0 0
        %965 = vmatpush1.bf16.msra.mxu0 0
        %966 = vmatprep.mubr.bf16.mxu0 0
        %967 = vmatmul.mubr.bf16.gmra.mrb[0].mxu0 %v671
        %v968 = vpop.f32.mrb[0].mxu0
        %v969 = vadd.f32 0.0, %v968
        %v970 = vpop.f32.mrb[0].mxu0
        %v971 = vadd.f32 0.0, %v970
        %v972 = vpop.f32.mrb[0].mxu0
        %v973 = vpop.f32.mrb[0].mxu0
        %974 = vdwg.mxu0
        %975 = vmatprep.subr.bf16.mxu0 %v693
        %976 = vmatpush1.bf16.msra.mxu0 %v690
        %977 = vmatprep.subr.bf16.mxu0 0
        %978 = vmatpush1.bf16.msra.mxu0 0
        %979 = vmatprep.subr.bf16.mxu0 0
        %980 = vmatpush1.bf16.msra.mxu0 0
        %981 = vmatprep.subr.bf16.mxu0 0
        %982 = vmatpush1.bf16.msra.mxu0 0
        %983 = vmatprep.subr.bf16.mxu0 0
        %984 = vmatpush1.bf16.msra.mxu0 0
        %985 = vmatprep.subr.bf16.mxu0 0
        %986 = vmatpush1.bf16.msra.mxu0 0
        %987 = vmatprep.subr.bf16.mxu0 0
        %988 = vmatpush1.bf16.msra.mxu0 0
        %989 = vmatprep.subr.bf16.mxu0 0
        %990 = vmatpush1.bf16.msra.mxu0 0
        %991 = vmatprep.subr.bf16.mxu0 0
        %992 = vmatpush1.bf16.msra.mxu0 0
        %993 = vmatprep.subr.bf16.mxu0 0
        %994 = vmatpush1.bf16.msra.mxu0 0
        %995 = vmatprep.subr.bf16.mxu0 0
        %996 = vmatpush1.bf16.msra.mxu0 0
        %997 = vmatprep.subr.bf16.mxu0 0
        %998 = vmatpush1.bf16.msra.mxu0 0
        %999 = vmatprep.subr.bf16.mxu0 0
        %1000 = vmatpush1.bf16.msra.mxu0 0
        %1001 = vmatprep.subr.bf16.mxu0 0
        %1002 = vmatpush1.bf16.msra.mxu0 0
        %1003 = vmatprep.subr.bf16.mxu0 0
        %1004 = vmatpush1.bf16.msra.mxu0 0
        %1005 = vmatprep.subr.bf16.mxu0 0
        %1006 = vmatpush1.bf16.msra.mxu0 0
        %1007 = vmatprep.mubr.bf16.mxu0 0
        %1008 = vmatmul.mubr.bf16.gmra.mrb[0].mxu0 %v671
        %v1009 = vpop.f32.mrb[0].mxu0
        %v1010 = vadd.f32 0.0, %v1009
        %v1011 = vpop.f32.mrb[0].mxu0
        %v1012 = vadd.f32 0.0, %v1011
        %v1013 = vpop.f32.mrb[0].mxu0
        %v1014 = vpop.f32.mrb[0].mxu0
        %1015 = vdwg.mxu0
        %1016 = vmatprep.subr.bf16.mxu0 %v699
        %1017 = vmatpush1.bf16.msra.mxu0 %v696
        %1018 = vmatprep.subr.bf16.mxu0 0
        %1019 = vmatpush1.bf16.msra.mxu0 0
        %1020 = vmatprep.subr.bf16.mxu0 0
        %1021 = vmatpush1.bf16.msra.mxu0 0
        %1022 = vmatprep.subr.bf16.mxu0 0
        %1023 = vmatpush1.bf16.msra.mxu0 0
        %1024 = vmatprep.subr.bf16.mxu0 0
        %1025 = vmatpush1.bf16.msra.mxu0 0
        %1026 = vmatprep.subr.bf16.mxu0 0
        %1027 = vmatpush1.bf16.msra.mxu0 0
        %1028 = vmatprep.subr.bf16.mxu0 0
        %1029 = vmatpush1.bf16.msra.mxu0 0
        %1030 = vmatprep.subr.bf16.mxu0 0
        %1031 = vmatpush1.bf16.msra.mxu0 0
        %1032 = vmatprep.subr.bf16.mxu0 0
        %1033 = vmatpush1.bf16.msra.mxu0 0
        %1034 = vmatprep.subr.bf16.mxu0 0
        %1035 = vmatpush1.bf16.msra.mxu0 0
        %1036 = vmatprep.subr.bf16.mxu0 0
        %1037 = vmatpush1.bf16.msra.mxu0 0
        %1038 = vmatprep.subr.bf16.mxu0 0
        %1039 = vmatpush1.bf16.msra.mxu0 0
        %1040 = vmatprep.subr.bf16.mxu0 0
        %1041 = vmatpush1.bf16.msra.mxu0 0
        %1042 = vmatprep.subr.bf16.mxu0 0
        %1043 = vmatpush1.bf16.msra.mxu0 0
        %1044 = vmatprep.subr.bf16.mxu0 0
        %1045 = vmatpush1.bf16.msra.mxu0 0
        %1046 = vmatprep.subr.bf16.mxu0 0
        %1047 = vmatpush1.bf16.msra.mxu0 0
        %1048 = vmatprep.mubr.bf16.mxu0 0
        %1049 = vmatmul.mubr.bf16.gmra.mrb[0].mxu0 %v671
        %v1050 = vpop.f32.mrb[0].mxu0
        %v1051 = vadd.f32 0.0, %v1050
        %v1052 = vpop.f32.mrb[0].mxu0
        %v1053 = vadd.f32 0.0, %v1052
        %v1054 = vpop.f32.mrb[0].mxu0
        %v1055 = vpop.f32.mrb[0].mxu0
        %1056 = vdwg.mxu0
        %1057 = vmatprep.subr.bf16.mxu0 %v705
        %1058 = vmatpush1.bf16.msra.mxu0 %v702
        %1059 = vmatprep.subr.bf16.mxu0 0
        %1060 = vmatpush1.bf16.msra.mxu0 0
        %1061 = vmatprep.subr.bf16.mxu0 0
        %1062 = vmatpush1.bf16.msra.mxu0 0
        %1063 = vmatprep.subr.bf16.mxu0 0
        %1064 = vmatpush1.bf16.msra.mxu0 0
        %1065 = vmatprep.subr.bf16.mxu0 0
        %1066 = vmatpush1.bf16.msra.mxu0 0
        %1067 = vmatprep.subr.bf16.mxu0 0
        %1068 = vmatpush1.bf16.msra.mxu0 0
        %1069 = vmatprep.subr.bf16.mxu0 0
        %1070 = vmatpush1.bf16.msra.mxu0 0
        %1071 = vmatprep.subr.bf16.mxu0 0
        %1072 = vmatpush1.bf16.msra.mxu0 0
        %1073 = vmatprep.subr.bf16.mxu0 0
        %1074 = vmatpush1.bf16.msra.mxu0 0
        %1075 = vmatprep.subr.bf16.mxu0 0
        %1076 = vmatpush1.bf16.msra.mxu0 0
        %1077 = vmatprep.subr.bf16.mxu0 0
        %1078 = vmatpush1.bf16.msra.mxu0 0
        %1079 = vmatprep.subr.bf16.mxu0 0
        %1080 = vmatpush1.bf16.msra.mxu0 0
        %1081 = vmatprep.subr.bf16.mxu0 0
        %1082 = vmatpush1.bf16.msra.mxu0 0
        %1083 = vmatprep.subr.bf16.mxu0 0
        %1084 = vmatpush1.bf16.msra.mxu0 0
        %1085 = vmatprep.subr.bf16.mxu0 0
        %1086 = vmatpush1.bf16.msra.mxu0 0
        %1087 = vmatprep.subr.bf16.mxu0 0
        %1088 = vmatpush1.bf16.msra.mxu0 0
        %1089 = vmatprep.mubr.bf16.mxu0 0
        %1090 = vmatmul.mubr.bf16.gmra.mrb[0].mxu0 %v671
        %v1091 = vpop.f32.mrb[0].mxu0
        %v1092 = vadd.f32 0.0, %v1091
        %v1093 = vpop.f32.mrb[0].mxu0
        %v1094 = vadd.f32 0.0, %v1093
        %v1095 = vpop.f32.mrb[0].mxu0
        %v1096 = vpop.f32.mrb[0].mxu0
        %1097 = vdwg.mxu0
        %1098 = vmatprep.subr.bf16.mxu0 %v711
        %1099 = vmatpush1.bf16.msra.mxu0 %v708
        %1100 = vmatprep.subr.bf16.mxu0 0
        %1101 = vmatpush1.bf16.msra.mxu0 0
        %1102 = vmatprep.subr.bf16.mxu0 0
        %1103 = vmatpush1.bf16.msra.mxu0 0
        %1104 = vmatprep.subr.bf16.mxu0 0
        %1105 = vmatpush1.bf16.msra.mxu0 0
        %1106 = vmatprep.subr.bf16.mxu0 0
        %1107 = vmatpush1.bf16.msra.mxu0 0
        %1108 = vmatprep.subr.bf16.mxu0 0
        %1109 = vmatpush1.bf16.msra.mxu0 0
        %1110 = vmatprep.subr.bf16.mxu0 0
        %1111 = vmatpush1.bf16.msra.mxu0 0
        %1112 = vmatprep.subr.bf16.mxu0 0
        %1113 = vmatpush1.bf16.msra.mxu0 0
        %1114 = vmatprep.subr.bf16.mxu0 0
        %1115 = vmatpush1.bf16.msra.mxu0 0
        %1116 = vmatprep.subr.bf16.mxu0 0
        %1117 = vmatpush1.bf16.msra.mxu0 0
        %1118 = vmatprep.subr.bf16.mxu0 0
        %1119 = vmatpush1.bf16.msra.mxu0 0
        %1120 = vmatprep.subr.bf16.mxu0 0
        %1121 = vmatpush1.bf16.msra.mxu0 0
        %1122 = vmatprep.subr.bf16.mxu0 0
        %1123 = vmatpush1.bf16.msra.mxu0 0
        %1124 = vmatprep.subr.bf16.mxu0 0
        %1125 = vmatpush1.bf16.msra.mxu0 0
        %1126 = vmatprep.subr.bf16.mxu0 0
        %1127 = vmatpush1.bf16.msra.mxu0 0
        %1128 = vmatprep.subr.bf16.mxu0 0
        %1129 = vmatpush1.bf16.msra.mxu0 0
        %1130 = vmatprep.mubr.bf16.mxu0 0
        %1131 = vmatmul.mubr.bf16.gmra.mrb[0].mxu0 %v671
        %v1132 = vpop.f32.mrb[0].mxu0
        %v1133 = vadd.f32 0.0, %v1132
        %v1134 = vpop.f32.mrb[0].mxu0
        %v1135 = vadd.f32 0.0, %v1134
        %v1136 = vpop.f32.mrb[0].mxu0
        %v1137 = vpop.f32.mrb[0].mxu0
        %1138 = vdwg.mxu0
        %1139 = vmatprep.subr.bf16.mxu0 %v717
        %1140 = vmatpush1.bf16.msra.mxu0 %v714
        %1141 = vmatprep.subr.bf16.mxu0 0
        %1142 = vmatpush1.bf16.msra.mxu0 0
        %1143 = vmatprep.subr.bf16.mxu0 0
        %1144 = vmatpush1.bf16.msra.mxu0 0
        %1145 = vmatprep.subr.bf16.mxu0 0
        %1146 = vmatpush1.bf16.msra.mxu0 0
        %1147 = vmatprep.subr.bf16.mxu0 0
        %1148 = vmatpush1.bf16.msra.mxu0 0
        %1149 = vmatprep.subr.bf16.mxu0 0
        %1150 = vmatpush1.bf16.msra.mxu0 0
        %1151 = vmatprep.subr.bf16.mxu0 0
        %1152 = vmatpush1.bf16.msra.mxu0 0
        %1153 = vmatprep.subr.bf16.mxu0 0
        %1154 = vmatpush1.bf16.msra.mxu0 0
        %1155 = vmatprep.subr.bf16.mxu0 0
        %1156 = vmatpush1.bf16.msra.mxu0 0
        %1157 = vmatprep.subr.bf16.mxu0 0
        %1158 = vmatpush1.bf16.msra.mxu0 0
        %1159 = vmatprep.subr.bf16.mxu0 0
        %1160 = vmatpush1.bf16.msra.mxu0 0
        %1161 = vmatprep.subr.bf16.mxu0 0
        %1162 = vmatpush1.bf16.msra.mxu0 0
        %1163 = vmatprep.subr.bf16.mxu0 0
        %1164 = vmatpush1.bf16.msra.mxu0 0
        %1165 = vmatprep.subr.bf16.mxu0 0
        %1166 = vmatpush1.bf16.msra.mxu0 0
        %1167 = vmatprep.subr.bf16.mxu0 0
        %1168 = vmatpush1.bf16.msra.mxu0 0
        %1169 = vmatprep.subr.bf16.mxu0 0
        %1170 = vmatpush1.bf16.msra.mxu0 0
        %1171 = vmatprep.mubr.bf16.mxu0 0
        %1172 = vmatmul.mubr.bf16.gmra.mrb[0].mxu0 %v671
        %v1173 = vpop.f32.mrb[0].mxu0
        %v1174 = vadd.f32 0.0, %v1173
        %v1175 = vpop.f32.mrb[0].mxu0
        %v1176 = vadd.f32 0.0, %v1175
        %v1177 = vpop.f32.mrb[0].mxu0
        %v1178 = vpop.f32.mrb[0].mxu0
        %1179 = vdwg.mxu0
        %1180 = vmatprep.subr.bf16.mxu0 %v723
        %1181 = vmatpush1.bf16.msra.mxu0 %v720
        %1182 = vmatprep.subr.bf16.mxu0 0
        %1183 = vmatpush1.bf16.msra.mxu0 0
        %1184 = vmatprep.subr.bf16.mxu0 0
        %1185 = vmatpush1.bf16.msra.mxu0 0
        %1186 = vmatprep.subr.bf16.mxu0 0
        %1187 = vmatpush1.bf16.msra.mxu0 0
        %1188 = vmatprep.subr.bf16.mxu0 0
        %1189 = vmatpush1.bf16.msra.mxu0 0
        %1190 = vmatprep.subr.bf16.mxu0 0
        %1191 = vmatpush1.bf16.msra.mxu0 0
        %1192 = vmatprep.subr.bf16.mxu0 0
        %1193 = vmatpush1.bf16.msra.mxu0 0
        %1194 = vmatprep.subr.bf16.mxu0 0
        %1195 = vmatpush1.bf16.msra.mxu0 0
        %1196 = vmatprep.subr.bf16.mxu0 0
        %1197 = vmatpush1.bf16.msra.mxu0 0
        %1198 = vmatprep.subr.bf16.mxu0 0
        %1199 = vmatpush1.bf16.msra.mxu0 0
        %1200 = vmatprep.subr.bf16.mxu0 0
        %1201 = vmatpush1.bf16.msra.mxu0 0
        %1202 = vmatprep.subr.bf16.mxu0 0
        %1203 = vmatpush1.bf16.msra.mxu0 0
        %1204 = vmatprep.subr.bf16.mxu0 0
        %1205 = vmatpush1.bf16.msra.mxu0 0
        %1206 = vmatprep.subr.bf16.mxu0 0
        %1207 = vmatpush1.bf16.msra.mxu0 0
        %1208 = vmatprep.subr.bf16.mxu0 0
        %1209 = vmatpush1.bf16.msra.mxu0 0
        %1210 = vmatprep.subr.bf16.mxu0 0
        %1211 = vmatpush1.bf16.msra.mxu0 0
        %1212 = vmatprep.mubr.bf16.mxu0 0
        %1213 = vmatmul.mubr.bf16.gmra.mrb[0].mxu0 %v671
        %v1214 = vpop.f32.mrb[0].mxu0
        %v1215 = vadd.f32 0.0, %v1214
        %v1216 = vpop.f32.mrb[0].mxu0
        %v1217 = vadd.f32 0.0, %v1216
        %v1218 = vpop.f32.mrb[0].mxu0
        %v1219 = vpop.f32.mrb[0].mxu0
        %1220 = vdwg.mxu0
        %1221 = vmatprep.subr.bf16.mxu0 %v729
        %1222 = vmatpush1.bf16.msra.mxu0 %v726
        %1223 = vmatprep.subr.bf16.mxu0 0
        %1224 = vmatpush1.bf16.msra.mxu0 0
        %1225 = vmatprep.subr.bf16.mxu0 0
        %1226 = vmatpush1.bf16.msra.mxu0 0
        %1227 = vmatprep.subr.bf16.mxu0 0
        %1228 = vmatpush1.bf16.msra.mxu0 0
        %1229 = vmatprep.subr.bf16.mxu0 0
        %1230 = vmatpush1.bf16.msra.mxu0 0
        %1231 = vmatprep.subr.bf16.mxu0 0
        %1232 = vmatpush1.bf16.msra.mxu0 0
        %1233 = vmatprep.subr.bf16.mxu0 0
        %1234 = vmatpush1.bf16.msra.mxu0 0
        %1235 = vmatprep.subr.bf16.mxu0 0
        %1236 = vmatpush1.bf16.msra.mxu0 0
        %1237 = vmatprep.subr.bf16.mxu0 0
        %1238 = vmatpush1.bf16.msra.mxu0 0
        %1239 = vmatprep.subr.bf16.mxu0 0
        %1240 = vmatpush1.bf16.msra.mxu0 0
        %1241 = vmatprep.subr.bf16.mxu0 0
        %1242 = vmatpush1.bf16.msra.mxu0 0
        %1243 = vmatprep.subr.bf16.mxu0 0
        %1244 = vmatpush1.bf16.msra.mxu0 0
        %1245 = vmatprep.subr.bf16.mxu0 0
        %1246 = vmatpush1.bf16.msra.mxu0 0
        %1247 = vmatprep.subr.bf16.mxu0 0
        %1248 = vmatpush1.bf16.msra.mxu0 0
        %1249 = vmatprep.subr.bf16.mxu0 0
        %1250 = vmatpush1.bf16.msra.mxu0 0
        %1251 = vmatprep.subr.bf16.mxu0 0
        %1252 = vmatpush1.bf16.msra.mxu0 0
        %1253 = vmatprep.mubr.bf16.mxu0 0
        %1254 = vmatmul.mubr.bf16.gmra.mrb[0].mxu0 %v671
        %v1255 = vpop.f32.mrb[0].mxu0
        %v1256 = vadd.f32 0.0, %v1255
        %v1257 = vpop.f32.mrb[0].mxu0
        %v1258 = vadd.f32 0.0, %v1257
        %v1259 = vpop.f32.mrb[0].mxu0
        %v1260 = vpop.f32.mrb[0].mxu0
        %1261 = vdwg.mxu0
        %1262 = vmatprep.subr.bf16.mxu0 %v735
        %1263 = vmatpush1.bf16.msra.mxu0 %v732
        %1264 = vmatprep.subr.bf16.mxu0 0
        %1265 = vmatpush1.bf16.msra.mxu0 0
        %1266 = vmatprep.subr.bf16.mxu0 0
        %1267 = vmatpush1.bf16.msra.mxu0 0
        %1268 = vmatprep.subr.bf16.mxu0 0
        %1269 = vmatpush1.bf16.msra.mxu0 0
        %1270 = vmatprep.subr.bf16.mxu0 0
        %1271 = vmatpush1.bf16.msra.mxu0 0
        %1272 = vmatprep.subr.bf16.mxu0 0
        %1273 = vmatpush1.bf16.msra.mxu0 0
        %1274 = vmatprep.subr.bf16.mxu0 0
        %1275 = vmatpush1.bf16.msra.mxu0 0
        %1276 = vmatprep.subr.bf16.mxu0 0
        %1277 = vmatpush1.bf16.msra.mxu0 0
        %1278 = vmatprep.subr.bf16.mxu0 0
        %1279 = vmatpush1.bf16.msra.mxu0 0
        %1280 = vmatprep.subr.bf16.mxu0 0
        %1281 = vmatpush1.bf16.msra.mxu0 0
        %1282 = vmatprep.subr.bf16.mxu0 0
        %1283 = vmatpush1.bf16.msra.mxu0 0
        %1284 = vmatprep.subr.bf16.mxu0 0
        %1285 = vmatpush1.bf16.msra.mxu0 0
        %1286 = vmatprep.subr.bf16.mxu0 0
        %1287 = vmatpush1.bf16.msra.mxu0 0
        %1288 = vmatprep.subr.bf16.mxu0 0
        %1289 = vmatpush1.bf16.msra.mxu0 0
        %1290 = vmatprep.subr.bf16.mxu0 0
        %1291 = vmatpush1.bf16.msra.mxu0 0
        %1292 = vmatprep.subr.bf16.mxu0 0
        %1293 = vmatpush1.bf16.msra.mxu0 0
        %1294 = vmatprep.mubr.bf16.mxu0 0
        %1295 = vmatmul.mubr.bf16.gmra.mrb[0].mxu0 %v671
        %v1296 = vpop.f32.mrb[0].mxu0
        %v1297 = vadd.f32 0.0, %v1296
        %v1298 = vpop.f32.mrb[0].mxu0
        %v1299 = vadd.f32 0.0, %v1298
        %v1300 = vpop.f32.mrb[0].mxu0
        %v1301 = vpop.f32.mrb[0].mxu0
        %1302 = vdwg.mxu0
        %1303 = vmatprep.subr.bf16.mxu0 %v741
        %1304 = vmatpush1.bf16.msra.mxu0 %v738
        %1305 = vmatprep.subr.bf16.mxu0 0
        %1306 = vmatpush1.bf16.msra.mxu0 0
        %1307 = vmatprep.subr.bf16.mxu0 0
        %1308 = vmatpush1.bf16.msra.mxu0 0
        %1309 = vmatprep.subr.bf16.mxu0 0
        %1310 = vmatpush1.bf16.msra.mxu0 0
        %1311 = vmatprep.subr.bf16.mxu0 0
        %1312 = vmatpush1.bf16.msra.mxu0 0
        %1313 = vmatprep.subr.bf16.mxu0 0
        %1314 = vmatpush1.bf16.msra.mxu0 0
        %1315 = vmatprep.subr.bf16.mxu0 0
        %1316 = vmatpush1.bf16.msra.mxu0 0
        %1317 = vmatprep.subr.bf16.mxu0 0
        %1318 = vmatpush1.bf16.msra.mxu0 0
        %1319 = vmatprep.subr.bf16.mxu0 0
        %1320 = vmatpush1.bf16.msra.mxu0 0
        %1321 = vmatprep.subr.bf16.mxu0 0
        %1322 = vmatpush1.bf16.msra.mxu0 0
        %1323 = vmatprep.subr.bf16.mxu0 0
        %1324 = vmatpush1.bf16.msra.mxu0 0
        %1325 = vmatprep.subr.bf16.mxu0 0
        %1326 = vmatpush1.bf16.msra.mxu0 0
        %1327 = vmatprep.subr.bf16.mxu0 0
        %1328 = vmatpush1.bf16.msra.mxu0 0
        %1329 = vmatprep.subr.bf16.mxu0 0
        %1330 = vmatpush1.bf16.msra.mxu0 0
        %1331 = vmatprep.subr.bf16.mxu0 0
        %1332 = vmatpush1.bf16.msra.mxu0 0
        %1333 = vmatprep.subr.bf16.mxu0 0
        %1334 = vmatpush1.bf16.msra.mxu0 0
        %1335 = vmatprep.mubr.bf16.mxu0 0
        %1336 = vmatmul.mubr.bf16.gmra.mrb[0].mxu0 %v671
        %v1337 = vpop.f32.mrb[0].mxu0
        %v1338 = vadd.f32 0.0, %v1337
        %v1339 = vpop.f32.mrb[0].mxu0
        %v1340 = vadd.f32 0.0, %v1339
        %v1341 = vpop.f32.mrb[0].mxu0
        %v1342 = vpop.f32.mrb[0].mxu0
        %1343 = vdwg.mxu0
        %1344 = vmatprep.subr.bf16.mxu0 %v747
        %1345 = vmatpush1.bf16.msra.mxu0 %v744
        %1346 = vmatprep.subr.bf16.mxu0 0
        %1347 = vmatpush1.bf16.msra.mxu0 0
        %1348 = vmatprep.subr.bf16.mxu0 0
        %1349 = vmatpush1.bf16.msra.mxu0 0
        %1350 = vmatprep.subr.bf16.mxu0 0
        %1351 = vmatpush1.bf16.msra.mxu0 0
        %1352 = vmatprep.subr.bf16.mxu0 0
        %1353 = vmatpush1.bf16.msra.mxu0 0
        %1354 = vmatprep.subr.bf16.mxu0 0
        %1355 = vmatpush1.bf16.msra.mxu0 0
        %1356 = vmatprep.subr.bf16.mxu0 0
        %1357 = vmatpush1.bf16.msra.mxu0 0
        %1358 = vmatprep.subr.bf16.mxu0 0
        %1359 = vmatpush1.bf16.msra.mxu0 0
        %1360 = vmatprep.subr.bf16.mxu0 0
        %1361 = vmatpush1.bf16.msra.mxu0 0
        %1362 = vmatprep.subr.bf16.mxu0 0
        %1363 = vmatpush1.bf16.msra.mxu0 0
        %1364 = vmatprep.subr.bf16.mxu0 0
        %1365 = vmatpush1.bf16.msra.mxu0 0
        %1366 = vmatprep.subr.bf16.mxu0 0
        %1367 = vmatpush1.bf16.msra.mxu0 0
        %1368 = vmatprep.subr.bf16.mxu0 0
        %1369 = vmatpush1.bf16.msra.mxu0 0
        %1370 = vmatprep.subr.bf16.mxu0 0
        %1371 = vmatpush1.bf16.msra.mxu0 0
        %1372 = vmatprep.subr.bf16.mxu0 0
        %1373 = vmatpush1.bf16.msra.mxu0 0
        %1374 = vmatprep.subr.bf16.mxu0 0
        %1375 = vmatpush1.bf16.msra.mxu0 0
        %1376 = vmatprep.mubr.bf16.mxu0 0
        %1377 = vmatmul.mubr.bf16.gmra.mrb[0].mxu0 %v671
        %v1378 = vpop.f32.mrb[0].mxu0
        %v1379 = vadd.f32 0.0, %v1378
        %v1380 = vpop.f32.mrb[0].mxu0
        %v1381 = vadd.f32 0.0, %v1380
        %v1382 = vpop.f32.mrb[0].mxu0
        %v1383 = vpop.f32.mrb[0].mxu0
        %1384 = vdwg.mxu0
        %1385 = vmatprep.subr.bf16.mxu0 %v753
        %1386 = vmatpush1.bf16.msra.mxu0 %v750
        %1387 = vmatprep.subr.bf16.mxu0 0
        %1388 = vmatpush1.bf16.msra.mxu0 0
        %1389 = vmatprep.subr.bf16.mxu0 0
        %1390 = vmatpush1.bf16.msra.mxu0 0
        %1391 = vmatprep.subr.bf16.mxu0 0
        %1392 = vmatpush1.bf16.msra.mxu0 0
        %1393 = vmatprep.subr.bf16.mxu0 0
        %1394 = vmatpush1.bf16.msra.mxu0 0
        %1395 = vmatprep.subr.bf16.mxu0 0
        %1396 = vmatpush1.bf16.msra.mxu0 0
        %1397 = vmatprep.subr.bf16.mxu0 0
        %1398 = vmatpush1.bf16.msra.mxu0 0
        %1399 = vmatprep.subr.bf16.mxu0 0
        %1400 = vmatpush1.bf16.msra.mxu0 0
        %1401 = vmatprep.subr.bf16.mxu0 0
        %1402 = vmatpush1.bf16.msra.mxu0 0
        %1403 = vmatprep.subr.bf16.mxu0 0
        %1404 = vmatpush1.bf16.msra.mxu0 0
        %1405 = vmatprep.subr.bf16.mxu0 0
        %1406 = vmatpush1.bf16.msra.mxu0 0
        %1407 = vmatprep.subr.bf16.mxu0 0
        %1408 = vmatpush1.bf16.msra.mxu0 0
        %1409 = vmatprep.subr.bf16.mxu0 0
        %1410 = vmatpush1.bf16.msra.mxu0 0
        %1411 = vmatprep.subr.bf16.mxu0 0
        %1412 = vmatpush1.bf16.msra.mxu0 0
        %1413 = vmatprep.subr.bf16.mxu0 0
        %1414 = vmatpush1.bf16.msra.mxu0 0
        %1415 = vmatprep.subr.bf16.mxu0 0
        %1416 = vmatpush1.bf16.msra.mxu0 0
        %1417 = vmatprep.mubr.bf16.mxu0 0
        %1418 = vmatmul.mubr.bf16.gmra.mrb[0].mxu0 %v671
        %v1419 = vpop.f32.mrb[0].mxu0
        %v1420 = vadd.f32 0.0, %v1419
        %v1421 = vpop.f32.mrb[0].mxu0
        %v1422 = vadd.f32 0.0, %v1421
        %v1423 = vpop.f32.mrb[0].mxu0
        %v1424 = vpop.f32.mrb[0].mxu0
        %1425 = vdwg.mxu0
        %1426 = vmatprep.subr.bf16.mxu0 %v759
        %1427 = vmatpush1.bf16.msra.mxu0 %v756
        %1428 = vmatprep.subr.bf16.mxu0 0
        %1429 = vmatpush1.bf16.msra.mxu0 0
        %1430 = vmatprep.subr.bf16.mxu0 0
        %1431 = vmatpush1.bf16.msra.mxu0 0
        %1432 = vmatprep.subr.bf16.mxu0 0
        %1433 = vmatpush1.bf16.msra.mxu0 0
        %1434 = vmatprep.subr.bf16.mxu0 0
        %1435 = vmatpush1.bf16.msra.mxu0 0
        %1436 = vmatprep.subr.bf16.mxu0 0
        %1437 = vmatpush1.bf16.msra.mxu0 0
        %1438 = vmatprep.subr.bf16.mxu0 0
        %1439 = vmatpush1.bf16.msra.mxu0 0
        %1440 = vmatprep.subr.bf16.mxu0 0
        %1441 = vmatpush1.bf16.msra.mxu0 0
        %1442 = vmatprep.subr.bf16.mxu0 0
        %1443 = vmatpush1.bf16.msra.mxu0 0
        %1444 = vmatprep.subr.bf16.mxu0 0
        %1445 = vmatpush1.bf16.msra.mxu0 0
        %1446 = vmatprep.subr.bf16.mxu0 0
        %1447 = vmatpush1.bf16.msra.mxu0 0
        %1448 = vmatprep.subr.bf16.mxu0 0
        %1449 = vmatpush1.bf16.msra.mxu0 0
        %1450 = vmatprep.subr.bf16.mxu0 0
        %1451 = vmatpush1.bf16.msra.mxu0 0
        %1452 = vmatprep.subr.bf16.mxu0 0
        %1453 = vmatpush1.bf16.msra.mxu0 0
        %1454 = vmatprep.subr.bf16.mxu0 0
        %1455 = vmatpush1.bf16.msra.mxu0 0
        %1456 = vmatprep.subr.bf16.mxu0 0
        %1457 = vmatpush1.bf16.msra.mxu0 0
        %1458 = vmatprep.mubr.bf16.mxu0 0
        %1459 = vmatmul.mubr.bf16.gmra.mrb[0].mxu0 %v671
        %v1460 = vpop.f32.mrb[0].mxu0
        %v1461 = vadd.f32 0.0, %v1460
        %v1462 = vpop.f32.mrb[0].mxu0
        %v1463 = vadd.f32 0.0, %v1462
        %v1464 = vpop.f32.mrb[0].mxu0
        %v1465 = vpop.f32.mrb[0].mxu0
        %1466 = vdwg.mxu0
        %1467 = vmatprep.subr.bf16.mxu0 %v765
        %1468 = vmatpush1.bf16.msra.mxu0 %v762
        %1469 = vmatprep.subr.bf16.mxu0 0
        %1470 = vmatpush1.bf16.msra.mxu0 0
        %1471 = vmatprep.subr.bf16.mxu0 0
        %1472 = vmatpush1.bf16.msra.mxu0 0
        %1473 = vmatprep.subr.bf16.mxu0 0
        %1474 = vmatpush1.bf16.msra.mxu0 0
        %1475 = vmatprep.subr.bf16.mxu0 0
        %1476 = vmatpush1.bf16.msra.mxu0 0
        %1477 = vmatprep.subr.bf16.mxu0 0
        %1478 = vmatpush1.bf16.msra.mxu0 0
        %1479 = vmatprep.subr.bf16.mxu0 0
        %1480 = vmatpush1.bf16.msra.mxu0 0
        %1481 = vmatprep.subr.bf16.mxu0 0
        %1482 = vmatpush1.bf16.msra.mxu0 0
        %1483 = vmatprep.subr.bf16.mxu0 0
        %1484 = vmatpush1.bf16.msra.mxu0 0
        %1485 = vmatprep.subr.bf16.mxu0 0
        %1486 = vmatpush1.bf16.msra.mxu0 0
        %1487 = vmatprep.subr.bf16.mxu0 0
        %1488 = vmatpush1.bf16.msra.mxu0 0
        %1489 = vmatprep.subr.bf16.mxu0 0
        %1490 = vmatpush1.bf16.msra.mxu0 0
        %1491 = vmatprep.subr.bf16.mxu0 0
        %1492 = vmatpush1.bf16.msra.mxu0 0
        %1493 = vmatprep.subr.bf16.mxu0 0
        %1494 = vmatpush1.bf16.msra.mxu0 0
        %1495 = vmatprep.subr.bf16.mxu0 0
        %1496 = vmatpush1.bf16.msra.mxu0 0
        %1497 = vmatprep.subr.bf16.mxu0 0
        %1498 = vmatpush1.bf16.msra.mxu0 0
        %1499 = vmatprep.mubr.bf16.mxu0 0
        %1500 = vmatmul.mubr.bf16.gmra.mrb[0].mxu0 %v671
        %v1501 = vpop.f32.mrb[0].mxu0
        %v1502 = vadd.f32 0.0, %v1501
        %v1503 = vpop.f32.mrb[0].mxu0
        %v1504 = vadd.f32 0.0, %v1503
        %v1505 = vpop.f32.mrb[0].mxu0
        %v1506 = vpop.f32.mrb[0].mxu0
        %1507 = vdwg.mxu0
        %1508 = vmatprep.subr.bf16.mxu0 %v771
        %1509 = vmatpush1.bf16.msra.mxu0 %v768
        %1510 = vmatprep.subr.bf16.mxu0 0
        %1511 = vmatpush1.bf16.msra.mxu0 0
        %1512 = vmatprep.subr.bf16.mxu0 0
        %1513 = vmatpush1.bf16.msra.mxu0 0
        %1514 = vmatprep.subr.bf16.mxu0 0
        %1515 = vmatpush1.bf16.msra.mxu0 0
        %1516 = vmatprep.subr.bf16.mxu0 0
        %1517 = vmatpush1.bf16.msra.mxu0 0
        %1518 = vmatprep.subr.bf16.mxu0 0
        %1519 = vmatpush1.bf16.msra.mxu0 0
        %1520 = vmatprep.subr.bf16.mxu0 0
        %1521 = vmatpush1.bf16.msra.mxu0 0
        %1522 = vmatprep.subr.bf16.mxu0 0
        %1523 = vmatpush1.bf16.msra.mxu0 0
        %1524 = vmatprep.subr.bf16.mxu0 0
        %1525 = vmatpush1.bf16.msra.mxu0 0
        %1526 = vmatprep.subr.bf16.mxu0 0
        %1527 = vmatpush1.bf16.msra.mxu0 0
        %1528 = vmatprep.subr.bf16.mxu0 0
        %1529 = vmatpush1.bf16.msra.mxu0 0
        %1530 = vmatprep.subr.bf16.mxu0 0
        %1531 = vmatpush1.bf16.msra.mxu0 0
        %1532 = vmatprep.subr.bf16.mxu0 0
        %1533 = vmatpush1.bf16.msra.mxu0 0
        %1534 = vmatprep.subr.bf16.mxu0 0
        %1535 = vmatpush1.bf16.msra.mxu0 0
        %1536 = vmatprep.subr.bf16.mxu0 0
        %1537 = vmatpush1.bf16.msra.mxu0 0
        %1538 = vmatprep.subr.bf16.mxu0 0
        %1539 = vmatpush1.bf16.msra.mxu0 0
        %1540 = vmatprep.mubr.bf16.mxu0 0
        %1541 = vmatmul.mubr.bf16.gmra.mrb[0].mxu0 %v671
        %v1542 = vpop.f32.mrb[0].mxu0
        %v1543 = vadd.f32 0.0, %v1542
        %v1544 = vpop.f32.mrb[0].mxu0
        %v1545 = vadd.f32 0.0, %v1544
        %v1546 = vpop.f32.mrb[0].mxu0
        %v1547 = vpop.f32.mrb[0].mxu0
        %1548 = vdwg.mxu0
        %1549 = vmatprep.subr.bf16.mxu0 %v777
        %1550 = vmatpush1.bf16.msra.mxu0 %v774
        %1551 = vmatprep.subr.bf16.mxu0 0
        %1552 = vmatpush1.bf16.msra.mxu0 0
        %1553 = vmatprep.subr.bf16.mxu0 0
        %1554 = vmatpush1.bf16.msra.mxu0 0
        %1555 = vmatprep.subr.bf16.mxu0 0
        %1556 = vmatpush1.bf16.msra.mxu0 0
        %1557 = vmatprep.subr.bf16.mxu0 0
        %1558 = vmatpush1.bf16.msra.mxu0 0
        %1559 = vmatprep.subr.bf16.mxu0 0
        %1560 = vmatpush1.bf16.msra.mxu0 0
        %1561 = vmatprep.subr.bf16.mxu0 0
        %1562 = vmatpush1.bf16.msra.mxu0 0
        %1563 = vmatprep.subr.bf16.mxu0 0
        %1564 = vmatpush1.bf16.msra.mxu0 0
        %1565 = vmatprep.subr.bf16.mxu0 0
        %1566 = vmatpush1.bf16.msra.mxu0 0
        %1567 = vmatprep.subr.bf16.mxu0 0
        %1568 = vmatpush1.bf16.msra.mxu0 0
        %1569 = vmatprep.subr.bf16.mxu0 0
        %1570 = vmatpush1.bf16.msra.mxu0 0
        %1571 = vmatprep.subr.bf16.mxu0 0
        %1572 = vmatpush1.bf16.msra.mxu0 0
        %1573 = vmatprep.subr.bf16.mxu0 0
        %1574 = vmatpush1.bf16.msra.mxu0 0
        %1575 = vmatprep.subr.bf16.mxu0 0
        %1576 = vmatpush1.bf16.msra.mxu0 0
        %1577 = vmatprep.subr.bf16.mxu0 0
        %1578 = vmatpush1.bf16.msra.mxu0 0
        %1579 = vmatprep.subr.bf16.mxu0 0
        %1580 = vmatpush1.bf16.msra.mxu0 0
        %1581 = vmatprep.mubr.bf16.mxu0 0
        %1582 = vmatmul.mubr.bf16.gmra.mrb[0].mxu0 %v671
        %v1583 = vpop.f32.mrb[0].mxu0
        %v1584 = vadd.f32 0.0, %v1583
        %v1585 = vpop.f32.mrb[0].mxu0
        %v1586 = vadd.f32 0.0, %v1585
        %v1587 = vpop.f32.mrb[0].mxu0
        %v1588 = vpop.f32.mrb[0].mxu0
        %1589 = vdwg.mxu0
        %1590 = vmatprep.subr.bf16.mxu0 %v783
        %1591 = vmatpush1.bf16.msra.mxu0 %v780
        %1592 = vmatprep.subr.bf16.mxu0 0
        %1593 = vmatpush1.bf16.msra.mxu0 0
        %1594 = vmatprep.subr.bf16.mxu0 0
        %1595 = vmatpush1.bf16.msra.mxu0 0
        %1596 = vmatprep.subr.bf16.mxu0 0
        %1597 = vmatpush1.bf16.msra.mxu0 0
        %1598 = vmatprep.subr.bf16.mxu0 0
        %1599 = vmatpush1.bf16.msra.mxu0 0
        %1600 = vmatprep.subr.bf16.mxu0 0
        %1601 = vmatpush1.bf16.msra.mxu0 0
        %1602 = vmatprep.subr.bf16.mxu0 0
        %1603 = vmatpush1.bf16.msra.mxu0 0
        %1604 = vmatprep.subr.bf16.mxu0 0
        %1605 = vmatpush1.bf16.msra.mxu0 0
        %1606 = vmatprep.subr.bf16.mxu0 0
        %1607 = vmatpush1.bf16.msra.mxu0 0
        %1608 = vmatprep.subr.bf16.mxu0 0
        %1609 = vmatpush1.bf16.msra.mxu0 0
        %1610 = vmatprep.subr.bf16.mxu0 0
        %1611 = vmatpush1.bf16.msra.mxu0 0
        %1612 = vmatprep.subr.bf16.mxu0 0
        %1613 = vmatpush1.bf16.msra.mxu0 0
        %1614 = vmatprep.subr.bf16.mxu0 0
        %1615 = vmatpush1.bf16.msra.mxu0 0
        %1616 = vmatprep.subr.bf16.mxu0 0
        %1617 = vmatpush1.bf16.msra.mxu0 0
        %1618 = vmatprep.subr.bf16.mxu0 0
        %1619 = vmatpush1.bf16.msra.mxu0 0
        %1620 = vmatprep.subr.bf16.mxu0 0
        %1621 = vmatpush1.bf16.msra.mxu0 0
        %1622 = vmatprep.mubr.bf16.mxu0 0
        %1623 = vmatmul.mubr.bf16.gmra.mrb[0].mxu0 %v671
        %v1624 = vpop.f32.mrb[0].mxu0
        %v1625 = vadd.f32 0.0, %v1624
        %v1626 = vpop.f32.mrb[0].mxu0
        %v1627 = vadd.f32 0.0, %v1626
        %v1628 = vpop.f32.mrb[0].mxu0
        %v1629 = vpop.f32.mrb[0].mxu0
        %1630 = vdwg.mxu0
        %1631 = vmatprep.subr.bf16.mxu0 %v789
        %1632 = vmatpush1.bf16.msra.mxu0 %v786
        %1633 = vmatprep.subr.bf16.mxu0 0
        %1634 = vmatpush1.bf16.msra.mxu0 0
        %1635 = vmatprep.subr.bf16.mxu0 0
        %1636 = vmatpush1.bf16.msra.mxu0 0
        %1637 = vmatprep.subr.bf16.mxu0 0
        %1638 = vmatpush1.bf16.msra.mxu0 0
        %1639 = vmatprep.subr.bf16.mxu0 0
        %1640 = vmatpush1.bf16.msra.mxu0 0
        %1641 = vmatprep.subr.bf16.mxu0 0
        %1642 = vmatpush1.bf16.msra.mxu0 0
        %1643 = vmatprep.subr.bf16.mxu0 0
        %1644 = vmatpush1.bf16.msra.mxu0 0
        %1645 = vmatprep.subr.bf16.mxu0 0
        %1646 = vmatpush1.bf16.msra.mxu0 0
        %1647 = vmatprep.subr.bf16.mxu0 0
        %1648 = vmatpush1.bf16.msra.mxu0 0
        %1649 = vmatprep.subr.bf16.mxu0 0
        %1650 = vmatpush1.bf16.msra.mxu0 0
        %1651 = vmatprep.subr.bf16.mxu0 0
        %1652 = vmatpush1.bf16.msra.mxu0 0
        %1653 = vmatprep.subr.bf16.mxu0 0
        %1654 = vmatpush1.bf16.msra.mxu0 0
        %1655 = vmatprep.subr.bf16.mxu0 0
        %1656 = vmatpush1.bf16.msra.mxu0 0
        %1657 = vmatprep.subr.bf16.mxu0 0
        %1658 = vmatpush1.bf16.msra.mxu0 0
        %1659 = vmatprep.subr.bf16.mxu0 0
        %1660 = vmatpush1.bf16.msra.mxu0 0
        %1661 = vmatprep.subr.bf16.mxu0 0
        %1662 = vmatpush1.bf16.msra.mxu0 0
        %1663 = vmatprep.mubr.bf16.mxu0 0
        %1664 = vmatmul.mubr.bf16.gmra.mrb[0].mxu0 %v671
        %v1665 = vpop.f32.mrb[0].mxu0
        %v1666 = vadd.f32 0.0, %v1665
        %v1667 = vpop.f32.mrb[0].mxu0
        %v1668 = vadd.f32 0.0, %v1667
        %v1669 = vpop.f32.mrb[0].mxu0
        %v1670 = vpop.f32.mrb[0].mxu0
        %1671 = vdwg.mxu0
        %1672 = vmatprep.subr.bf16.mxu0 %v795
        %1673 = vmatpush1.bf16.msra.mxu0 %v792
        %1674 = vmatprep.subr.bf16.mxu0 0
        %1675 = vmatpush1.bf16.msra.mxu0 0
        %1676 = vmatprep.subr.bf16.mxu0 0
        %1677 = vmatpush1.bf16.msra.mxu0 0
        %1678 = vmatprep.subr.bf16.mxu0 0
        %1679 = vmatpush1.bf16.msra.mxu0 0
        %1680 = vmatprep.subr.bf16.mxu0 0
        %1681 = vmatpush1.bf16.msra.mxu0 0
        %1682 = vmatprep.subr.bf16.mxu0 0
        %1683 = vmatpush1.bf16.msra.mxu0 0
        %1684 = vmatprep.subr.bf16.mxu0 0
        %1685 = vmatpush1.bf16.msra.mxu0 0
        %1686 = vmatprep.subr.bf16.mxu0 0
        %1687 = vmatpush1.bf16.msra.mxu0 0
        %1688 = vmatprep.subr.bf16.mxu0 0
        %1689 = vmatpush1.bf16.msra.mxu0 0
        %1690 = vmatprep.subr.bf16.mxu0 0
        %1691 = vmatpush1.bf16.msra.mxu0 0
        %1692 = vmatprep.subr.bf16.mxu0 0
        %1693 = vmatpush1.bf16.msra.mxu0 0
        %1694 = vmatprep.subr.bf16.mxu0 0
        %1695 = vmatpush1.bf16.msra.mxu0 0
        %1696 = vmatprep.subr.bf16.mxu0 0
        %1697 = vmatpush1.bf16.msra.mxu0 0
        %1698 = vmatprep.subr.bf16.mxu0 0
        %1699 = vmatpush1.bf16.msra.mxu0 0
        %1700 = vmatprep.subr.bf16.mxu0 0
        %1701 = vmatpush1.bf16.msra.mxu0 0
        %1702 = vmatprep.subr.bf16.mxu0 0
        %1703 = vmatpush1.bf16.msra.mxu0 0
        %1704 = vmatprep.mubr.bf16.mxu0 0
        %1705 = vmatmul.mubr.bf16.gmra.mrb[0].mxu0 %v671
        %v1706 = vpop.f32.mrb[0].mxu0
        %v1707 = vadd.f32 0.0, %v1706
        %v1708 = vpop.f32.mrb[0].mxu0
        %v1709 = vadd.f32 0.0, %v1708
        %v1710 = vpop.f32.mrb[0].mxu0
        %v1711 = vpop.f32.mrb[0].mxu0
        %1712 = vdwg.mxu0
        %1713 = vmatprep.subr.bf16.mxu0 %v801
        %1714 = vmatpush1.bf16.msra.mxu0 %v798
        %1715 = vmatprep.subr.bf16.mxu0 0
        %1716 = vmatpush1.bf16.msra.mxu0 0
        %1717 = vmatprep.subr.bf16.mxu0 0
        %1718 = vmatpush1.bf16.msra.mxu0 0
        %1719 = vmatprep.subr.bf16.mxu0 0
        %1720 = vmatpush1.bf16.msra.mxu0 0
        %1721 = vmatprep.subr.bf16.mxu0 0
        %1722 = vmatpush1.bf16.msra.mxu0 0
        %1723 = vmatprep.subr.bf16.mxu0 0
        %1724 = vmatpush1.bf16.msra.mxu0 0
        %1725 = vmatprep.subr.bf16.mxu0 0
        %1726 = vmatpush1.bf16.msra.mxu0 0
        %1727 = vmatprep.subr.bf16.mxu0 0
        %1728 = vmatpush1.bf16.msra.mxu0 0
        %1729 = vmatprep.subr.bf16.mxu0 0
        %1730 = vmatpush1.bf16.msra.mxu0 0
        %1731 = vmatprep.subr.bf16.mxu0 0
        %1732 = vmatpush1.bf16.msra.mxu0 0
        %1733 = vmatprep.subr.bf16.mxu0 0
        %1734 = vmatpush1.bf16.msra.mxu0 0
        %1735 = vmatprep.subr.bf16.mxu0 0
        %1736 = vmatpush1.bf16.msra.mxu0 0
        %1737 = vmatprep.subr.bf16.mxu0 0
        %1738 = vmatpush1.bf16.msra.mxu0 0
        %1739 = vmatprep.subr.bf16.mxu0 0
        %1740 = vmatpush1.bf16.msra.mxu0 0
        %1741 = vmatprep.subr.bf16.mxu0 0
        %1742 = vmatpush1.bf16.msra.mxu0 0
        %1743 = vmatprep.subr.bf16.mxu0 0
        %1744 = vmatpush1.bf16.msra.mxu0 0
        %1745 = vmatprep.mubr.bf16.mxu0 0
        %1746 = vmatmul.mubr.bf16.gmra.mrb[0].mxu0 %v671
        %v1747 = vpop.f32.mrb[0].mxu0
        %v1748 = vadd.f32 0.0, %v1747
        %v1749 = vpop.f32.mrb[0].mxu0
        %v1750 = vadd.f32 0.0, %v1749
        %v1751 = vpop.f32.mrb[0].mxu0
        %v1752 = vpop.f32.mrb[0].mxu0
        %1753 = vdwg.mxu0
        %1754 = vmatprep.subr.bf16.mxu0 %v807
        %1755 = vmatpush1.bf16.msra.mxu0 %v804
        %1756 = vmatprep.subr.bf16.mxu0 0
        %1757 = vmatpush1.bf16.msra.mxu0 0
        %1758 = vmatprep.subr.bf16.mxu0 0
        %1759 = vmatpush1.bf16.msra.mxu0 0
        %1760 = vmatprep.subr.bf16.mxu0 0
        %1761 = vmatpush1.bf16.msra.mxu0 0
        %1762 = vmatprep.subr.bf16.mxu0 0
        %1763 = vmatpush1.bf16.msra.mxu0 0
        %1764 = vmatprep.subr.bf16.mxu0 0
        %1765 = vmatpush1.bf16.msra.mxu0 0
        %1766 = vmatprep.subr.bf16.mxu0 0
        %1767 = vmatpush1.bf16.msra.mxu0 0
        %1768 = vmatprep.subr.bf16.mxu0 0
        %1769 = vmatpush1.bf16.msra.mxu0 0
        %1770 = vmatprep.subr.bf16.mxu0 0
        %1771 = vmatpush1.bf16.msra.mxu0 0
        %1772 = vmatprep.subr.bf16.mxu0 0
        %1773 = vmatpush1.bf16.msra.mxu0 0
        %1774 = vmatprep.subr.bf16.mxu0 0
        %1775 = vmatpush1.bf16.msra.mxu0 0
        %1776 = vmatprep.subr.bf16.mxu0 0
        %1777 = vmatpush1.bf16.msra.mxu0 0
        %1778 = vmatprep.subr.bf16.mxu0 0
        %1779 = vmatpush1.bf16.msra.mxu0 0
        %1780 = vmatprep.subr.bf16.mxu0 0
        %1781 = vmatpush1.bf16.msra.mxu0 0
        %1782 = vmatprep.subr.bf16.mxu0 0
        %1783 = vmatpush1.bf16.msra.mxu0 0
        %1784 = vmatprep.subr.bf16.mxu0 0
        %1785 = vmatpush1.bf16.msra.mxu0 0
        %1786 = vmatprep.mubr.bf16.mxu0 0
        %1787 = vmatmul.mubr.bf16.gmra.mrb[0].mxu0 %v671
        %v1788 = vpop.f32.mrb[0].mxu0
        %v1789 = vadd.f32 0.0, %v1788
        %v1790 = vpop.f32.mrb[0].mxu0
        %v1791 = vadd.f32 0.0, %v1790
        %v1792 = vpop.f32.mrb[0].mxu0
        %v1793 = vpop.f32.mrb[0].mxu0
        %1794 = vdwg.mxu0
        %1795 = vmatprep.subr.bf16.mxu0 %v813
        %1796 = vmatpush1.bf16.msra.mxu0 %v810
        %1797 = vmatprep.subr.bf16.mxu0 0
        %1798 = vmatpush1.bf16.msra.mxu0 0
        %1799 = vmatprep.subr.bf16.mxu0 0
        %1800 = vmatpush1.bf16.msra.mxu0 0
        %1801 = vmatprep.subr.bf16.mxu0 0
        %1802 = vmatpush1.bf16.msra.mxu0 0
        %1803 = vmatprep.subr.bf16.mxu0 0
        %1804 = vmatpush1.bf16.msra.mxu0 0
        %1805 = vmatprep.subr.bf16.mxu0 0
        %1806 = vmatpush1.bf16.msra.mxu0 0
        %1807 = vmatprep.subr.bf16.mxu0 0
        %1808 = vmatpush1.bf16.msra.mxu0 0
        %1809 = vmatprep.subr.bf16.mxu0 0
        %1810 = vmatpush1.bf16.msra.mxu0 0
        %1811 = vmatprep.subr.bf16.mxu0 0
        %1812 = vmatpush1.bf16.msra.mxu0 0
        %1813 = vmatprep.subr.bf16.mxu0 0
        %1814 = vmatpush1.bf16.msra.mxu0 0
        %1815 = vmatprep.subr.bf16.mxu0 0
        %1816 = vmatpush1.bf16.msra.mxu0 0
        %1817 = vmatprep.subr.bf16.mxu0 0
        %1818 = vmatpush1.bf16.msra.mxu0 0
        %1819 = vmatprep.subr.bf16.mxu0 0
        %1820 = vmatpush1.bf16.msra.mxu0 0
        %1821 = vmatprep.subr.bf16.mxu0 0
        %1822 = vmatpush1.bf16.msra.mxu0 0
        %1823 = vmatprep.subr.bf16.mxu0 0
        %1824 = vmatpush1.bf16.msra.mxu0 0
        %1825 = vmatprep.subr.bf16.mxu0 0
        %1826 = vmatpush1.bf16.msra.mxu0 0
        %1827 = vmatprep.mubr.bf16.mxu0 0
        %1828 = vmatmul.mubr.bf16.gmra.mrb[0].mxu0 %v671
        %v1829 = vpop.f32.mrb[0].mxu0
        %v1830 = vadd.f32 0.0, %v1829
        %v1831 = vpop.f32.mrb[0].mxu0
        %v1832 = vadd.f32 0.0, %v1831
        %v1833 = vpop.f32.mrb[0].mxu0
        %v1834 = vpop.f32.mrb[0].mxu0
        %1835 = vdwg.mxu0
        %1836 = vmatprep.subr.bf16.mxu0 %v819
        %1837 = vmatpush1.bf16.msra.mxu0 %v816
        %1838 = vmatprep.subr.bf16.mxu0 0
        %1839 = vmatpush1.bf16.msra.mxu0 0
        %1840 = vmatprep.subr.bf16.mxu0 0
        %1841 = vmatpush1.bf16.msra.mxu0 0
        %1842 = vmatprep.subr.bf16.mxu0 0
        %1843 = vmatpush1.bf16.msra.mxu0 0
        %1844 = vmatprep.subr.bf16.mxu0 0
        %1845 = vmatpush1.bf16.msra.mxu0 0
        %1846 = vmatprep.subr.bf16.mxu0 0
        %1847 = vmatpush1.bf16.msra.mxu0 0
        %1848 = vmatprep.subr.bf16.mxu0 0
        %1849 = vmatpush1.bf16.msra.mxu0 0
        %1850 = vmatprep.subr.bf16.mxu0 0
        %1851 = vmatpush1.bf16.msra.mxu0 0
        %1852 = vmatprep.subr.bf16.mxu0 0
        %1853 = vmatpush1.bf16.msra.mxu0 0
        %1854 = vmatprep.subr.bf16.mxu0 0
        %1855 = vmatpush1.bf16.msra.mxu0 0
        %1856 = vmatprep.subr.bf16.mxu0 0
        %1857 = vmatpush1.bf16.msra.mxu0 0
        %1858 = vmatprep.subr.bf16.mxu0 0
        %1859 = vmatpush1.bf16.msra.mxu0 0
        %1860 = vmatprep.subr.bf16.mxu0 0
        %1861 = vmatpush1.bf16.msra.mxu0 0
        %1862 = vmatprep.subr.bf16.mxu0 0
        %1863 = vmatpush1.bf16.msra.mxu0 0
        %1864 = vmatprep.subr.bf16.mxu0 0
        %1865 = vmatpush1.bf16.msra.mxu0 0
        %1866 = vmatprep.subr.bf16.mxu0 0
        %1867 = vmatpush1.bf16.msra.mxu0 0
        %1868 = vmatprep.mubr.bf16.mxu0 0
        %1869 = vmatmul.mubr.bf16.gmra.mrb[0].mxu0 %v671
        %v1870 = vpop.f32.mrb[0].mxu0
        %v1871 = vadd.f32 0.0, %v1870
        %v1872 = vpop.f32.mrb[0].mxu0
        %v1873 = vadd.f32 0.0, %v1872
        %v1874 = vpop.f32.mrb[0].mxu0
        %v1875 = vpop.f32.mrb[0].mxu0
        %1876 = vdwg.mxu0
        %1877 = vmatprep.subr.bf16.mxu0 %v825
        %1878 = vmatpush1.bf16.msra.mxu0 %v822
        %1879 = vmatprep.subr.bf16.mxu0 0
        %1880 = vmatpush1.bf16.msra.mxu0 0
        %1881 = vmatprep.subr.bf16.mxu0 0
        %1882 = vmatpush1.bf16.msra.mxu0 0
        %1883 = vmatprep.subr.bf16.mxu0 0
        %1884 = vmatpush1.bf16.msra.mxu0 0
        %1885 = vmatprep.subr.bf16.mxu0 0
        %1886 = vmatpush1.bf16.msra.mxu0 0
        %1887 = vmatprep.subr.bf16.mxu0 0
        %1888 = vmatpush1.bf16.msra.mxu0 0
        %1889 = vmatprep.subr.bf16.mxu0 0
        %1890 = vmatpush1.bf16.msra.mxu0 0
        %1891 = vmatprep.subr.bf16.mxu0 0
        %1892 = vmatpush1.bf16.msra.mxu0 0
        %1893 = vmatprep.subr.bf16.mxu0 0
        %1894 = vmatpush1.bf16.msra.mxu0 0
        %1895 = vmatprep.subr.bf16.mxu0 0
        %1896 = vmatpush1.bf16.msra.mxu0 0
        %1897 = vmatprep.subr.bf16.mxu0 0
        %1898 = vmatpush1.bf16.msra.mxu0 0
        %1899 = vmatprep.subr.bf16.mxu0 0
        %1900 = vmatpush1.bf16.msra.mxu0 0
        %1901 = vmatprep.subr.bf16.mxu0 0
        %1902 = vmatpush1.bf16.msra.mxu0 0
        %1903 = vmatprep.subr.bf16.mxu0 0
        %1904 = vmatpush1.bf16.msra.mxu0 0
        %1905 = vmatprep.subr.bf16.mxu0 0
        %1906 = vmatpush1.bf16.msra.mxu0 0
        %1907 = vmatprep.subr.bf16.mxu0 0
        %1908 = vmatpush1.bf16.msra.mxu0 0
        %1909 = vmatprep.mubr.bf16.mxu0 0
        %1910 = vmatmul.mubr.bf16.gmra.mrb[0].mxu0 %v671
        %v1911 = vpop.f32.mrb[0].mxu0
        %v1912 = vadd.f32 0.0, %v1911
        %v1913 = vpop.f32.mrb[0].mxu0
        %v1914 = vadd.f32 0.0, %v1913
        %v1915 = vpop.f32.mrb[0].mxu0
        %v1916 = vpop.f32.mrb[0].mxu0
        %1917 = vdwg.mxu0
        %1918 = vmatprep.subr.bf16.mxu0 %v831
        %1919 = vmatpush1.bf16.msra.mxu0 %v828
        %1920 = vmatprep.subr.bf16.mxu0 0
        %1921 = vmatpush1.bf16.msra.mxu0 0
        %1922 = vmatprep.subr.bf16.mxu0 0
        %1923 = vmatpush1.bf16.msra.mxu0 0
        %1924 = vmatprep.subr.bf16.mxu0 0
        %1925 = vmatpush1.bf16.msra.mxu0 0
        %1926 = vmatprep.subr.bf16.mxu0 0
        %1927 = vmatpush1.bf16.msra.mxu0 0
        %1928 = vmatprep.subr.bf16.mxu0 0
        %1929 = vmatpush1.bf16.msra.mxu0 0
        %1930 = vmatprep.subr.bf16.mxu0 0
        %1931 = vmatpush1.bf16.msra.mxu0 0
        %1932 = vmatprep.subr.bf16.mxu0 0
        %1933 = vmatpush1.bf16.msra.mxu0 0
        %1934 = vmatprep.subr.bf16.mxu0 0
        %1935 = vmatpush1.bf16.msra.mxu0 0
        %1936 = vmatprep.subr.bf16.mxu0 0
        %1937 = vmatpush1.bf16.msra.mxu0 0
        %1938 = vmatprep.subr.bf16.mxu0 0
        %1939 = vmatpush1.bf16.msra.mxu0 0
        %1940 = vmatprep.subr.bf16.mxu0 0
        %1941 = vmatpush1.bf16.msra.mxu0 0
        %1942 = vmatprep.subr.bf16.mxu0 0
        %1943 = vmatpush1.bf16.msra.mxu0 0
        %1944 = vmatprep.subr.bf16.mxu0 0
        %1945 = vmatpush1.bf16.msra.mxu0 0
        %1946 = vmatprep.subr.bf16.mxu0 0
        %1947 = vmatpush1.bf16.msra.mxu0 0
        %1948 = vmatprep.subr.bf16.mxu0 0
        %1949 = vmatpush1.bf16.msra.mxu0 0
        %1950 = vmatprep.mubr.bf16.mxu0 0
        %1951 = vmatmul.mubr.bf16.gmra.mrb[0].mxu0 %v671
        %v1952 = vpop.f32.mrb[0].mxu0
        %v1953 = vadd.f32 0.0, %v1952
        %v1954 = vpop.f32.mrb[0].mxu0
        %v1955 = vadd.f32 0.0, %v1954
        %v1956 = vpop.f32.mrb[0].mxu0
        %v1957 = vpop.f32.mrb[0].mxu0
        %1958 = vdwg.mxu0
        %1959 = vmatprep.subr.bf16.mxu0 %v837
        %1960 = vmatpush1.bf16.msra.mxu0 %v834
        %1961 = vmatprep.subr.bf16.mxu0 0
        %1962 = vmatpush1.bf16.msra.mxu0 0
        %1963 = vmatprep.subr.bf16.mxu0 0
        %1964 = vmatpush1.bf16.msra.mxu0 0
        %1965 = vmatprep.subr.bf16.mxu0 0
        %1966 = vmatpush1.bf16.msra.mxu0 0
        %1967 = vmatprep.subr.bf16.mxu0 0
        %1968 = vmatpush1.bf16.msra.mxu0 0
        %1969 = vmatprep.subr.bf16.mxu0 0
        %1970 = vmatpush1.bf16.msra.mxu0 0
        %1971 = vmatprep.subr.bf16.mxu0 0
        %1972 = vmatpush1.bf16.msra.mxu0 0
        %1973 = vmatprep.subr.bf16.mxu0 0
        %1974 = vmatpush1.bf16.msra.mxu0 0
        %1975 = vmatprep.subr.bf16.mxu0 0
        %1976 = vmatpush1.bf16.msra.mxu0 0
        %1977 = vmatprep.subr.bf16.mxu0 0
        %1978 = vmatpush1.bf16.msra.mxu0 0
        %1979 = vmatprep.subr.bf16.mxu0 0
        %1980 = vmatpush1.bf16.msra.mxu0 0
        %1981 = vmatprep.subr.bf16.mxu0 0
        %1982 = vmatpush1.bf16.msra.mxu0 0
        %1983 = vmatprep.subr.bf16.mxu0 0
        %1984 = vmatpush1.bf16.msra.mxu0 0
        %1985 = vmatprep.subr.bf16.mxu0 0
        %1986 = vmatpush1.bf16.msra.mxu0 0
        %1987 = vmatprep.subr.bf16.mxu0 0
        %1988 = vmatpush1.bf16.msra.mxu0 0
        %1989 = vmatprep.subr.bf16.mxu0 0
        %1990 = vmatpush1.bf16.msra.mxu0 0
        %1991 = vmatprep.mubr.bf16.mxu0 0
        %1992 = vmatmul.mubr.bf16.gmra.mrb[0].mxu0 %v671
        %v1993 = vpop.f32.mrb[0].mxu0
        %v1994 = vadd.f32 0.0, %v1993
        %v1995 = vpop.f32.mrb[0].mxu0
        %v1996 = vadd.f32 0.0, %v1995
        %v1997 = vpop.f32.mrb[0].mxu0
        %v1998 = vpop.f32.mrb[0].mxu0
        %1999 = vdwg.mxu0
        %2000 = vmatprep.subr.bf16.mxu0 %v843
        %2001 = vmatpush1.bf16.msra.mxu0 %v840
        %2002 = vmatprep.subr.bf16.mxu0 0
        %2003 = vmatpush1.bf16.msra.mxu0 0
        %2004 = vmatprep.subr.bf16.mxu0 0
        %2005 = vmatpush1.bf16.msra.mxu0 0
        %2006 = vmatprep.subr.bf16.mxu0 0
        %2007 = vmatpush1.bf16.msra.mxu0 0
        %2008 = vmatprep.subr.bf16.mxu0 0
        %2009 = vmatpush1.bf16.msra.mxu0 0
        %2010 = vmatprep.subr.bf16.mxu0 0
        %2011 = vmatpush1.bf16.msra.mxu0 0
        %2012 = vmatprep.subr.bf16.mxu0 0
        %2013 = vmatpush1.bf16.msra.mxu0 0
        %2014 = vmatprep.subr.bf16.mxu0 0
        %2015 = vmatpush1.bf16.msra.mxu0 0
        %2016 = vmatprep.subr.bf16.mxu0 0
        %2017 = vmatpush1.bf16.msra.mxu0 0
        %2018 = vmatprep.subr.bf16.mxu0 0
        %2019 = vmatpush1.bf16.msra.mxu0 0
        %2020 = vmatprep.subr.bf16.mxu0 0
        %2021 = vmatpush1.bf16.msra.mxu0 0
        %2022 = vmatprep.subr.bf16.mxu0 0
        %2023 = vmatpush1.bf16.msra.mxu0 0
        %2024 = vmatprep.subr.bf16.mxu0 0
        %2025 = vmatpush1.bf16.msra.mxu0 0
        %2026 = vmatprep.subr.bf16.mxu0 0
        %2027 = vmatpush1.bf16.msra.mxu0 0
        %2028 = vmatprep.subr.bf16.mxu0 0
        %2029 = vmatpush1.bf16.msra.mxu0 0
        %2030 = vmatprep.subr.bf16.mxu0 0
        %2031 = vmatpush1.bf16.msra.mxu0 0
        %2032 = vmatprep.mubr.bf16.mxu0 0
        %2033 = vmatmul.mubr.bf16.gmra.mrb[0].mxu0 %v671
        %v2034 = vpop.f32.mrb[0].mxu0
        %v2035 = vadd.f32 0.0, %v2034
        %v2036 = vpop.f32.mrb[0].mxu0
        %v2037 = vadd.f32 0.0, %v2036
        %v2038 = vpop.f32.mrb[0].mxu0
        %v2039 = vpop.f32.mrb[0].mxu0
        %2040 = vdwg.mxu0
        %2041 = vmatprep.subr.bf16.mxu0 %v849
        %2042 = vmatpush1.bf16.msra.mxu0 %v846
        %2043 = vmatprep.subr.bf16.mxu0 0
        %2044 = vmatpush1.bf16.msra.mxu0 0
        %2045 = vmatprep.subr.bf16.mxu0 0
        %2046 = vmatpush1.bf16.msra.mxu0 0
        %2047 = vmatprep.subr.bf16.mxu0 0
        %2048 = vmatpush1.bf16.msra.mxu0 0
        %2049 = vmatprep.subr.bf16.mxu0 0
        %2050 = vmatpush1.bf16.msra.mxu0 0
        %2051 = vmatprep.subr.bf16.mxu0 0
        %2052 = vmatpush1.bf16.msra.mxu0 0
        %2053 = vmatprep.subr.bf16.mxu0 0
        %2054 = vmatpush1.bf16.msra.mxu0 0
        %2055 = vmatprep.subr.bf16.mxu0 0
        %2056 = vmatpush1.bf16.msra.mxu0 0
        %2057 = vmatprep.subr.bf16.mxu0 0
        %2058 = vmatpush1.bf16.msra.mxu0 0
        %2059 = vmatprep.subr.bf16.mxu0 0
        %2060 = vmatpush1.bf16.msra.mxu0 0
        %2061 = vmatprep.subr.bf16.mxu0 0
        %2062 = vmatpush1.bf16.msra.mxu0 0
        %2063 = vmatprep.subr.bf16.mxu0 0
        %2064 = vmatpush1.bf16.msra.mxu0 0
        %2065 = vmatprep.subr.bf16.mxu0 0
        %2066 = vmatpush1.bf16.msra.mxu0 0
        %2067 = vmatprep.subr.bf16.mxu0 0
        %2068 = vmatpush1.bf16.msra.mxu0 0
        %2069 = vmatprep.subr.bf16.mxu0 0
        %2070 = vmatpush1.bf16.msra.mxu0 0
        %2071 = vmatprep.subr.bf16.mxu0 0
        %2072 = vmatpush1.bf16.msra.mxu0 0
        %2073 = vmatprep.mubr.bf16.mxu0 0
        %2074 = vmatmul.mubr.bf16.gmra.mrb[0].mxu0 %v671
        %v2075 = vpop.f32.mrb[0].mxu0
        %v2076 = vadd.f32 0.0, %v2075
        %v2077 = vpop.f32.mrb[0].mxu0
        %v2078 = vadd.f32 0.0, %v2077
        %v2079 = vpop.f32.mrb[0].mxu0
        %v2080 = vpop.f32.mrb[0].mxu0
        %2081 = vdwg.mxu0
        %2082 = vmatprep.subr.bf16.mxu0 %v855
        %2083 = vmatpush1.bf16.msra.mxu0 %v852
        %2084 = vmatprep.subr.bf16.mxu0 0
        %2085 = vmatpush1.bf16.msra.mxu0 0
        %2086 = vmatprep.subr.bf16.mxu0 0
        %2087 = vmatpush1.bf16.msra.mxu0 0
        %2088 = vmatprep.subr.bf16.mxu0 0
        %2089 = vmatpush1.bf16.msra.mxu0 0
        %2090 = vmatprep.subr.bf16.mxu0 0
        %2091 = vmatpush1.bf16.msra.mxu0 0
        %2092 = vmatprep.subr.bf16.mxu0 0
        %2093 = vmatpush1.bf16.msra.mxu0 0
        %2094 = vmatprep.subr.bf16.mxu0 0
        %2095 = vmatpush1.bf16.msra.mxu0 0
        %2096 = vmatprep.subr.bf16.mxu0 0
        %2097 = vmatpush1.bf16.msra.mxu0 0
        %2098 = vmatprep.subr.bf16.mxu0 0
        %2099 = vmatpush1.bf16.msra.mxu0 0
        %2100 = vmatprep.subr.bf16.mxu0 0
        %2101 = vmatpush1.bf16.msra.mxu0 0
        %2102 = vmatprep.subr.bf16.mxu0 0
        %2103 = vmatpush1.bf16.msra.mxu0 0
        %2104 = vmatprep.subr.bf16.mxu0 0
        %2105 = vmatpush1.bf16.msra.mxu0 0
        %2106 = vmatprep.subr.bf16.mxu0 0
        %2107 = vmatpush1.bf16.msra.mxu0 0
        %2108 = vmatprep.subr.bf16.mxu0 0
        %2109 = vmatpush1.bf16.msra.mxu0 0
        %2110 = vmatprep.subr.bf16.mxu0 0
        %2111 = vmatpush1.bf16.msra.mxu0 0
        %2112 = vmatprep.subr.bf16.mxu0 0
        %2113 = vmatpush1.bf16.msra.mxu0 0
        %2114 = vmatprep.mubr.bf16.mxu0 0
        %2115 = vmatmul.mubr.bf16.gmra.mrb[0].mxu0 %v671
        %v2116 = vpop.f32.mrb[0].mxu0
        %v2117 = vadd.f32 0.0, %v2116
        %v2118 = vpop.f32.mrb[0].mxu0
        %v2119 = vadd.f32 0.0, %v2118
        %v2120 = vpop.f32.mrb[0].mxu0
        %v2121 = vpop.f32.mrb[0].mxu0
        %2122 = vdwg.mxu0
        %2123 = vmatprep.subr.bf16.mxu0 %v861
        %2124 = vmatpush1.bf16.msra.mxu0 %v858
        %2125 = vmatprep.subr.bf16.mxu0 0
        %2126 = vmatpush1.bf16.msra.mxu0 0
        %2127 = vmatprep.subr.bf16.mxu0 0
        %2128 = vmatpush1.bf16.msra.mxu0 0
        %2129 = vmatprep.subr.bf16.mxu0 0
        %2130 = vmatpush1.bf16.msra.mxu0 0
        %2131 = vmatprep.subr.bf16.mxu0 0
        %2132 = vmatpush1.bf16.msra.mxu0 0
        %2133 = vmatprep.subr.bf16.mxu0 0
        %2134 = vmatpush1.bf16.msra.mxu0 0
        %2135 = vmatprep.subr.bf16.mxu0 0
        %2136 = vmatpush1.bf16.msra.mxu0 0
        %2137 = vmatprep.subr.bf16.mxu0 0
        %2138 = vmatpush1.bf16.msra.mxu0 0
        %2139 = vmatprep.subr.bf16.mxu0 0
        %2140 = vmatpush1.bf16.msra.mxu0 0
        %2141 = vmatprep.subr.bf16.mxu0 0
        %2142 = vmatpush1.bf16.msra.mxu0 0
        %2143 = vmatprep.subr.bf16.mxu0 0
        %2144 = vmatpush1.bf16.msra.mxu0 0
        %2145 = vmatprep.subr.bf16.mxu0 0
        %2146 = vmatpush1.bf16.msra.mxu0 0
        %2147 = vmatprep.subr.bf16.mxu0 0
        %2148 = vmatpush1.bf16.msra.mxu0 0
        %2149 = vmatprep.subr.bf16.mxu0 0
        %2150 = vmatpush1.bf16.msra.mxu0 0
        %2151 = vmatprep.subr.bf16.mxu0 0
        %2152 = vmatpush1.bf16.msra.mxu0 0
        %2153 = vmatprep.subr.bf16.mxu0 0
        %2154 = vmatpush1.bf16.msra.mxu0 0
        %2155 = vmatprep.mubr.bf16.mxu0 0
        %2156 = vmatmul.mubr.bf16.gmra.mrb[0].mxu0 %v671
        %v2157 = vpop.f32.mrb[0].mxu0
        %v2158 = vadd.f32 0.0, %v2157
        %v2159 = vpop.f32.mrb[0].mxu0
        %v2160 = vadd.f32 0.0, %v2159
        %v2161 = vpop.f32.mrb[0].mxu0
        %v2162 = vpop.f32.mrb[0].mxu0
        %2163 = vdwg.mxu0
        %2164 = vmatprep.subr.bf16.mxu0 %v867
        %2165 = vmatpush1.bf16.msra.mxu0 %v864
        %2166 = vmatprep.subr.bf16.mxu0 0
        %2167 = vmatpush1.bf16.msra.mxu0 0
        %2168 = vmatprep.subr.bf16.mxu0 0
        %2169 = vmatpush1.bf16.msra.mxu0 0
        %2170 = vmatprep.subr.bf16.mxu0 0
        %2171 = vmatpush1.bf16.msra.mxu0 0
        %2172 = vmatprep.subr.bf16.mxu0 0
        %2173 = vmatpush1.bf16.msra.mxu0 0
        %2174 = vmatprep.subr.bf16.mxu0 0
        %2175 = vmatpush1.bf16.msra.mxu0 0
        %2176 = vmatprep.subr.bf16.mxu0 0
        %2177 = vmatpush1.bf16.msra.mxu0 0
        %2178 = vmatprep.subr.bf16.mxu0 0
        %2179 = vmatpush1.bf16.msra.mxu0 0
        %2180 = vmatprep.subr.bf16.mxu0 0
        %2181 = vmatpush1.bf16.msra.mxu0 0
        %2182 = vmatprep.subr.bf16.mxu0 0
        %2183 = vmatpush1.bf16.msra.mxu0 0
        %2184 = vmatprep.subr.bf16.mxu0 0
        %2185 = vmatpush1.bf16.msra.mxu0 0
        %2186 = vmatprep.subr.bf16.mxu0 0
        %2187 = vmatpush1.bf16.msra.mxu0 0
        %2188 = vmatprep.subr.bf16.mxu0 0
        %2189 = vmatpush1.bf16.msra.mxu0 0
        %2190 = vmatprep.subr.bf16.mxu0 0
        %2191 = vmatpush1.bf16.msra.mxu0 0
        %2192 = vmatprep.subr.bf16.mxu0 0
        %2193 = vmatpush1.bf16.msra.mxu0 0
        %2194 = vmatprep.subr.bf16.mxu0 0
        %2195 = vmatpush1.bf16.msra.mxu0 0
        %2196 = vmatprep.mubr.bf16.mxu0 0
        %2197 = vmatmul.mubr.bf16.gmra.mrb[0].mxu0 %v671
        %v2198 = vpop.f32.mrb[0].mxu0
        %v2199 = vadd.f32 0.0, %v2198
        %v2200 = vpop.f32.mrb[0].mxu0
        %v2201 = vadd.f32 0.0, %v2200
        %v2202 = vpop.f32.mrb[0].mxu0
        %v2203 = vpop.f32.mrb[0].mxu0
        %2204 = vdwg.mxu0
        %2205 = vmatprep.subr.bf16.mxu0 %v873
        %2206 = vmatpush1.bf16.msra.mxu0 %v870
        %2207 = vmatprep.subr.bf16.mxu0 0
        %2208 = vmatpush1.bf16.msra.mxu0 0
        %2209 = vmatprep.subr.bf16.mxu0 0
        %2210 = vmatpush1.bf16.msra.mxu0 0
        %2211 = vmatprep.subr.bf16.mxu0 0
        %2212 = vmatpush1.bf16.msra.mxu0 0
        %2213 = vmatprep.subr.bf16.mxu0 0
        %2214 = vmatpush1.bf16.msra.mxu0 0
        %2215 = vmatprep.subr.bf16.mxu0 0
        %2216 = vmatpush1.bf16.msra.mxu0 0
        %2217 = vmatprep.subr.bf16.mxu0 0
        %2218 = vmatpush1.bf16.msra.mxu0 0
        %2219 = vmatprep.subr.bf16.mxu0 0
        %2220 = vmatpush1.bf16.msra.mxu0 0
        %2221 = vmatprep.subr.bf16.mxu0 0
        %2222 = vmatpush1.bf16.msra.mxu0 0
        %2223 = vmatprep.subr.bf16.mxu0 0
        %2224 = vmatpush1.bf16.msra.mxu0 0
        %2225 = vmatprep.subr.bf16.mxu0 0
        %2226 = vmatpush1.bf16.msra.mxu0 0
        %2227 = vmatprep.subr.bf16.mxu0 0
        %2228 = vmatpush1.bf16.msra.mxu0 0
        %2229 = vmatprep.subr.bf16.mxu0 0
        %2230 = vmatpush1.bf16.msra.mxu0 0
        %2231 = vmatprep.subr.bf16.mxu0 0
        %2232 = vmatpush1.bf16.msra.mxu0 0
        %2233 = vmatprep.subr.bf16.mxu0 0
        %2234 = vmatpush1.bf16.msra.mxu0 0
        %2235 = vmatprep.subr.bf16.mxu0 0
        %2236 = vmatpush1.bf16.msra.mxu0 0
        %2237 = vmatprep.mubr.bf16.mxu0 0
        %2238 = vmatmul.mubr.bf16.gmra.mrb[0].mxu0 %v671
        %v2239 = vpop.f32.mrb[0].mxu0
        %v2240 = vadd.f32 0.0, %v2239
        %v2241 = vpop.f32.mrb[0].mxu0
        %v2242 = vadd.f32 0.0, %v2241
        %v2243 = vpop.f32.mrb[0].mxu0
        %v2244 = vpop.f32.mrb[0].mxu0
        %2245 = vdwg.mxu0
        %2246 = vmatprep.subr.bf16.mxu0 %v879
        %2247 = vmatpush1.bf16.msra.mxu0 %v876
        %2248 = vmatprep.subr.bf16.mxu0 0
        %2249 = vmatpush1.bf16.msra.mxu0 0
        %2250 = vmatprep.subr.bf16.mxu0 0
        %2251 = vmatpush1.bf16.msra.mxu0 0
        %2252 = vmatprep.subr.bf16.mxu0 0
        %2253 = vmatpush1.bf16.msra.mxu0 0
        %2254 = vmatprep.subr.bf16.mxu0 0
        %2255 = vmatpush1.bf16.msra.mxu0 0
        %2256 = vmatprep.subr.bf16.mxu0 0
        %2257 = vmatpush1.bf16.msra.mxu0 0
        %2258 = vmatprep.subr.bf16.mxu0 0
        %2259 = vmatpush1.bf16.msra.mxu0 0
        %2260 = vmatprep.subr.bf16.mxu0 0
        %2261 = vmatpush1.bf16.msra.mxu0 0
        %2262 = vmatprep.subr.bf16.mxu0 0
        %2263 = vmatpush1.bf16.msra.mxu0 0
        %2264 = vmatprep.subr.bf16.mxu0 0
        %2265 = vmatpush1.bf16.msra.mxu0 0
        %2266 = vmatprep.subr.bf16.mxu0 0
        %2267 = vmatpush1.bf16.msra.mxu0 0
        %2268 = vmatprep.subr.bf16.mxu0 0
        %2269 = vmatpush1.bf16.msra.mxu0 0
        %2270 = vmatprep.subr.bf16.mxu0 0
        %2271 = vmatpush1.bf16.msra.mxu0 0
        %2272 = vmatprep.subr.bf16.mxu0 0
        %2273 = vmatpush1.bf16.msra.mxu0 0
        %2274 = vmatprep.subr.bf16.mxu0 0
        %2275 = vmatpush1.bf16.msra.mxu0 0
        %2276 = vmatprep.subr.bf16.mxu0 0
        %2277 = vmatpush1.bf16.msra.mxu0 0
        %2278 = vmatprep.mubr.bf16.mxu0 0
        %2279 = vmatmul.mubr.bf16.gmra.mrb[0].mxu0 %v671
        %v2280 = vpop.f32.mrb[0].mxu0
        %v2281 = vadd.f32 0.0, %v2280
        %v2282 = vpop.f32.mrb[0].mxu0
        %v2283 = vadd.f32 0.0, %v2282
        %v2284 = vpop.f32.mrb[0].mxu0
        %v2285 = vpop.f32.mrb[0].mxu0
        %2286 = vdwg.mxu0
        %2287 = vmatprep.subr.bf16.mxu0 %v885
        %2288 = vmatpush1.bf16.msra.mxu0 %v882
        %2289 = vmatprep.subr.bf16.mxu0 0
        %2290 = vmatpush1.bf16.msra.mxu0 0
        %2291 = vmatprep.subr.bf16.mxu0 0
        %2292 = vmatpush1.bf16.msra.mxu0 0
        %2293 = vmatprep.subr.bf16.mxu0 0
        %2294 = vmatpush1.bf16.msra.mxu0 0
        %2295 = vmatprep.subr.bf16.mxu0 0
        %2296 = vmatpush1.bf16.msra.mxu0 0
        %2297 = vmatprep.subr.bf16.mxu0 0
        %2298 = vmatpush1.bf16.msra.mxu0 0
        %2299 = vmatprep.subr.bf16.mxu0 0
        %2300 = vmatpush1.bf16.msra.mxu0 0
        %2301 = vmatprep.subr.bf16.mxu0 0
        %2302 = vmatpush1.bf16.msra.mxu0 0
        %2303 = vmatprep.subr.bf16.mxu0 0
        %2304 = vmatpush1.bf16.msra.mxu0 0
        %2305 = vmatprep.subr.bf16.mxu0 0
        %2306 = vmatpush1.bf16.msra.mxu0 0
        %2307 = vmatprep.subr.bf16.mxu0 0
        %2308 = vmatpush1.bf16.msra.mxu0 0
        %2309 = vmatprep.subr.bf16.mxu0 0
        %2310 = vmatpush1.bf16.msra.mxu0 0
        %2311 = vmatprep.subr.bf16.mxu0 0
        %2312 = vmatpush1.bf16.msra.mxu0 0
        %2313 = vmatprep.subr.bf16.mxu0 0
        %2314 = vmatpush1.bf16.msra.mxu0 0
        %2315 = vmatprep.subr.bf16.mxu0 0
        %2316 = vmatpush1.bf16.msra.mxu0 0
        %2317 = vmatprep.subr.bf16.mxu0 0
        %2318 = vmatpush1.bf16.msra.mxu0 0
        %2319 = vmatprep.mubr.bf16.mxu0 0
        %2320 = vmatmul.mubr.bf16.gmra.mrb[0].mxu0 %v671
        %v2321 = vpop.f32.mrb[0].mxu0
        %v2322 = vadd.f32 0.0, %v2321
        %v2323 = vpop.f32.mrb[0].mxu0
        %v2324 = vadd.f32 0.0, %v2323
        %v2325 = vpop.f32.mrb[0].mxu0
        %v2326 = vpop.f32.mrb[0].mxu0
        %2327 = vdwg.mxu0
        %2328 = vmatprep.subr.bf16.mxu0 %v891
        %2329 = vmatpush1.bf16.msra.mxu0 %v888
        %2330 = vmatprep.subr.bf16.mxu0 0
        %2331 = vmatpush1.bf16.msra.mxu0 0
        %2332 = vmatprep.subr.bf16.mxu0 0
        %2333 = vmatpush1.bf16.msra.mxu0 0
        %2334 = vmatprep.subr.bf16.mxu0 0
        %2335 = vmatpush1.bf16.msra.mxu0 0
        %2336 = vmatprep.subr.bf16.mxu0 0
        %2337 = vmatpush1.bf16.msra.mxu0 0
        %2338 = vmatprep.subr.bf16.mxu0 0
        %2339 = vmatpush1.bf16.msra.mxu0 0
        %2340 = vmatprep.subr.bf16.mxu0 0
        %2341 = vmatpush1.bf16.msra.mxu0 0
        %2342 = vmatprep.subr.bf16.mxu0 0
        %2343 = vmatpush1.bf16.msra.mxu0 0
        %2344 = vmatprep.subr.bf16.mxu0 0
        %2345 = vmatpush1.bf16.msra.mxu0 0
        %2346 = vmatprep.subr.bf16.mxu0 0
        %2347 = vmatpush1.bf16.msra.mxu0 0
        %2348 = vmatprep.subr.bf16.mxu0 0
        %2349 = vmatpush1.bf16.msra.mxu0 0
        %2350 = vmatprep.subr.bf16.mxu0 0
        %2351 = vmatpush1.bf16.msra.mxu0 0
        %2352 = vmatprep.subr.bf16.mxu0 0
        %2353 = vmatpush1.bf16.msra.mxu0 0
        %2354 = vmatprep.subr.bf16.mxu0 0
        %2355 = vmatpush1.bf16.msra.mxu0 0
        %2356 = vmatprep.subr.bf16.mxu0 0
        %2357 = vmatpush1.bf16.msra.mxu0 0
        %2358 = vmatprep.subr.bf16.mxu0 0
        %2359 = vmatpush1.bf16.msra.mxu0 0
        %2360 = vmatprep.mubr.bf16.mxu0 0
        %2361 = vmatmul.mubr.bf16.gmra.mrb[0].mxu0 %v671
        %v2362 = vpop.f32.mrb[0].mxu0
        %v2363 = vadd.f32 0.0, %v2362
        %v2364 = vpop.f32.mrb[0].mxu0
        %v2365 = vadd.f32 0.0, %v2364
        %v2366 = vpop.f32.mrb[0].mxu0
        %v2367 = vpop.f32.mrb[0].mxu0
        %2368 = vdwg.mxu0
        %v2369 = vmax.f32 %v928, 0.0
        %v2370 = vmax.f32 %v930, 0.0
        %v2371 = vmax.f32 %v969, 0.0
        %v2372 = vmax.f32 %v971, 0.0
        %v2373 = vmax.f32 %v1010, 0.0
        %v2374 = vmax.f32 %v1012, 0.0
        %v2375 = vmax.f32 %v1051, 0.0
        %v2376 = vmax.f32 %v1053, 0.0
        %v2377 = vmax.f32 %v1092, 0.0
        %v2378 = vmax.f32 %v1094, 0.0
        %v2379 = vmax.f32 %v1133, 0.0
        %v2380 = vmax.f32 %v1135, 0.0
        %v2381 = vmax.f32 %v1174, 0.0
        %v2382 = vmax.f32 %v1176, 0.0
        %v2383 = vmax.f32 %v1215, 0.0
        %v2384 = vmax.f32 %v1217, 0.0
        %v2385 = vmax.f32 %v1256, 0.0
        %v2386 = vmax.f32 %v1258, 0.0
        %v2387 = vmax.f32 %v1297, 0.0
        %v2388 = vmax.f32 %v1299, 0.0
        %v2389 = vmax.f32 %v1338, 0.0
        %v2390 = vmax.f32 %v1340, 0.0
        %v2391 = vmax.f32 %v1379, 0.0
        %v2392 = vmax.f32 %v1381, 0.0
        %v2393 = vmax.f32 %v1420, 0.0
        %v2394 = vmax.f32 %v1422, 0.0
        %v2395 = vmax.f32 %v1461, 0.0
        %v2396 = vmax.f32 %v1463, 0.0
        %v2397 = vmax.f32 %v1502, 0.0
        %v2398 = vmax.f32 %v1504, 0.0
        %v2399 = vmax.f32 %v1543, 0.0
        %v2400 = vmax.f32 %v1545, 0.0
        %v2401 = vmax.f32 %v1584, 0.0
        %v2402 = vmax.f32 %v1586, 0.0
        %v2403 = vmax.f32 %v1625, 0.0
        %v2404 = vmax.f32 %v1627, 0.0
        %v2405 = vmax.f32 %v1666, 0.0
        %v2406 = vmax.f32 %v1668, 0.0
        %v2407 = vmax.f32 %v1707, 0.0
        %v2408 = vmax.f32 %v1709, 0.0
        %v2409 = vmax.f32 %v1748, 0.0
        %v2410 = vmax.f32 %v1750, 0.0
        %v2411 = vmax.f32 %v1789, 0.0
        %v2412 = vmax.f32 %v1791, 0.0
        %v2413 = vmax.f32 %v1830, 0.0
        %v2414 = vmax.f32 %v1832, 0.0
        %v2415 = vmax.f32 %v1871, 0.0
        %v2416 = vmax.f32 %v1873, 0.0
        %v2417 = vmax.f32 %v1912, 0.0
        %v2418 = vmax.f32 %v1914, 0.0
        %v2419 = vmax.f32 %v1953, 0.0
        %v2420 = vmax.f32 %v1955, 0.0
        %v2421 = vmax.f32 %v1994, 0.0
        %v2422 = vmax.f32 %v1996, 0.0
        %v2423 = vmax.f32 %v2035, 0.0
        %v2424 = vmax.f32 %v2037, 0.0
        %v2425 = vmax.f32 %v2076, 0.0
        %v2426 = vmax.f32 %v2078, 0.0
        %v2427 = vmax.f32 %v2117, 0.0
        %v2428 = vmax.f32 %v2119, 0.0
        %v2429 = vmax.f32 %v2158, 0.0
        %v2430 = vmax.f32 %v2160, 0.0
        %v2431 = vmax.f32 %v2199, 0.0
        %v2432 = vmax.f32 %v2201, 0.0
        %v2433 = vmax.f32 %v2240, 0.0
        %v2434 = vmax.f32 %v2242, 0.0
        %v2435 = vmax.f32 %v2281, 0.0
        %v2436 = vmax.f32 %v2283, 0.0
        %v2437 = vmax.f32 %v2322, 0.0
        %v2438 = vmax.f32 %v2324, 0.0
        %v2439 = vmax.f32 %v2363, 0.0
        %v2440 = vmax.f32 %v2365, 0.0
        %v2441 = vmin.f32 %v2369, 1.0
        %v2442 = vmin.f32 %v2370, 1.0
        %v2443 = vmin.f32 %v2371, 1.0
        %v2444 = vmin.f32 %v2372, 1.0
        %v2445 = vmin.f32 %v2373, 1.0
        %v2446 = vmin.f32 %v2374, 1.0
        %v2447 = vmin.f32 %v2375, 1.0
        %v2448 = vmin.f32 %v2376, 1.0
        %v2449 = vmin.f32 %v2377, 1.0
        %v2450 = vmin.f32 %v2378, 1.0
        %v2451 = vmin.f32 %v2379, 1.0
        %v2452 = vmin.f32 %v2380, 1.0
        %v2453 = vmin.f32 %v2381, 1.0
        %v2454 = vmin.f32 %v2382, 1.0
        %v2455 = vmin.f32 %v2383, 1.0
        %v2456 = vmin.f32 %v2384, 1.0
        %v2457 = vmin.f32 %v2385, 1.0
        %v2458 = vmin.f32 %v2386, 1.0
        %v2459 = vmin.f32 %v2387, 1.0
        %v2460 = vmin.f32 %v2388, 1.0
        %v2461 = vmin.f32 %v2389, 1.0
        %v2462 = vmin.f32 %v2390, 1.0
        %v2463 = vmin.f32 %v2391, 1.0
        %v2464 = vmin.f32 %v2392, 1.0
        %v2465 = vmin.f32 %v2393, 1.0
        %v2466 = vmin.f32 %v2394, 1.0
        %v2467 = vmin.f32 %v2395, 1.0
        %v2468 = vmin.f32 %v2396, 1.0
        %v2469 = vmin.f32 %v2397, 1.0
        %v2470 = vmin.f32 %v2398, 1.0
        %v2471 = vmin.f32 %v2399, 1.0
        %v2472 = vmin.f32 %v2400, 1.0
        %v2473 = vmin.f32 %v2401, 1.0
        %v2474 = vmin.f32 %v2402, 1.0
        %v2475 = vmin.f32 %v2403, 1.0
        %v2476 = vmin.f32 %v2404, 1.0
        %v2477 = vmin.f32 %v2405, 1.0
        %v2478 = vmin.f32 %v2406, 1.0
        %v2479 = vmin.f32 %v2407, 1.0
        %v2480 = vmin.f32 %v2408, 1.0
        %v2481 = vmin.f32 %v2409, 1.0
        %v2482 = vmin.f32 %v2410, 1.0
        %v2483 = vmin.f32 %v2411, 1.0
        %v2484 = vmin.f32 %v2412, 1.0
        %v2485 = vmin.f32 %v2413, 1.0
        %v2486 = vmin.f32 %v2414, 1.0
        %v2487 = vmin.f32 %v2415, 1.0
        %v2488 = vmin.f32 %v2416, 1.0
        %v2489 = vmin.f32 %v2417, 1.0
        %v2490 = vmin.f32 %v2418, 1.0
        %v2491 = vmin.f32 %v2419, 1.0
        %v2492 = vmin.f32 %v2420, 1.0
        %v2493 = vmin.f32 %v2421, 1.0
        %v2494 = vmin.f32 %v2422, 1.0
        %v2495 = vmin.f32 %v2423, 1.0
        %v2496 = vmin.f32 %v2424, 1.0
        %v2497 = vmin.f32 %v2425, 1.0
        %v2498 = vmin.f32 %v2426, 1.0
        %v2499 = vmin.f32 %v2427, 1.0
        %v2500 = vmin.f32 %v2428, 1.0
        %v2501 = vmin.f32 %v2429, 1.0
        %v2502 = vmin.f32 %v2430, 1.0
        %v2503 = vmin.f32 %v2431, 1.0
        %v2504 = vmin.f32 %v2432, 1.0
        %v2505 = vmin.f32 %v2433, 1.0
        %v2506 = vmin.f32 %v2434, 1.0
        %v2507 = vmin.f32 %v2435, 1.0
        %v2508 = vmin.f32 %v2436, 1.0
        %v2509 = vmin.f32 %v2437, 1.0
        %v2510 = vmin.f32 %v2438, 1.0
        %v2511 = vmin.f32 %v2439, 1.0
        %v2512 = vmin.f32 %v2440, 1.0
        %v2513 = vpack.c.bf16 %v2441, %v2441
        %v2514 = vpack.c.bf16 %v2442, %v2442
        %v2515 = vpack.c.bf16 %v2443, %v2443
        %v2516 = vpack.c.bf16 %v2444, %v2444
        %v2517 = vpack.c.bf16 %v2445, %v2445
        %v2518 = vpack.c.bf16 %v2446, %v2446
        %v2519 = vpack.c.bf16 %v2447, %v2447
        %v2520 = vpack.c.bf16 %v2448, %v2448
        %v2521 = vpack.c.bf16 %v2449, %v2449
        %v2522 = vpack.c.bf16 %v2450, %v2450
        %v2523 = vpack.c.bf16 %v2451, %v2451
        %v2524 = vpack.c.bf16 %v2452, %v2452
        %v2525 = vpack.c.bf16 %v2453, %v2453
        %v2526 = vpack.c.bf16 %v2454, %v2454
        %v2527 = vpack.c.bf16 %v2455, %v2455
        %v2528 = vpack.c.bf16 %v2456, %v2456
        %v2529 = vpack.c.bf16 %v2457, %v2457
        %v2530 = vpack.c.bf16 %v2458, %v2458
        %v2531 = vpack.c.bf16 %v2459, %v2459
        %v2532 = vpack.c.bf16 %v2460, %v2460
        %v2533 = vpack.c.bf16 %v2461, %v2461
        %v2534 = vpack.c.bf16 %v2462, %v2462
        %v2535 = vpack.c.bf16 %v2463, %v2463
        %v2536 = vpack.c.bf16 %v2464, %v2464
        %v2537 = vpack.c.bf16 %v2465, %v2465
        %v2538 = vpack.c.bf16 %v2466, %v2466
        %v2539 = vpack.c.bf16 %v2467, %v2467
        %v2540 = vpack.c.bf16 %v2468, %v2468
        %v2541 = vpack.c.bf16 %v2469, %v2469
        %v2542 = vpack.c.bf16 %v2470, %v2470
        %v2543 = vpack.c.bf16 %v2471, %v2471
        %v2544 = vpack.c.bf16 %v2472, %v2472
        %v2545 = vpack.c.bf16 %v2473, %v2473
        %v2546 = vpack.c.bf16 %v2474, %v2474
        %v2547 = vpack.c.bf16 %v2475, %v2475
        %v2548 = vpack.c.bf16 %v2476, %v2476
        %v2549 = vpack.c.bf16 %v2477, %v2477
        %v2550 = vpack.c.bf16 %v2478, %v2478
        %v2551 = vpack.c.bf16 %v2479, %v2479
        %v2552 = vpack.c.bf16 %v2480, %v2480
        %v2553 = vpack.c.bf16 %v2481, %v2481
        %v2554 = vpack.c.bf16 %v2482, %v2482
        %v2555 = vpack.c.bf16 %v2483, %v2483
        %v2556 = vpack.c.bf16 %v2484, %v2484
        %v2557 = vpack.c.bf16 %v2485, %v2485
        %v2558 = vpack.c.bf16 %v2486, %v2486
        %v2559 = vpack.c.bf16 %v2487, %v2487
        %v2560 = vpack.c.bf16 %v2488, %v2488
        %v2561 = vpack.c.bf16 %v2489, %v2489
        %v2562 = vpack.c.bf16 %v2490, %v2490
        %v2563 = vpack.c.bf16 %v2491, %v2491
        %v2564 = vpack.c.bf16 %v2492, %v2492
        %v2565 = vpack.c.bf16 %v2493, %v2493
        %v2566 = vpack.c.bf16 %v2494, %v2494
        %v2567 = vpack.c.bf16 %v2495, %v2495
        %v2568 = vpack.c.bf16 %v2496, %v2496
        %v2569 = vpack.c.bf16 %v2497, %v2497
        %v2570 = vpack.c.bf16 %v2498, %v2498
        %v2571 = vpack.c.bf16 %v2499, %v2499
        %v2572 = vpack.c.bf16 %v2500, %v2500
        %v2573 = vpack.c.bf16 %v2501, %v2501
        %v2574 = vpack.c.bf16 %v2502, %v2502
        %v2575 = vpack.c.bf16 %v2503, %v2503
        %v2576 = vpack.c.bf16 %v2504, %v2504
        %v2577 = vpack.c.bf16 %v2505, %v2505
        %v2578 = vpack.c.bf16 %v2506, %v2506
        %v2579 = vpack.c.bf16 %v2507, %v2507
        %v2580 = vpack.c.bf16 %v2508, %v2508
        %v2581 = vpack.c.bf16 %v2509, %v2509
        %v2582 = vpack.c.bf16 %v2510, %v2510
        %v2583 = vpack.c.bf16 %v2511, %v2511
        %v2584 = vpack.c.bf16 %v2512, %v2512
        %v2657 = vcombine.low %v2513, %v2514
        %v2658 = vcombine.low %v2515, %v2516
        %v2659 = vcombine.low %v2517, %v2518
        %v2660 = vcombine.low %v2519, %v2520
        %v2662 = vunpack.c.l.s4 1966171168
        %v2663 = vunpack.c.0.s8 %v2662
        %v2664 = vlaneseq
        %v2665 = vshrl.u32 %v2664, 7
        %v2666 = vsub.s32 %v2663, %v2665
        %v2667 = vrot.slane %v2657, %v2666
        %v2669 = vunpack.c.l.s4 1966171168
        %v2670 = vunpack.c.0.s8 %v2669
        %v2671 = vlaneseq
        %v2672 = vshrl.u32 %v2671, 7
        %v2673 = vsub.s32 %v2670, %v2672
        %v2674 = vrot.slane %v2658, %v2673
        %v2676 = vunpack.c.l.s4 1966171168
        %v2677 = vunpack.c.0.s8 %v2676
        %v2678 = vlaneseq
        %v2679 = vshrl.u32 %v2678, 7
        %v2680 = vsub.s32 %v2677, %v2679
        %v2681 = vrot.slane %v2659, %v2680
        %v2683 = vunpack.c.l.s4 1966171168
        %v2684 = vunpack.c.0.s8 %v2683
        %v2685 = vlaneseq
        %v2686 = vshrl.u32 %v2685, 7
        %v2687 = vsub.s32 %v2684, %v2686
        %v2688 = vrot.slane %v2660, %v2687
        %v2689 = vcombine.low %v2667, %v2674
        %v2690 = vcombine.low %v2681, %v2688
        %v2692 = vunpack.c.l.s4 1966171168
        %v2693 = vunpack.c.0.s8 %v2692
        %v2694 = vlaneseq
        %v2695 = vshrl.u32 %v2694, 7
        %v2696 = vsub.s32 %v2693, %v2695
        %v2697 = vrot.slane %v2689, %v2696
        %v2699 = vunpack.c.l.s4 1966171168
        %v2700 = vunpack.c.0.s8 %v2699
        %v2701 = vlaneseq
        %v2702 = vshrl.u32 %v2701, 7
        %v2703 = vsub.s32 %v2700, %v2702
        %v2704 = vrot.slane %v2690, %v2703
        %v2705 = vcombine.low %v2697, %v2704
        %v2706 = vcombine.low %v2521, %v2522
        %v2707 = vcombine.low %v2523, %v2524
        %v2708 = vcombine.low %v2525, %v2526
        %v2709 = vcombine.low %v2527, %v2528
        %v2711 = vunpack.c.l.s4 1966171168
        %v2712 = vunpack.c.0.s8 %v2711
        %v2713 = vlaneseq
        %v2714 = vshrl.u32 %v2713, 7
        %v2715 = vsub.s32 %v2712, %v2714
        %v2716 = vrot.slane %v2706, %v2715
        %v2718 = vunpack.c.l.s4 1966171168
        %v2719 = vunpack.c.0.s8 %v2718
        %v2720 = vlaneseq
        %v2721 = vshrl.u32 %v2720, 7
        %v2722 = vsub.s32 %v2719, %v2721
        %v2723 = vrot.slane %v2707, %v2722
        %v2725 = vunpack.c.l.s4 1966171168
        %v2726 = vunpack.c.0.s8 %v2725
        %v2727 = vlaneseq
        %v2728 = vshrl.u32 %v2727, 7
        %v2729 = vsub.s32 %v2726, %v2728
        %v2730 = vrot.slane %v2708, %v2729
        %v2732 = vunpack.c.l.s4 1966171168
        %v2733 = vunpack.c.0.s8 %v2732
        %v2734 = vlaneseq
        %v2735 = vshrl.u32 %v2734, 7
        %v2736 = vsub.s32 %v2733, %v2735
        %v2737 = vrot.slane %v2709, %v2736
        %v2738 = vcombine.low %v2716, %v2723
        %v2739 = vcombine.low %v2730, %v2737
        %v2741 = vunpack.c.l.s4 1966171168
        %v2742 = vunpack.c.0.s8 %v2741
        %v2743 = vlaneseq
        %v2744 = vshrl.u32 %v2743, 7
        %v2745 = vsub.s32 %v2742, %v2744
        %v2746 = vrot.slane %v2738, %v2745
        %v2748 = vunpack.c.l.s4 1966171168
        %v2749 = vunpack.c.0.s8 %v2748
        %v2750 = vlaneseq
        %v2751 = vshrl.u32 %v2750, 7
        %v2752 = vsub.s32 %v2749, %v2751
        %v2753 = vrot.slane %v2739, %v2752
        %v2754 = vcombine.low %v2746, %v2753
        %v2755 = vcombine.low %v2529, %v2530
        %v2756 = vcombine.low %v2531, %v2532
        %v2757 = vcombine.low %v2533, %v2534
        %v2758 = vcombine.low %v2535, %v2536
        %v2760 = vunpack.c.l.s4 1966171168
        %v2761 = vunpack.c.0.s8 %v2760
        %v2762 = vlaneseq
        %v2763 = vshrl.u32 %v2762, 7
        %v2764 = vsub.s32 %v2761, %v2763
        %v2765 = vrot.slane %v2755, %v2764
        %v2767 = vunpack.c.l.s4 1966171168
        %v2768 = vunpack.c.0.s8 %v2767
        %v2769 = vlaneseq
        %v2770 = vshrl.u32 %v2769, 7
        %v2771 = vsub.s32 %v2768, %v2770
        %v2772 = vrot.slane %v2756, %v2771
        %v2774 = vunpack.c.l.s4 1966171168
        %v2775 = vunpack.c.0.s8 %v2774
        %v2776 = vlaneseq
        %v2777 = vshrl.u32 %v2776, 7
        %v2778 = vsub.s32 %v2775, %v2777
        %v2779 = vrot.slane %v2757, %v2778
        %v2781 = vunpack.c.l.s4 1966171168
        %v2782 = vunpack.c.0.s8 %v2781
        %v2783 = vlaneseq
        %v2784 = vshrl.u32 %v2783, 7
        %v2785 = vsub.s32 %v2782, %v2784
        %v2786 = vrot.slane %v2758, %v2785
        %v2787 = vcombine.low %v2765, %v2772
        %v2788 = vcombine.low %v2779, %v2786
        %v2790 = vunpack.c.l.s4 1966171168
        %v2791 = vunpack.c.0.s8 %v2790
        %v2792 = vlaneseq
        %v2793 = vshrl.u32 %v2792, 7
        %v2794 = vsub.s32 %v2791, %v2793
        %v2795 = vrot.slane %v2787, %v2794
        %v2797 = vunpack.c.l.s4 1966171168
        %v2798 = vunpack.c.0.s8 %v2797
        %v2799 = vlaneseq
        %v2800 = vshrl.u32 %v2799, 7
        %v2801 = vsub.s32 %v2798, %v2800
        %v2802 = vrot.slane %v2788, %v2801
        %v2803 = vcombine.low %v2795, %v2802
        %v2804 = vcombine.low %v2537, %v2538
        %v2805 = vcombine.low %v2539, %v2540
        %v2806 = vcombine.low %v2541, %v2542
        %v2807 = vcombine.low %v2543, %v2544
        %v2809 = vunpack.c.l.s4 1966171168
        %v2810 = vunpack.c.0.s8 %v2809
        %v2811 = vlaneseq
        %v2812 = vshrl.u32 %v2811, 7
        %v2813 = vsub.s32 %v2810, %v2812
        %v2814 = vrot.slane %v2804, %v2813
        %v2816 = vunpack.c.l.s4 1966171168
        %v2817 = vunpack.c.0.s8 %v2816
        %v2818 = vlaneseq
        %v2819 = vshrl.u32 %v2818, 7
        %v2820 = vsub.s32 %v2817, %v2819
        %v2821 = vrot.slane %v2805, %v2820
        %v2823 = vunpack.c.l.s4 1966171168
        %v2824 = vunpack.c.0.s8 %v2823
        %v2825 = vlaneseq
        %v2826 = vshrl.u32 %v2825, 7
        %v2827 = vsub.s32 %v2824, %v2826
        %v2828 = vrot.slane %v2806, %v2827
        %v2830 = vunpack.c.l.s4 1966171168
        %v2831 = vunpack.c.0.s8 %v2830
        %v2832 = vlaneseq
        %v2833 = vshrl.u32 %v2832, 7
        %v2834 = vsub.s32 %v2831, %v2833
        %v2835 = vrot.slane %v2807, %v2834
        %v2836 = vcombine.low %v2814, %v2821
        %v2837 = vcombine.low %v2828, %v2835
        %v2839 = vunpack.c.l.s4 1966171168
        %v2840 = vunpack.c.0.s8 %v2839
        %v2841 = vlaneseq
        %v2842 = vshrl.u32 %v2841, 7
        %v2843 = vsub.s32 %v2840, %v2842
        %v2844 = vrot.slane %v2836, %v2843
        %v2846 = vunpack.c.l.s4 1966171168
        %v2847 = vunpack.c.0.s8 %v2846
        %v2848 = vlaneseq
        %v2849 = vshrl.u32 %v2848, 7
        %v2850 = vsub.s32 %v2847, %v2849
        %v2851 = vrot.slane %v2837, %v2850
        %v2852 = vcombine.low %v2844, %v2851
        %v2853 = vcombine.low %v2545, %v2546
        %v2854 = vcombine.low %v2547, %v2548
        %v2855 = vcombine.low %v2549, %v2550
        %v2856 = vcombine.low %v2551, %v2552
        %v2858 = vunpack.c.l.s4 1966171168
        %v2859 = vunpack.c.0.s8 %v2858
        %v2860 = vlaneseq
        %v2861 = vshrl.u32 %v2860, 7
        %v2862 = vsub.s32 %v2859, %v2861
        %v2863 = vrot.slane %v2853, %v2862
        %v2865 = vunpack.c.l.s4 1966171168
        %v2866 = vunpack.c.0.s8 %v2865
        %v2867 = vlaneseq
        %v2868 = vshrl.u32 %v2867, 7
        %v2869 = vsub.s32 %v2866, %v2868
        %v2870 = vrot.slane %v2854, %v2869
        %v2872 = vunpack.c.l.s4 1966171168
        %v2873 = vunpack.c.0.s8 %v2872
        %v2874 = vlaneseq
        %v2875 = vshrl.u32 %v2874, 7
        %v2876 = vsub.s32 %v2873, %v2875
        %v2877 = vrot.slane %v2855, %v2876
        %v2879 = vunpack.c.l.s4 1966171168
        %v2880 = vunpack.c.0.s8 %v2879
        %v2881 = vlaneseq
        %v2882 = vshrl.u32 %v2881, 7
        %v2883 = vsub.s32 %v2880, %v2882
        %v2884 = vrot.slane %v2856, %v2883
        %v2885 = vcombine.low %v2863, %v2870
        %v2886 = vcombine.low %v2877, %v2884
        %v2888 = vunpack.c.l.s4 1966171168
        %v2889 = vunpack.c.0.s8 %v2888
        %v2890 = vlaneseq
        %v2891 = vshrl.u32 %v2890, 7
        %v2892 = vsub.s32 %v2889, %v2891
        %v2893 = vrot.slane %v2885, %v2892
        %v2895 = vunpack.c.l.s4 1966171168
        %v2896 = vunpack.c.0.s8 %v2895
        %v2897 = vlaneseq
        %v2898 = vshrl.u32 %v2897, 7
        %v2899 = vsub.s32 %v2896, %v2898
        %v2900 = vrot.slane %v2886, %v2899
        %v2901 = vcombine.low %v2893, %v2900
        %v2902 = vcombine.low %v2553, %v2554
        %v2903 = vcombine.low %v2555, %v2556
        %v2904 = vcombine.low %v2557, %v2558
        %v2905 = vcombine.low %v2559, %v2560
        %v2907 = vunpack.c.l.s4 1966171168
        %v2908 = vunpack.c.0.s8 %v2907
        %v2909 = vlaneseq
        %v2910 = vshrl.u32 %v2909, 7
        %v2911 = vsub.s32 %v2908, %v2910
        %v2912 = vrot.slane %v2902, %v2911
        %v2914 = vunpack.c.l.s4 1966171168
        %v2915 = vunpack.c.0.s8 %v2914
        %v2916 = vlaneseq
        %v2917 = vshrl.u32 %v2916, 7
        %v2918 = vsub.s32 %v2915, %v2917
        %v2919 = vrot.slane %v2903, %v2918
        %v2921 = vunpack.c.l.s4 1966171168
        %v2922 = vunpack.c.0.s8 %v2921
        %v2923 = vlaneseq
        %v2924 = vshrl.u32 %v2923, 7
        %v2925 = vsub.s32 %v2922, %v2924
        %v2926 = vrot.slane %v2904, %v2925
        %v2928 = vunpack.c.l.s4 1966171168
        %v2929 = vunpack.c.0.s8 %v2928
        %v2930 = vlaneseq
        %v2931 = vshrl.u32 %v2930, 7
        %v2932 = vsub.s32 %v2929, %v2931
        %v2933 = vrot.slane %v2905, %v2932
        %v2934 = vcombine.low %v2912, %v2919
        %v2935 = vcombine.low %v2926, %v2933
        %v2937 = vunpack.c.l.s4 1966171168
        %v2938 = vunpack.c.0.s8 %v2937
        %v2939 = vlaneseq
        %v2940 = vshrl.u32 %v2939, 7
        %v2941 = vsub.s32 %v2938, %v2940
        %v2942 = vrot.slane %v2934, %v2941
        %v2944 = vunpack.c.l.s4 1966171168
        %v2945 = vunpack.c.0.s8 %v2944
        %v2946 = vlaneseq
        %v2947 = vshrl.u32 %v2946, 7
        %v2948 = vsub.s32 %v2945, %v2947
        %v2949 = vrot.slane %v2935, %v2948
        %v2950 = vcombine.low %v2942, %v2949
        %v2951 = vcombine.low %v2561, %v2562
        %v2952 = vcombine.low %v2563, %v2564
        %v2953 = vcombine.low %v2565, %v2566
        %v2954 = vcombine.low %v2567, %v2568
        %v2956 = vunpack.c.l.s4 1966171168
        %v2957 = vunpack.c.0.s8 %v2956
        %v2958 = vlaneseq
        %v2959 = vshrl.u32 %v2958, 7
        %v2960 = vsub.s32 %v2957, %v2959
        %v2961 = vrot.slane %v2951, %v2960
        %v2963 = vunpack.c.l.s4 1966171168
        %v2964 = vunpack.c.0.s8 %v2963
        %v2965 = vlaneseq
        %v2966 = vshrl.u32 %v2965, 7
        %v2967 = vsub.s32 %v2964, %v2966
        %v2968 = vrot.slane %v2952, %v2967
        %v2970 = vunpack.c.l.s4 1966171168
        %v2971 = vunpack.c.0.s8 %v2970
        %v2972 = vlaneseq
        %v2973 = vshrl.u32 %v2972, 7
        %v2974 = vsub.s32 %v2971, %v2973
        %v2975 = vrot.slane %v2953, %v2974
        %v2977 = vunpack.c.l.s4 1966171168
        %v2978 = vunpack.c.0.s8 %v2977
        %v2979 = vlaneseq
        %v2980 = vshrl.u32 %v2979, 7
        %v2981 = vsub.s32 %v2978, %v2980
        %v2982 = vrot.slane %v2954, %v2981
        %v2983 = vcombine.low %v2961, %v2968
        %v2984 = vcombine.low %v2975, %v2982
        %v2986 = vunpack.c.l.s4 1966171168
        %v2987 = vunpack.c.0.s8 %v2986
        %v2988 = vlaneseq
        %v2989 = vshrl.u32 %v2988, 7
        %v2990 = vsub.s32 %v2987, %v2989
        %v2991 = vrot.slane %v2983, %v2990
        %v2993 = vunpack.c.l.s4 1966171168
        %v2994 = vunpack.c.0.s8 %v2993
        %v2995 = vlaneseq
        %v2996 = vshrl.u32 %v2995, 7
        %v2997 = vsub.s32 %v2994, %v2996
        %v2998 = vrot.slane %v2984, %v2997
        %v2999 = vcombine.low %v2991, %v2998
        %v3000 = vcombine.low %v2569, %v2570
        %v3001 = vcombine.low %v2571, %v2572
        %v3002 = vcombine.low %v2573, %v2574
        %v3003 = vcombine.low %v2575, %v2576
        %v3005 = vunpack.c.l.s4 1966171168
        %v3006 = vunpack.c.0.s8 %v3005
        %v3007 = vlaneseq
        %v3008 = vshrl.u32 %v3007, 7
        %v3009 = vsub.s32 %v3006, %v3008
        %v3010 = vrot.slane %v3000, %v3009
        %v3012 = vunpack.c.l.s4 1966171168
        %v3013 = vunpack.c.0.s8 %v3012
        %v3014 = vlaneseq
        %v3015 = vshrl.u32 %v3014, 7
        %v3016 = vsub.s32 %v3013, %v3015
        %v3017 = vrot.slane %v3001, %v3016
        %v3019 = vunpack.c.l.s4 1966171168
        %v3020 = vunpack.c.0.s8 %v3019
        %v3021 = vlaneseq
        %v3022 = vshrl.u32 %v3021, 7
        %v3023 = vsub.s32 %v3020, %v3022
        %v3024 = vrot.slane %v3002, %v3023
        %v3026 = vunpack.c.l.s4 1966171168
        %v3027 = vunpack.c.0.s8 %v3026
        %v3028 = vlaneseq
        %v3029 = vshrl.u32 %v3028, 7
        %v3030 = vsub.s32 %v3027, %v3029
        %v3031 = vrot.slane %v3003, %v3030
        %v3032 = vcombine.low %v3010, %v3017
        %v3033 = vcombine.low %v3024, %v3031
        %v3035 = vunpack.c.l.s4 1966171168
        %v3036 = vunpack.c.0.s8 %v3035
        %v3037 = vlaneseq
        %v3038 = vshrl.u32 %v3037, 7
        %v3039 = vsub.s32 %v3036, %v3038
        %v3040 = vrot.slane %v3032, %v3039
        %v3042 = vunpack.c.l.s4 1966171168
        %v3043 = vunpack.c.0.s8 %v3042
        %v3044 = vlaneseq
        %v3045 = vshrl.u32 %v3044, 7
        %v3046 = vsub.s32 %v3043, %v3045
        %v3047 = vrot.slane %v3033, %v3046
        %v3048 = vcombine.low %v3040, %v3047
        %v3049 = vcombine.low %v2577, %v2578
        %v3050 = vcombine.low %v2579, %v2580
        %v3051 = vcombine.low %v2581, %v2582
        %v3052 = vcombine.low %v2583, %v2584
        %v3054 = vunpack.c.l.s4 1966171168
        %v3055 = vunpack.c.0.s8 %v3054
        %v3056 = vlaneseq
        %v3057 = vshrl.u32 %v3056, 7
        %v3058 = vsub.s32 %v3055, %v3057
        %v3059 = vrot.slane %v3049, %v3058
        %v3061 = vunpack.c.l.s4 1966171168
        %v3062 = vunpack.c.0.s8 %v3061
        %v3063 = vlaneseq
        %v3064 = vshrl.u32 %v3063, 7
        %v3065 = vsub.s32 %v3062, %v3064
        %v3066 = vrot.slane %v3050, %v3065
        %v3068 = vunpack.c.l.s4 1966171168
        %v3069 = vunpack.c.0.s8 %v3068
        %v3070 = vlaneseq
        %v3071 = vshrl.u32 %v3070, 7
        %v3072 = vsub.s32 %v3069, %v3071
        %v3073 = vrot.slane %v3051, %v3072
        %v3075 = vunpack.c.l.s4 1966171168
        %v3076 = vunpack.c.0.s8 %v3075
        %v3077 = vlaneseq
        %v3078 = vshrl.u32 %v3077, 7
        %v3079 = vsub.s32 %v3076, %v3078
        %v3080 = vrot.slane %v3052, %v3079
        %v3081 = vcombine.low %v3059, %v3066
        %v3082 = vcombine.low %v3073, %v3080
        %v3084 = vunpack.c.l.s4 1966171168
        %v3085 = vunpack.c.0.s8 %v3084
        %v3086 = vlaneseq
        %v3087 = vshrl.u32 %v3086, 7
        %v3088 = vsub.s32 %v3085, %v3087
        %v3089 = vrot.slane %v3081, %v3088
        %v3091 = vunpack.c.l.s4 1966171168
        %v3092 = vunpack.c.0.s8 %v3091
        %v3093 = vlaneseq
        %v3094 = vshrl.u32 %v3093, 7
        %v3095 = vsub.s32 %v3092, %v3094
        %v3096 = vrot.slane %v3082, %v3095
        %v3097 = vcombine.low %v3089, %v3096
        %3107 = vst [vmem:[%s304] sm:$0xff] %v2705
        %3108 = vst [vmem:[%s304 + $0x8] sm:$0xff] %v2754
        %3109 = vst [vmem:[%s304 + $0x10] sm:$0xff] %v2803
        %3110 = vst [vmem:[%s304 + $0x18] sm:$0xff] %v2852
        %3111 = vst [vmem:[%s304 + $0x20] sm:$0xff] %v2901
        %3112 = vst [vmem:[%s304 + $0x28] sm:$0xff] %v2950
        %3113 = vst [vmem:[%s304 + $0x30] sm:$0xff] %v2999
        %3114 = vst [vmem:[%s304 + $0x38] sm:$0xff] %v3048
        %3115 = vst [vmem:[%s304 + $0x40] sm:$0xff] %v3097
        %s3116 = smul.u32 72, %s13
        %p3117 = scmp.lt.s32.totalorder %s3116, 287
        %s3118 = scalar_select %p3117, %s3116, 287
        %s3119 = scalar_lea.vmem %s2, %s3118
        // Predicated region
        $region52: #{_lambda_.5} parent=46 // pred_check
          %p3120 = pneg %p78
        $region53: #{_lambda_.5} parent=46 // pred_check_branch
          %3122 = sbr.rel (%p3120) target = $region55
        $region54: #{_lambda_.5} parent=46 // pred_region
          %s3123 = smul.u32 72, %s13
        $region55: #{_lambda_.5} parent=46 // pred_fallthru
          _
      $region47: #{_lambda_.5} parent=5 // pred_fallthru
        _
      %p3124 = scmp.le.s32.totalorder 2, %s8
      // Predicated region
      $region56: #{_lambda_.5} parent=5 // pred_check
        %p3125 = pneg %p3124
      $region57: #{_lambda_.5} parent=5 // pred_check_branch
        %3127 = sbr.rel (%p3125) target = $region59
      $region58: #{_lambda_.5} parent=5 // pred_region
        %s3128 = ssub.s32 %s8, 2
        // Predicated region
        $region60: #{_lambda_.5} parent=58 // pred_check
          %p3129 = pneg %p84
        $region61: #{_lambda_.5} parent=58 // pred_check_branch
          %3131 = sbr.rel (%p3129) target = $region63
        $region62: #{_lambda_.5} parent=58 // pred_region
          %s3132 = smul.u32 72, %s14
          %p3133 = scmp.lt.s32.totalorder %s3132, 287
          %s3134 = scalar_select %p3133, %s3132, 287
          %s3135 = scalar_lea.vmem %s2, %s3134
        $region63: #{_lambda_.5} parent=58 // pred_fallthru
          _
      $region59: #{_lambda_.5} parent=5 // pred_fallthru
        _
    $region6: #{_lambda_.5} parent=1 // loop_footer
      %s12 = sadd.s32 1, %s8
    $region7: #{_lambda_.5} parent=1 // loop_footer_branch
      %7 = sbr.rel target = $region3
    $region8: #{_lambda_.5} parent=1 // loop_exit
      _

</llo_original>
